<compile_context>
chip_gen: v5e
topology: v5e:2x2
jax: 0.10.0
libtpu: 0.0.40
codegen_flags: <defaults>
</compile_context>

<pallas_src>
import functools

import jax
import jax.numpy as jnp
from jax.experimental import pallas as pl
from jax.experimental.pallas import tpu as pltpu


# ----------------------------------------------------------------------------
# Probe: is a dynamic-shift pltpu.roll available, and which sign convention?
# ----------------------------------------------------------------------------
def _roll_probe_kernel(shift_ref, x_ref, o0_ref, o1_ref):
    o0_ref[...] = pltpu.roll(x_ref[...], shift_ref[0], 0)   # sublane axis
    o1_ref[...] = pltpu.roll(x_ref[...], shift_ref[1], 1)   # lane axis


@functools.lru_cache(maxsize=None)
def _probe_roll_negate(H, W):
    """True/False -> sign convention of dynamic pltpu.roll; None -> use matmul fallback."""
    try:
        x = jnp.arange(H * W, dtype=jnp.float32).reshape(H, W)
        shifts = jnp.array([3, 5], dtype=jnp.int32)
        o0, o1 = pl.pallas_call(
            _roll_probe_kernel,
            out_shape=(jax.ShapeDtypeStruct((H, W), jnp.float32),
                       jax.ShapeDtypeStruct((H, W), jnp.float32)),
            in_specs=[
                pl.BlockSpec(memory_space=pltpu.MemorySpace.SMEM),
                pl.BlockSpec(memory_space=pltpu.MemorySpace.VMEM),
            ],
            out_specs=(pl.BlockSpec(memory_space=pltpu.MemorySpace.VMEM),
                       pl.BlockSpec(memory_space=pltpu.MemorySpace.VMEM)),
        )(shifts, x)
        o0, o1 = jax.block_until_ready((o0, o1))
        fwd = (bool(jnp.array_equal(o0, jnp.roll(x, 3, 0)))
               and bool(jnp.array_equal(o1, jnp.roll(x, 5, 1))))
        bwd = (bool(jnp.array_equal(o0, jnp.roll(x, -3, 0)))
               and bool(jnp.array_equal(o1, jnp.roll(x, -5, 1))))
        if fwd:
            return True    # pltpu.roll == jnp.roll: to read src index i+k, pass mod(-k, n)
        if bwd:
            return False   # reversed convention: pass mod(+k, n)
        return None
    except Exception:
        return None


# ----------------------------------------------------------------------------
# Fast kernel: 4-tap bilinear shift via dynamic rolls + iota masks (no MXU work).
# ----------------------------------------------------------------------------
def _shadow_roll_kernel(iparams_ref, fparams_ref, depth_ref, out_ref, *, layers):
    b = pl.program_id(0)
    _, H, W = depth_ref.shape
    Wf = float(W)
    L = layers

    dmin = fparams_ref[b, 3 * L + 0]
    inv_denom = fparams_ref[b, 3 * L + 1]

    def shift_rows(a, k, amt):
        # out[y, x] = a[y + k, x] if 0 <= y + k < H else 0  (zeros padding)
        rolled = pltpu.roll(a, amt, 0)
        rows = jax.lax.broadcasted_iota(jnp.int32, a.shape, 0)
        src = rows + k
        return jnp.where((src >= 0) & (src < H), rolled, 0.0)

    def shift_cols(a, k, amt):
        # out[y, x] = a[y, x + k] if 0 <= x + k < W else 0
        rolled = pltpu.roll(a, amt, 1)
        cols = jax.lax.broadcasted_iota(jnp.int32, a.shape, 1)
        src = cols + k
        return jnp.where((src >= 0) & (src < W), rolled, 0.0)

    # depth = (depth - depth.min()) * depth.shape[-1]
    dp = (depth_ref[0] - dmin) * Wf
    for t in range(L):
        fy = fparams_ref[b, 3 * t + 0]            # frac(dy * 2^t)
        fx = fparams_ref[b, 3 * t + 1]            # frac(dx * 2^t)
        drop = fparams_ref[b, 3 * t + 2]          # slope * 2^t
        ky = iparams_ref[b, 6 * t + 0]            # floor(dy * 2^t)
        kx = iparams_ref[b, 6 * t + 1]            # floor(dx * 2^t)
        ay0 = iparams_ref[b, 6 * t + 2]           # roll amounts (precomputed, in [0, n))
        ay1 = iparams_ref[b, 6 * t + 3]
        ax0 = iparams_ref[b, 6 * t + 4]
        ax1 = iparams_ref[b, 6 * t + 5]

        img = dp - drop                            # subtract BEFORE warp (matches torch)
        r0 = shift_rows(img, ky, ay0)
        r1 = shift_rows(img, ky + 1, ay1)
        rb = r0 + fy * (r1 - r0)                   # bilinear blend along y
        c0 = shift_cols(rb, kx, ax0)
        c1 = shift_cols(rb, kx + 1, ax1)
        sampled = c0 + fx * (c1 - c0)              # bilinear blend along x
        dp = jnp.maximum(dp, sampled)

    d = (depth_ref[0] - dmin) * Wf                 # recompute: keeps d out of the loop's live set
    out_ref[0] = jnp.exp((d - dp) * inv_denom)


# ----------------------------------------------------------------------------
# Fallback kernel: dense separable hat-matrix matmuls (always lowers).
# ----------------------------------------------------------------------------
def _shadow_matmul_kernel(fparams_ref, depth_ref, out_ref, *, layers):
    b = pl.program_id(0)
    _, H, W = depth_ref.shape
    Wf = float(W)
    L = layers

    dmin = fparams_ref[b, 3 * L + 0]
    inv_denom = fparams_ref[b, 3 * L + 1]
    dx = fparams_ref[b, 3 * L + 2]
    dy = fparams_ref[b, 3 * L + 3]

    dp = (depth_ref[0] - dmin) * Wf
    for t in range(L):
        step = float(2 ** t)
        sy = dy * step
        sx = dx * step
        drop = fparams_ref[b, 3 * t + 2]

        # Rebuilt per layer (not hoisted) to avoid 32 live vregs across the unrolled loop.
        y_out = jax.lax.broadcasted_iota(jnp.int32, (H, H), 0)
        y_in = jax.lax.broadcasted_iota(jnp.int32, (H, H), 1)
        x_in = jax.lax.broadcasted_iota(jnp.int32, (W, W), 0)
        x_out = jax.lax.broadcasted_iota(jnp.int32, (W, W), 1)
        ky = jnp.maximum(0.0, 1.0 - jnp.abs((y_in - y_out).astype(jnp.float32) - sy))
        kxt = jnp.maximum(0.0, 1.0 - jnp.abs((x_in - x_out).astype(jnp.float32) - sx))

        shifted = dp - drop
        tmp = jnp.dot(ky, shifted, preferred_element_type=jnp.float32)
        sampled = jnp.dot(tmp, kxt, preferred_element_type=jnp.float32)
        dp = jnp.maximum(dp, sampled)

    d = (depth_ref[0] - dmin) * Wf
    out_ref[0] = jnp.exp((d - dp) * inv_denom)


# ----------------------------------------------------------------------------
# Wrapper
# ----------------------------------------------------------------------------
def shadow_estimation(l_dir, depth, tau, layers=8):
    B, C, H, W = depth.shape
    assert C == 1, "depth is a single-channel map (NCHW with C=1)"
    d = depth[:, 0].astype(jnp.float32)                       # (B, H, W)

    # ---- tiny scalar parameter prep (plain JAX glue, O(B*layers) numbers) ----
    xy = l_dir[:, :2].astype(jnp.float32)
    nrm = jnp.sqrt(jnp.sum(xy * xy, axis=1, keepdims=True))
    dxdy = xy / jnp.maximum(nrm, 1e-12)                       # F.normalize(..., dim=1)
    dxv, dyv = dxdy[:, 0], dxdy[:, 1]
    lz = l_dir[:, 2].astype(jnp.float32)
    slope = -lz * jax.lax.rsqrt(1.0 - lz * lz + 1e-10)

    # Global min: one fused XLA reduce (replaces the old Pallas reduction pass).
    dmin = jnp.min(d)
    inv_denom = 1.0 / (float(W) * jnp.abs(jnp.reshape(tau.astype(jnp.float32), ())))

    steps = jnp.asarray([2.0 ** t for t in range(layers)], jnp.float32)   # (L,)
    sy = dyv[:, None] * steps[None, :]                        # (B, L)
    sx = dxv[:, None] * steps[None, :]
    kyf, kxf = jnp.floor(sy), jnp.floor(sx)
    fy, fx = sy - kyf, sx - kxf
    kyi, kxi = kyf.astype(jnp.int32), kxf.astype(jnp.int32)
    drop = slope[:, None] * steps[None, :]                    # slope * 2^t, (B, L)

    per_layer_f = jnp.stack([fy, fx, drop], axis=-1).reshape(B, 3 * layers)
    glob_f = jnp.stack([jnp.broadcast_to(dmin, (B,)),
                        jnp.broadcast_to(inv_denom, (B,)),
                        dxv, dyv], axis=-1)                   # (B, 4)
    fparams = jnp.concatenate([per_layer_f, glob_f], axis=-1).astype(jnp.float32)

    depth_spec = pl.BlockSpec((1, H, W), lambda b: (b, 0, 0))
    smem_spec = pl.BlockSpec(memory_space=pltpu.MemorySpace.SMEM)
    cparams = pltpu.CompilerParams(dimension_semantics=("parallel",))

    negate = _probe_roll_negate(H, W)
    if negate is not None:
        # ---- fast path: 4-tap bilinear shift (rolls + masks + VPU blends) ----
        sgn = -1 if negate else 1
        ay0 = jnp.mod(sgn * kyi, H)
        ay1 = jnp.mod(sgn * (kyi + 1), H)
        ax0 = jnp.mod(sgn * kxi, W)
        ax1 = jnp.mod(sgn * (kxi + 1), W)
        iparams = jnp.stack([kyi, kxi, ay0, ay1, ax0, ax1],
                            axis=-1).reshape(B, 6 * layers).astype(jnp.int32)

        cost = pl.CostEstimate(flops=B * layers * 24 * H * W,
                               transcendentals=B * H * W,
                               bytes_accessed=2 * B * H * W * 4)
        out = pl.pallas_call(
            functools.partial(_shadow_roll_kernel, layers=layers),
            out_shape=jax.ShapeDtypeStruct((B, H, W), jnp.float32),
            grid=(B,),
            in_specs=[smem_spec, smem_spec, depth_spec],
            out_specs=depth_spec,
            compiler_params=cparams,
            cost_estimate=cost,
        )(iparams, fparams, d)
    else:
        # ---- fallback: dense hat-matrix matmuls (previous formulation, known-good) ----
        cost = pl.CostEstimate(flops=B * layers * 4 * H * W * max(H, W),
                               transcendentals=B * H * W,
                               bytes_accessed=2 * B * H * W * 4)
        out = pl.pallas_call(
            functools.partial(_shadow_matmul_kernel, layers=layers),
            out_shape=jax.ShapeDtypeStruct((B, H, W), jnp.float32),
            grid=(B,),
            in_specs=[smem_spec, depth_spec],
            out_specs=depth_spec,
            compiler_params=cparams,
            cost_estimate=cost,
        )(fparams, d)

    return out[:, None]                                       # back to (B, 1, H, W)


# ----------------------------------------------------------------------------
# Pure-JAX reference (mirrors the PyTorch / kornia semantics) for validation.
# ----------------------------------------------------------------------------
def _reference_forward(l_dir, depth, tau, layers):
    eps = 1e-10
    B, C, H, W = depth.shape
    d = (depth - depth.min()) * W
    xy = l_dir[:, :2]
    nrm = jnp.sqrt(jnp.sum(xy * xy, axis=1, keepdims=True))
    dxdy = xy / jnp.maximum(nrm, 1e-12)
    lz = l_dir[:, 2]
    slope = -lz * jax.lax.rsqrt(1.0 - lz * lz + eps)

    yy = jnp.arange(H, dtype=jnp.float32)[:, None]
    xx = jnp.arange(W, dtype=jnp.float32)[None, :]

    def bilinear(img, sy, sx):
        # sample img at (y + sy, x + sx) with bilinear interp, zeros outside
        py = yy + sy
        px = xx + sx
        y0 = jnp.floor(py).astype(jnp.int32)
        x0 = jnp.floor(px).astype(jnp.int32)
        fy = py - y0
        fx = px - x0

        def tap(yi, xi, w):
            valid = (yi >= 0) & (yi < H) & (xi >= 0) & (xi < W)
            yc = jnp.clip(yi, 0, H - 1)
            xc = jnp.clip(xi, 0, W - 1)
            return jnp.where(valid, img[yc, xc], 0.0) * w

        return (tap(y0, x0, (1 - fy) * (1 - fx))
                + tap(y0, x0 + 1, (1 - fy) * fx)
                + tap(y0 + 1, x0, fy * (1 - fx))
                + tap(y0 + 1, x0 + 1, fy * fx))

    dp = d
    for t in range(layers):
        step = 2.0 ** t
        shifted = dp - slope.reshape(B, 1, 1, 1) * step
        sampled = jax.vmap(bilinear)(shifted[:, 0], dxdy[:, 1] * step, dxdy[:, 0] * step)
        dp = jnp.maximum(dp, sampled[:, None])
    return jnp.exp((d - dp) / (W * jnp.abs(tau)))


if __name__ == "__main__":
    B, C, H, W = 2, 1, 128, 128
    LAYERS = 8

    key = jax.random.PRNGKey(0)
    k_depth, k_xy = jax.random.split(key)
    depth = jax.random.uniform(k_depth, (B, C, H, W), dtype=jnp.float32)
    xy = jax.random.normal(k_xy, (B, 2), dtype=jnp.float32)
    lz = jnp.array([0.35, -0.5], dtype=jnp.float32)                 # light z-components
    l_dir = jnp.concatenate([xy, lz[:, None]], axis=1)              # (B, 3)

    # deterministic parameter init (matches nn.Parameter(torch.ones(1,1,1,1)*tau))
    tau = jnp.full((1, 1, 1, 1), 0.1, dtype=jnp.float32)

    out = shadow_estimation(l_dir, depth, tau, layers=LAYERS)
    out = jax.block_until_ready(out)

    ref = _reference_forward(l_dir, depth, tau, LAYERS)
    err = float(jnp.max(jnp.abs(out - ref)))
    assert out.shape == (B, C, H, W)
    assert bool(jnp.all(jnp.isfinite(out)))
    assert err < 1e-2, f"max abs error vs reference: {err}"
    print("KERNEL_OK")
</pallas_src>

<mosaic_0001>
module attributes {stable_mosaic.version = 11 : i64} {
  func.func @_roll_probe_kernel(%arg0: memref<2xi32, #tpu.memory_space<smem>>, %arg1: memref<128x128xf32, #tpu.memory_space<vmem>>, %arg2: memref<128x128xf32, #tpu.memory_space<vmem>>, %arg3: memref<128x128xf32, #tpu.memory_space<vmem>>) attributes {dimension_semantics = [], scalar_prefetch = 0 : i64, scratch_operands = 0 : i64, tpu.core_type = #tpu.core_type<tc>} {
    %c0 = arith.constant 0 : index
    %c0_0 = arith.constant 0 : index
    %0 = vector.load %arg1[%c0, %c0_0] : memref<128x128xf32, #tpu.memory_space<vmem>>, vector<128x128xf32>
    %c0_1 = arith.constant 0 : index
    %1 = memref.load %arg0[%c0_1] : memref<2xi32, #tpu.memory_space<smem>>
    %2 = tpu.dynamic_rotate %0 by %1 dim 0 : vector<128x128xf32>, i32 -> vector<128x128xf32>
    %c0_2 = arith.constant 0 : index
    %c0_3 = arith.constant 0 : index
    %3 = vector.load %arg2[%c0_2, %c0_3] : memref<128x128xf32, #tpu.memory_space<vmem>>, vector<128x128xf32>
    tpu.vector_store %arg2[%c0_2, %c0_3], %2 {strides = array<i32>} : memref<128x128xf32, #tpu.memory_space<vmem>>, vector<128x128xf32>,
    %c0_4 = arith.constant 0 : index
    %c0_5 = arith.constant 0 : index
    %4 = vector.load %arg1[%c0_4, %c0_5] : memref<128x128xf32, #tpu.memory_space<vmem>>, vector<128x128xf32>
    %c1 = arith.constant 1 : index
    %5 = memref.load %arg0[%c1] : memref<2xi32, #tpu.memory_space<smem>>
    %6 = tpu.dynamic_rotate %4 by %5 dim 1 : vector<128x128xf32>, i32 -> vector<128x128xf32>
    %c0_6 = arith.constant 0 : index
    %c0_7 = arith.constant 0 : index
    %7 = vector.load %arg3[%c0_6, %c0_7] : memref<128x128xf32, #tpu.memory_space<vmem>>, vector<128x128xf32>
    tpu.vector_store %arg3[%c0_6, %c0_7], %6 {strides = array<i32>} : memref<128x128xf32, #tpu.memory_space<vmem>>, vector<128x128xf32>,
    return
  }
}

module attributes {stable_mosaic.version = 11 : i64} {
  func.func @_shadow_matmul_kernel(%arg0: i32, %arg1: memref<2x28xf32, #tpu.memory_space<smem>>, %arg2: memref<1x128x128xf32, #tpu.memory_space<vmem>>, %arg3: memref<1x128x128xf32, #tpu.memory_space<vmem>>) attributes {dimension_semantics = [#tpu.dimension_semantics<parallel>], iteration_bounds = array<i64: 2>, scalar_prefetch = 0 : i64, scratch_operands = 0 : i64, tpu.core_type = #tpu.core_type<tc>, window_params = [{transform_indices = @transform_0, window_bounds = array<i64: 2, 28>}, {transform_indices = @transform_1, window_bounds = array<i64: 1, 128, 128>}, {transform_indices = @transform_2, window_bounds = array<i64: 1, 128, 128>}]} {
    %0 = arith.index_cast %arg0 : i32 to index
    %c24 = arith.constant 24 : index
    %1 = memref.load %arg1[%0, %c24] : memref<2x28xf32, #tpu.memory_space<smem>>
    %2 = arith.index_cast %arg0 : i32 to index
    %c25 = arith.constant 25 : index
    %3 = memref.load %arg1[%2, %c25] : memref<2x28xf32, #tpu.memory_space<smem>>
    %4 = arith.index_cast %arg0 : i32 to index
    %c26 = arith.constant 26 : index
    %5 = memref.load %arg1[%4, %c26] : memref<2x28xf32, #tpu.memory_space<smem>>
    %6 = arith.index_cast %arg0 : i32 to index
    %c27 = arith.constant 27 : index
    %7 = memref.load %arg1[%6, %c27] : memref<2x28xf32, #tpu.memory_space<smem>>
    %c0 = arith.constant 0 : index
    %c0_0 = arith.constant 0 : index
    %c0_1 = arith.constant 0 : index
    %8 = vector.load %arg2[%c0, %c0_0, %c0_1] : memref<1x128x128xf32, #tpu.memory_space<vmem>>, vector<1x128x128xf32>
    %9 = vector.shape_cast %8 : vector<1x128x128xf32> to vector<128x128xf32>
    %10 = vector.broadcast %1 : f32 to vector<128x128xf32>
    %11 = arith.subf %9, %10 : vector<128x128xf32>
    %cst = arith.constant 1.280000e+02 : f32
    %12 = vector.broadcast %cst : f32 to vector<128x128xf32>
    %13 = arith.mulf %11, %12 : vector<128x128xf32>
    %cst_2 = arith.constant 1.000000e+00 : f32
    %14 = arith.mulf %7, %cst_2 : f32
    %cst_3 = arith.constant 1.000000e+00 : f32
    %15 = arith.mulf %5, %cst_3 : f32
    %16 = arith.index_cast %arg0 : i32 to index
    %c2 = arith.constant 2 : index
    %17 = memref.load %arg1[%16, %c2] : memref<2x28xf32, #tpu.memory_space<smem>>
    %18 = tpu.iota {dimensions = array<i32: 0>} : vector<128x128xi32>
    %19 = tpu.iota {dimensions = array<i32: 1>} : vector<128x128xi32>
    %20 = tpu.iota {dimensions = array<i32: 0>} : vector<128x128xi32>
    %21 = tpu.iota {dimensions = array<i32: 1>} : vector<128x128xi32>
    %22 = arith.subi %19, %18 : vector<128x128xi32>
    %23 = arith.sitofp %22 : vector<128x128xi32> to vector<128x128xf32>
    %24 = vector.broadcast %14 : f32 to vector<128x128xf32>
    %25 = arith.subf %23, %24 : vector<128x128xf32>
    %26 = math.absf %25 : vector<128x128xf32>
    %cst_4 = arith.constant 1.000000e+00 : f32
    %27 = vector.broadcast %cst_4 : f32 to vector<128x128xf32>
    %28 = arith.subf %27, %26 : vector<128x128xf32>
    %cst_5 = arith.constant 0.000000e+00 : f32
    %29 = vector.broadcast %cst_5 : f32 to vector<128x128xf32>
    %30 = arith.maximumf %29, %28 : vector<128x128xf32>
    %31 = arith.subi %20, %21 : vector<128x128xi32>
    %32 = arith.sitofp %31 : vector<128x128xi32> to vector<128x128xf32>
    %33 = vector.broadcast %15 : f32 to vector<128x128xf32>
    %34 = arith.subf %32, %33 : vector<128x128xf32>
    %35 = math.absf %34 : vector<128x128xf32>
    %cst_6 = arith.constant 1.000000e+00 : f32
    %36 = vector.broadcast %cst_6 : f32 to vector<128x128xf32>
    %37 = arith.subf %36, %35 : vector<128x128xf32>
    %cst_7 = arith.constant 0.000000e+00 : f32
    %38 = vector.broadcast %cst_7 : f32 to vector<128x128xf32>
    %39 = arith.maximumf %38, %37 : vector<128x128xf32>
    %40 = vector.broadcast %17 : f32 to vector<128x128xf32>
    %41 = arith.subf %13, %40 : vector<128x128xf32>
    %cst_8 = arith.constant dense<0.000000e+00> : vector<128x128xf32>
    %42 = tpu.matmul %30, %41, %cst_8 {dimension_numbers = #tpu.dot_dimension_numbers<[1], [0], [0], [1], [0, 0, 1, 1], [], []>} : vector<128x128xf32>, vector<128x128xf32>, vector<128x128xf32> -> vector<128x128xf32>
    %cst_9 = arith.constant dense<0.000000e+00> : vector<128x128xf32>
    %43 = tpu.matmul %42, %39, %cst_9 {dimension_numbers = #tpu.dot_dimension_numbers<[1], [0], [0], [1], [0, 0, 1, 1], [], []>} : vector<128x128xf32>, vector<128x128xf32>, vector<128x128xf32> -> vector<128x128xf32>
    %44 = arith.maximumf %13, %43 : vector<128x128xf32>
    %cst_10 = arith.constant 2.000000e+00 : f32
    %45 = arith.mulf %7, %cst_10 : f32
    %cst_11 = arith.constant 2.000000e+00 : f32
    %46 = arith.mulf %5, %cst_11 : f32
    %47 = arith.index_cast %arg0 : i32 to index
    %c5 = arith.constant 5 : index
    %48 = memref.load %arg1[%47, %c5] : memref<2x28xf32, #tpu.memory_space<smem>>
    %49 = tpu.iota {dimensions = array<i32: 0>} : vector<128x128xi32>
    %50 = tpu.iota {dimensions = array<i32: 1>} : vector<128x128xi32>
    %51 = tpu.iota {dimensions = array<i32: 0>} : vector<128x128xi32>
    %52 = tpu.iota {dimensions = array<i32: 1>} : vector<128x128xi32>
    %53 = arith.subi %50, %49 : vector<128x128xi32>
    %54 = arith.sitofp %53 : vector<128x128xi32> to vector<128x128xf32>
    %55 = vector.broadcast %45 : f32 to vector<128x128xf32>
    %56 = arith.subf %54, %55 : vector<128x128xf32>
    %57 = math.absf %56 : vector<128x128xf32>
    %cst_12 = arith.constant 1.000000e+00 : f32
    %58 = vector.broadcast %cst_12 : f32 to vector<128x128xf32>
    %59 = arith.subf %58, %57 : vector<128x128xf32>
    %cst_13 = arith.constant 0.000000e+00 : f32
    %60 = vector.broadcast %cst_13 : f32 to vector<128x128xf32>
    %61 = arith.maximumf %60, %59 : vector<128x128xf32>
    %62 = arith.subi %51, %52 : vector<128x128xi32>
    %63 = arith.sitofp %62 : vector<128x128xi32> to vector<128x128xf32>
    %64 = vector.broadcast %46 : f32 to vector<128x128xf32>
    %65 = arith.subf %63, %64 : vector<128x128xf32>
    %66 = math.absf %65 : vector<128x128xf32>
    %cst_14 = arith.constant 1.000000e+00 : f32
    %67 = vector.broadcast %cst_14 : f32 to vector<128x128xf32>
    %68 = arith.subf %67, %66 : vector<128x128xf32>
    %cst_15 = arith.constant 0.000000e+00 : f32
    %69 = vector.broadcast %cst_15 : f32 to vector<128x128xf32>
    %70 = arith.maximumf %69, %68 : vector<128x128xf32>
    %71 = vector.broadcast %48 : f32 to vector<128x128xf32>
    %72 = arith.subf %44, %71 : vector<128x128xf32>
    %cst_16 = arith.constant dense<0.000000e+00> : vector<128x128xf32>
    %73 = tpu.matmul %61, %72, %cst_16 {dimension_numbers = #tpu.dot_dimension_numbers<[1], [0], [0], [1], [0, 0, 1, 1], [], []>} : vector<128x128xf32>, vector<128x128xf32>, vector<128x128xf32> -> vector<128x128xf32>
    %cst_17 = arith.constant dense<0.000000e+00> : vector<128x128xf32>
    %74 = tpu.matmul %73, %70, %cst_17 {dimension_numbers = #tpu.dot_dimension_numbers<[1], [0], [0], [1], [0, 0, 1, 1], [], []>} : vector<128x128xf32>, vector<128x128xf32>, vector<128x128xf32> -> vector<128x128xf32>
    %75 = arith.maximumf %44, %74 : vector<128x128xf32>
    %cst_18 = arith.constant 4.000000e+00 : f32
    %76 = arith.mulf %7, %cst_18 : f32
    %cst_19 = arith.constant 4.000000e+00 : f32
    %77 = arith.mulf %5, %cst_19 : f32
    %78 = arith.index_cast %arg0 : i32 to index
    %c8 = arith.constant 8 : index
    %79 = memref.load %arg1[%78, %c8] : memref<2x28xf32, #tpu.memory_space<smem>>
    %80 = tpu.iota {dimensions = array<i32: 0>} : vector<128x128xi32>
    %81 = tpu.iota {dimensions = array<i32: 1>} : vector<128x128xi32>
    %82 = tpu.iota {dimensions = array<i32: 0>} : vector<128x128xi32>
    %83 = tpu.iota {dimensions = array<i32: 1>} : vector<128x128xi32>
    %84 = arith.subi %81, %80 : vector<128x128xi32>
    %85 = arith.sitofp %84 : vector<128x128xi32> to vector<128x128xf32>
    %86 = vector.broadcast %76 : f32 to vector<128x128xf32>
    %87 = arith.subf %85, %86 : vector<128x128xf32>
    %88 = math.absf %87 : vector<128x128xf32>
    %cst_20 = arith.constant 1.000000e+00 : f32
    %89 = vector.broadcast %cst_20 : f32 to vector<128x128xf32>
    %90 = arith.subf %89, %88 : vector<128x128xf32>
    %cst_21 = arith.constant 0.000000e+00 : f32
    %91 = vector.broadcast %cst_21 : f32 to vector<128x128xf32>
    %92 = arith.maximumf %91, %90 : vector<128x128xf32>
    %93 = arith.subi %82, %83 : vector<128x128xi32>
    %94 = arith.sitofp %93 : vector<128x128xi32> to vector<128x128xf32>
    %95 = vector.broadcast %77 : f32 to vector<128x128xf32>
    %96 = arith.subf %94, %95 : vector<128x128xf32>
    %97 = math.absf %96 : vector<128x128xf32>
    %cst_22 = arith.constant 1.000000e+00 : f32
    %98 = vector.broadcast %cst_22 : f32 to vector<128x128xf32>
    %99 = arith.subf %98, %97 : vector<128x128xf32>
    %cst_23 = arith.constant 0.000000e+00 : f32
    %100 = vector.broadcast %cst_23 : f32 to vector<128x128xf32>
    %101 = arith.maximumf %100, %99 : vector<128x128xf32>
    %102 = vector.broadcast %79 : f32 to vector<128x128xf32>
    %103 = arith.subf %75, %102 : vector<128x128xf32>
    %cst_24 = arith.constant dense<0.000000e+00> : vector<128x128xf32>
    %104 = tpu.matmul %92, %103, %cst_24 {dimension_numbers = #tpu.dot_dimension_numbers<[1], [0], [0], [1], [0, 0, 1, 1], [], []>} : vector<128x128xf32>, vector<128x128xf32>, vector<128x128xf32> -> vector<128x128xf32>
    %cst_25 = arith.constant dense<0.000000e+00> : vector<128x128xf32>
    %105 = tpu.matmul %104, %101, %cst_25 {dimension_numbers = #tpu.dot_dimension_numbers<[1], [0], [0], [1], [0, 0, 1, 1], [], []>} : vector<128x128xf32>, vector<128x128xf32>, vector<128x128xf32> -> vector<128x128xf32>
    %106 = arith.maximumf %75, %105 : vector<128x128xf32>
    %cst_26 = arith.constant 8.000000e+00 : f32
    %107 = arith.mulf %7, %cst_26 : f32
    %cst_27 = arith.constant 8.000000e+00 : f32
    %108 = arith.mulf %5, %cst_27 : f32
    %109 = arith.index_cast %arg0 : i32 to index
    %c11 = arith.constant 11 : index
    %110 = memref.load %arg1[%109, %c11] : memref<2x28xf32, #tpu.memory_space<smem>>
    %111 = tpu.iota {dimensions = array<i32: 0>} : vector<128x128xi32>
    %112 = tpu.iota {dimensions = array<i32: 1>} : vector<128x128xi32>
    %113 = tpu.iota {dimensions = array<i32: 0>} : vector<128x128xi32>
    %114 = tpu.iota {dimensions = array<i32: 1>} : vector<128x128xi32>
    %115 = arith.subi %112, %111 : vector<128x128xi32>
    %116 = arith.sitofp %115 : vector<128x128xi32> to vector<128x128xf32>
    %117 = vector.broadcast %107 : f32 to vector<128x128xf32>
    %118 = arith.subf %116, %117 : vector<128x128xf32>
    %119 = math.absf %118 : vector<128x128xf32>
    %cst_28 = arith.constant 1.000000e+00 : f32
    %120 = vector.broadcast %cst_28 : f32 to vector<128x128xf32>
    %121 = arith.subf %120, %119 : vector<128x128xf32>
    %cst_29 = arith.constant 0.000000e+00 : f32
    %122 = vector.broadcast %cst_29 : f32 to vector<128x128xf32>
    %123 = arith.maximumf %122, %121 : vector<128x128xf32>
    %124 = arith.subi %113, %114 : vector<128x128xi32>
    %125 = arith.sitofp %124 : vector<128x128xi32> to vector<128x128xf32>
    %126 = vector.broadcast %108 : f32 to vector<128x128xf32>
    %127 = arith.subf %125, %126 : vector<128x128xf32>
    %128 = math.absf %127 : vector<128x128xf32>
    %cst_30 = arith.constant 1.000000e+00 : f32
    %129 = vector.broadcast %cst_30 : f32 to vector<128x128xf32>
    %130 = arith.subf %129, %128 : vector<128x128xf32>
    %cst_31 = arith.constant 0.000000e+00 : f32
    %131 = vector.broadcast %cst_31 : f32 to vector<128x128xf32>
    %132 = arith.maximumf %131, %130 : vector<128x128xf32>
    %133 = vector.broadcast %110 : f32 to vector<128x128xf32>
    %134 = arith.subf %106, %133 : vector<128x128xf32>
    %cst_32 = arith.constant dense<0.000000e+00> : vector<128x128xf32>
    %135 = tpu.matmul %123, %134, %cst_32 {dimension_numbers = #tpu.dot_dimension_numbers<[1], [0], [0], [1], [0, 0, 1, 1], [], []>} : vector<128x128xf32>, vector<128x128xf32>, vector<128x128xf32> -> vector<128x128xf32>
    %cst_33 = arith.constant dense<0.000000e+00> : vector<128x128xf32>
    %136 = tpu.matmul %135, %132, %cst_33 {dimension_numbers = #tpu.dot_dimension_numbers<[1], [0], [0], [1], [0, 0, 1, 1], [], []>} : vector<128x128xf32>, vector<128x128xf32>, vector<128x128xf32> -> vector<128x128xf32>
    %137 = arith.maximumf %106, %136 : vector<128x128xf32>
    %cst_34 = arith.constant 1.600000e+01 : f32
    %138 = arith.mulf %7, %cst_34 : f32
    %cst_35 = arith.constant 1.600000e+01 : f32
    %139 = arith.mulf %5, %cst_35 : f32
    %140 = arith.index_cast %arg0 : i32 to index
    %c14 = arith.constant 14 : index
    %141 = memref.load %arg1[%140, %c14] : memref<2x28xf32, #tpu.memory_space<smem>>
    %142 = tpu.iota {dimensions = array<i32: 0>} : vector<128x128xi32>
    %143 = tpu.iota {dimensions = array<i32: 1>} : vector<128x128xi32>
    %144 = tpu.iota {dimensions = array<i32: 0>} : vector<128x128xi32>
    %145 = tpu.iota {dimensions = array<i32: 1>} : vector<128x128xi32>
    %146 = arith.subi %143, %142 : vector<128x128xi32>
    %147 = arith.sitofp %146 : vector<128x128xi32> to vector<128x128xf32>
    %148 = vector.broadcast %138 : f32 to vector<128x128xf32>
    %149 = arith.subf %147, %148 : vector<128x128xf32>
    %150 = math.absf %149 : vector<128x128xf32>
    %cst_36 = arith.constant 1.000000e+00 : f32
    %151 = vector.broadcast %cst_36 : f32 to vector<128x128xf32>
    %152 = arith.subf %151, %150 : vector<128x128xf32>
    %cst_37 = arith.constant 0.000000e+00 : f32
    %153 = vector.broadcast %cst_37 : f32 to vector<128x128xf32>
    %154 = arith.maximumf %153, %152 : vector<128x128xf32>
    %155 = arith.subi %144, %145 : vector<128x128xi32>
    %156 = arith.sitofp %155 : vector<128x128xi32> to vector<128x128xf32>
    %157 = vector.broadcast %139 : f32 to vector<128x128xf32>
    %158 = arith.subf %156, %157 : vector<128x128xf32>
    %159 = math.absf %158 : vector<128x128xf32>
    %cst_38 = arith.constant 1.000000e+00 : f32
    %160 = vector.broadcast %cst_38 : f32 to vector<128x128xf32>
    %161 = arith.subf %160, %159 : vector<128x128xf32>
    %cst_39 = arith.constant 0.000000e+00 : f32
    %162 = vector.broadcast %cst_39 : f32 to vector<128x128xf32>
    %163 = arith.maximumf %162, %161 : vector<128x128xf32>
    %164 = vector.broadcast %141 : f32 to vector<128x128xf32>
    %165 = arith.subf %137, %164 : vector<128x128xf32>
    %cst_40 = arith.constant dense<0.000000e+00> : vector<128x128xf32>
    %166 = tpu.matmul %154, %165, %cst_40 {dimension_numbers = #tpu.dot_dimension_numbers<[1], [0], [0], [1], [0, 0, 1, 1], [], []>} : vector<128x128xf32>, vector<128x128xf32>, vector<128x128xf32> -> vector<128x128xf32>
    %cst_41 = arith.constant dense<0.000000e+00> : vector<128x128xf32>
    %167 = tpu.matmul %166, %163, %cst_41 {dimension_numbers = #tpu.dot_dimension_numbers<[1], [0], [0], [1], [0, 0, 1, 1], [], []>} : vector<128x128xf32>, vector<128x128xf32>, vector<128x128xf32> -> vector<128x128xf32>
    %168 = arith.maximumf %137, %167 : vector<128x128xf32>
    %cst_42 = arith.constant 3.200000e+01 : f32
    %169 = arith.mulf %7, %cst_42 : f32
    %cst_43 = arith.constant 3.200000e+01 : f32
    %170 = arith.mulf %5, %cst_43 : f32
    %171 = arith.index_cast %arg0 : i32 to index
    %c17 = arith.constant 17 : index
    %172 = memref.load %arg1[%171, %c17] : memref<2x28xf32, #tpu.memory_space<smem>>
    %173 = tpu.iota {dimensions = array<i32: 0>} : vector<128x128xi32>
    %174 = tpu.iota {dimensions = array<i32: 1>} : vector<128x128xi32>
    %175 = tpu.iota {dimensions = array<i32: 0>} : vector<128x128xi32>
    %176 = tpu.iota {dimensions = array<i32: 1>} : vector<128x128xi32>
    %177 = arith.subi %174, %173 : vector<128x128xi32>
    %178 = arith.sitofp %177 : vector<128x128xi32> to vector<128x128xf32>
    %179 = vector.broadcast %169 : f32 to vector<128x128xf32>
    %180 = arith.subf %178, %179 : vector<128x128xf32>
    %181 = math.absf %180 : vector<128x128xf32>
    %cst_44 = arith.constant 1.000000e+00 : f32
    %182 = vector.broadcast %cst_44 : f32 to vector<128x128xf32>
    %183 = arith.subf %182, %181 : vector<128x128xf32>
    %cst_45 = arith.constant 0.000000e+00 : f32
    %184 = vector.broadcast %cst_45 : f32 to vector<128x128xf32>
    %185 = arith.maximumf %184, %183 : vector<128x128xf32>
    %186 = arith.subi %175, %176 : vector<128x128xi32>
    %187 = arith.sitofp %186 : vector<128x128xi32> to vector<128x128xf32>
    %188 = vector.broadcast %170 : f32 to vector<128x128xf32>
    %189 = arith.subf %187, %188 : vector<128x128xf32>
    %190 = math.absf %189 : vector<128x128xf32>
    %cst_46 = arith.constant 1.000000e+00 : f32
    %191 = vector.broadcast %cst_46 : f32 to vector<128x128xf32>
    %192 = arith.subf %191, %190 : vector<128x128xf32>
    %cst_47 = arith.constant 0.000000e+00 : f32
    %193 = vector.broadcast %cst_47 : f32 to vector<128x128xf32>
    %194 = arith.maximumf %193, %192 : vector<128x128xf32>
    %195 = vector.broadcast %172 : f32 to vector<128x128xf32>
    %196 = arith.subf %168, %195 : vector<128x128xf32>
    %cst_48 = arith.constant dense<0.000000e+00> : vector<128x128xf32>
    %197 = tpu.matmul %185, %196, %cst_48 {dimension_numbers = #tpu.dot_dimension_numbers<[1], [0], [0], [1], [0, 0, 1, 1], [], []>} : vector<128x128xf32>, vector<128x128xf32>, vector<128x128xf32> -> vector<128x128xf32>
    %cst_49 = arith.constant dense<0.000000e+00> : vector<128x128xf32>
    %198 = tpu.matmul %197, %194, %cst_49 {dimension_numbers = #tpu.dot_dimension_numbers<[1], [0], [0], [1], [0, 0, 1, 1], [], []>} : vector<128x128xf32>, vector<128x128xf32>, vector<128x128xf32> -> vector<128x128xf32>
    %199 = arith.maximumf %168, %198 : vector<128x128xf32>
    %cst_50 = arith.constant 6.400000e+01 : f32
    %200 = arith.mulf %7, %cst_50 : f32
    %cst_51 = arith.constant 6.400000e+01 : f32
    %201 = arith.mulf %5, %cst_51 : f32
    %202 = arith.index_cast %arg0 : i32 to index
    %c20 = arith.constant 20 : index
    %203 = memref.load %arg1[%202, %c20] : memref<2x28xf32, #tpu.memory_space<smem>>
    %204 = tpu.iota {dimensions = array<i32: 0>} : vector<128x128xi32>
    %205 = tpu.iota {dimensions = array<i32: 1>} : vector<128x128xi32>
    %206 = tpu.iota {dimensions = array<i32: 0>} : vector<128x128xi32>
    %207 = tpu.iota {dimensions = array<i32: 1>} : vector<128x128xi32>
    %208 = arith.subi %205, %204 : vector<128x128xi32>
    %209 = arith.sitofp %208 : vector<128x128xi32> to vector<128x128xf32>
    %210 = vector.broadcast %200 : f32 to vector<128x128xf32>
    %211 = arith.subf %209, %210 : vector<128x128xf32>
    %212 = math.absf %211 : vector<128x128xf32>
    %cst_52 = arith.constant 1.000000e+00 : f32
    %213 = vector.broadcast %cst_52 : f32 to vector<128x128xf32>
    %214 = arith.subf %213, %212 : vector<128x128xf32>
    %cst_53 = arith.constant 0.000000e+00 : f32
    %215 = vector.broadcast %cst_53 : f32 to vector<128x128xf32>
    %216 = arith.maximumf %215, %214 : vector<128x128xf32>
    %217 = arith.subi %206, %207 : vector<128x128xi32>
    %218 = arith.sitofp %217 : vector<128x128xi32> to vector<128x128xf32>
    %219 = vector.broadcast %201 : f32 to vector<128x128xf32>
    %220 = arith.subf %218, %219 : vector<128x128xf32>
    %221 = math.absf %220 : vector<128x128xf32>
    %cst_54 = arith.constant 1.000000e+00 : f32
    %222 = vector.broadcast %cst_54 : f32 to vector<128x128xf32>
    %223 = arith.subf %222, %221 : vector<128x128xf32>
    %cst_55 = arith.constant 0.000000e+00 : f32
    %224 = vector.broadcast %cst_55 : f32 to vector<128x128xf32>
    %225 = arith.maximumf %224, %223 : vector<128x128xf32>
    %226 = vector.broadcast %203 : f32 to vector<128x128xf32>
    %227 = arith.subf %199, %226 : vector<128x128xf32>
    %cst_56 = arith.constant dense<0.000000e+00> : vector<128x128xf32>
    %228 = tpu.matmul %216, %227, %cst_56 {dimension_numbers = #tpu.dot_dimension_numbers<[1], [0], [0], [1], [0, 0, 1, 1], [], []>} : vector<128x128xf32>, vector<128x128xf32>, vector<128x128xf32> -> vector<128x128xf32>
    %cst_57 = arith.constant dense<0.000000e+00> : vector<128x128xf32>
    %229 = tpu.matmul %228, %225, %cst_57 {dimension_numbers = #tpu.dot_dimension_numbers<[1], [0], [0], [1], [0, 0, 1, 1], [], []>} : vector<128x128xf32>, vector<128x128xf32>, vector<128x128xf32> -> vector<128x128xf32>
    %230 = arith.maximumf %199, %229 : vector<128x128xf32>
    %cst_58 = arith.constant 1.280000e+02 : f32
    %231 = arith.mulf %7, %cst_58 : f32
    %cst_59 = arith.constant 1.280000e+02 : f32
    %232 = arith.mulf %5, %cst_59 : f32
    %233 = arith.index_cast %arg0 : i32 to index
    %c23 = arith.constant 23 : index
    %234 = memref.load %arg1[%233, %c23] : memref<2x28xf32, #tpu.memory_space<smem>>
    %235 = tpu.iota {dimensions = array<i32: 0>} : vector<128x128xi32>
    %236 = tpu.iota {dimensions = array<i32: 1>} : vector<128x128xi32>
    %237 = tpu.iota {dimensions = array<i32: 0>} : vector<128x128xi32>
    %238 = tpu.iota {dimensions = array<i32: 1>} : vector<128x128xi32>
    %239 = arith.subi %236, %235 : vector<128x128xi32>
    %240 = arith.sitofp %239 : vector<128x128xi32> to vector<128x128xf32>
    %241 = vector.broadcast %231 : f32 to vector<128x128xf32>
    %242 = arith.subf %240, %241 : vector<128x128xf32>
    %243 = math.absf %242 : vector<128x128xf32>
    %cst_60 = arith.constant 1.000000e+00 : f32
    %244 = vector.broadcast %cst_60 : f32 to vector<128x128xf32>
    %245 = arith.subf %244, %243 : vector<128x128xf32>
    %cst_61 = arith.constant 0.000000e+00 : f32
    %246 = vector.broadcast %cst_61 : f32 to vector<128x128xf32>
    %247 = arith.maximumf %246, %245 : vector<128x128xf32>
    %248 = arith.subi %237, %238 : vector<128x128xi32>
    %249 = arith.sitofp %248 : vector<128x128xi32> to vector<128x128xf32>
    %250 = vector.broadcast %232 : f32 to vector<128x128xf32>
    %251 = arith.subf %249, %250 : vector<128x128xf32>
    %252 = math.absf %251 : vector<128x128xf32>
    %cst_62 = arith.constant 1.000000e+00 : f32
    %253 = vector.broadcast %cst_62 : f32 to vector<128x128xf32>
    %254 = arith.subf %253, %252 : vector<128x128xf32>
    %cst_63 = arith.constant 0.000000e+00 : f32
    %255 = vector.broadcast %cst_63 : f32 to vector<128x128xf32>
    %256 = arith.maximumf %255, %254 : vector<128x128xf32>
    %257 = vector.broadcast %234 : f32 to vector<128x128xf32>
    %258 = arith.subf %230, %257 : vector<128x128xf32>
    %cst_64 = arith.constant dense<0.000000e+00> : vector<128x128xf32>
    %259 = tpu.matmul %247, %258, %cst_64 {dimension_numbers = #tpu.dot_dimension_numbers<[1], [0], [0], [1], [0, 0, 1, 1], [], []>} : vector<128x128xf32>, vector<128x128xf32>, vector<128x128xf32> -> vector<128x128xf32>
    %cst_65 = arith.constant dense<0.000000e+00> : vector<128x128xf32>
    %260 = tpu.matmul %259, %256, %cst_65 {dimension_numbers = #tpu.dot_dimension_numbers<[1], [0], [0], [1], [0, 0, 1, 1], [], []>} : vector<128x128xf32>, vector<128x128xf32>, vector<128x128xf32> -> vector<128x128xf32>
    %261 = arith.maximumf %230, %260 : vector<128x128xf32>
    %c0_66 = arith.constant 0 : index
    %c0_67 = arith.constant 0 : index
    %c0_68 = arith.constant 0 : index
    %262 = vector.load %arg2[%c0_66, %c0_67, %c0_68] : memref<1x128x128xf32, #tpu.memory_space<vmem>>, vector<1x128x128xf32>
    %263 = vector.shape_cast %262 : vector<1x128x128xf32> to vector<128x128xf32>
    %264 = vector.broadcast %1 : f32 to vector<128x128xf32>
    %265 = arith.subf %263, %264 : vector<128x128xf32>
    %cst_69 = arith.constant 1.280000e+02 : f32
    %266 = vector.broadcast %cst_69 : f32 to vector<128x128xf32>
    %267 = arith.mulf %265, %266 : vector<128x128xf32>
    %268 = arith.subf %267, %261 : vector<128x128xf32>
    %269 = vector.broadcast %3 : f32 to vector<128x128xf32>
    %270 = arith.mulf %268, %269 : vector<128x128xf32>
    %271 = math.exp %270 : vector<128x128xf32>
    %c0_70 = arith.constant 0 : index
    %c0_71 = arith.constant 0 : index
    %c0_72 = arith.constant 0 : index
    %272 = vector.load %arg3[%c0_70, %c0_71, %c0_72] : memref<1x128x128xf32, #tpu.memory_space<vmem>>, vector<1x128x128xf32>
    %273 = vector.shape_cast %272 : vector<1x128x128xf32> to vector<128x128xf32>
    %274 = vector.shape_cast %271 : vector<128x128xf32> to vector<1x128x128xf32>
    tpu.vector_store %arg3[%c0_70, %c0_71, %c0_72], %274 {strides = array<i32>} : memref<1x128x128xf32, #tpu.memory_space<vmem>>, vector<1x128x128xf32>,
    return
  }
  func.func @transform_0(%arg0: i32) -> (i32, i32) {
    %c0_i32 = arith.constant 0 : i32
    %c0_i32_0 = arith.constant 0 : i32
    %c0_i32_1 = arith.constant 0 : i32
    return %c0_i32, %c0_i32_0 : i32, i32
  }
  func.func @transform_1(%arg0: i32) -> (i32, i32, i32) {
    %c0_i32 = arith.constant 0 : i32
    %c0_i32_0 = arith.constant 0 : i32
    %c0_i32_1 = arith.constant 0 : i32
    return %arg0, %c0_i32, %c0_i32_0 : i32, i32, i32
  }
  func.func @transform_2(%arg0: i32) -> (i32, i32, i32) {
    %c0_i32 = arith.constant 0 : i32
    %c0_i32_0 = arith.constant 0 : i32
    %c0_i32_1 = arith.constant 0 : i32
    return %arg0, %c0_i32, %c0_i32_0 : i32, i32, i32
  }
}

</mosaic_0001>

<llo_original>
// kernel: tpu_custom_call.1
$region0: #{tpu_custom_call.1}
  #allocation0 [shape = 'u32[]', space=smem, size = 0x4, offset = 0x4, fixed_abs, tag = 'smem constant byte address 0x4 - core index']
  #allocation1 [shape = 'u32[72,128]{1,0:T(1,128)}', space=vmem, size = 0x9000, scoped, tag = 'internal scratch']
  %s0 = inlined_call_operand.hbm [shape: s32[2], index: 0, kind: input, shape index: {}]
  %s1 = inlined_call_operand.hbm [shape: f32[128,128], index: 1, kind: input, shape index: {}]
  %s2 = inlined_call_operand.hbm [shape: f32[128,128], index: 2, kind: output, shape index: {0}]
  %s3 = inlined_call_operand.hbm [shape: f32[128,128], index: 3, kind: output, shape index: {1}]
  %4 = xla_tuple %s2, %s3
  %s5 = sld [smem:[#allocation0]]
  $region34: #{tpu_custom_call.1} parent=0
    _
  %s7 = ssub.s32 1, %s5
  %s8 = scalar_select 0, %s7, %s5
  $region1: #{tpu_custom_call.1} parent=0
    #allocation2 [shape = 'u8[512]{0}', space=smem, size = 0x200, scoped, tag = 'input window, operand 0, single buffered']
    #allocation3 [shape = 's32[1]{0}', space=sflag, size = 0x4, scoped, tag = 'scoped memory for tpu_custom_call.1']
    #allocation4 [shape = 's32[1]{0}', space=sflag, size = 0x4, scoped, tag = 'scoped memory for tpu_custom_call.1']
    #allocation5 [shape = 's32[1]{0}', space=sflag, size = 0x4, scoped, tag = 'scoped memory for tpu_custom_call.1']
    #allocation6 [shape = 'u8[65536]{0}', space=vmem, size = 0x10000, scoped, tag = 'input window, operand 1, single buffered']
    #allocation7 [shape = 'u8[65536]{0}', space=vmem, size = 0x10000, scoped, tag = 'output window, operand 0, single buffered']
    #allocation8 [shape = 'u8[65536]{0}', space=vmem, size = 0x10000, scoped, tag = 'output window, operand 1, single buffered']
    #allocation9 [shape = 's32[1]{0}', space=sflag, size = 0x4, scoped, tag = 'scoped memory for tpu_custom_call.1']
    %9 = vsyncpa [#allocation5], 0
    %10 = vsyncpa [#allocation3], 0
    %11 = vsyncpa [#allocation4], 0
    %12 = vsyncpa [#allocation9], 0
    // Predicated region
    $region2: #{tpu_custom_call.1} parent=1 // pred_check
      _
    $region3: #{tpu_custom_call.1} parent=1 // pred_check_branch
      %14 = sbr.rel (0) target = $region5
    $region4: #{tpu_custom_call.1} parent=1 // pred_region
      %16 = vsyncadd [#allocation5], 0
      %s18 = sshll.u32 %s0, 4
      %s19 = int_to_ptr.hbm [resolvable:$true] %s18
      %21 = dma.hbm_to_smem %s19, 16, [#allocation2], [#allocation5]
    $region5: #{tpu_custom_call.1} parent=1 // pred_fallthru
      _
    // Predicated region
    $region6: #{tpu_custom_call.1} parent=1 // pred_check
      _
    $region7: #{tpu_custom_call.1} parent=1 // pred_check_branch
      %23 = sbr.rel (0) target = $region9
    $region8: #{tpu_custom_call.1} parent=1 // pred_region
      %25 = vsyncadd [#allocation3], 0
      %s26 = sshll.u32 %s1, 4
      %s27 = int_to_ptr.hbm [resolvable:$true] %s26
      %s28 = sshll.u32 [#allocation6], 4
      %s29 = int_to_ptr.vmem [resolvable:$true] %s28
      %34 = dma.hbm_to_vmem [thread:$0]  %s27, 2048, %s29, [#allocation3], 128, 128, 8
    $region9: #{tpu_custom_call.1} parent=1 // pred_fallthru
      _
    // Predicated region
    $region10: #{tpu_custom_call.1} parent=1 // pred_check
      _
    $region11: #{tpu_custom_call.1} parent=1 // pred_check_branch
      %36 = sbr.rel (0) target = $region13
    $region12: #{tpu_custom_call.1} parent=1 // pred_region
      %38 = dma.done [#allocation5], 16
    $region13: #{tpu_custom_call.1} parent=1 // pred_fallthru
      _
    // Predicated region
    $region14: #{tpu_custom_call.1} parent=1 // pred_check
      _
    $region15: #{tpu_custom_call.1} parent=1 // pred_check_branch
      %40 = sbr.rel (0) target = $region17
    $region16: #{tpu_custom_call.1} parent=1 // pred_region
      %42 = dma.done [#allocation3], 2048
    $region17: #{tpu_custom_call.1} parent=1 // pred_fallthru
      _
    %43 = sfence
    %v44 = vld [vmem:[#allocation6] sm:$0xff]
    %v45 = vld [vmem:[#allocation6 + $0x8] sm:$0xff]
    %v46 = vld [vmem:[#allocation6 + $0x10] sm:$0xff]
    %v47 = vld [vmem:[#allocation6 + $0x18] sm:$0xff]
    %v48 = vld [vmem:[#allocation6 + $0x20] sm:$0xff]
    %v49 = vld [vmem:[#allocation6 + $0x28] sm:$0xff]
    %v50 = vld [vmem:[#allocation6 + $0x30] sm:$0xff]
    %v51 = vld [vmem:[#allocation6 + $0x38] sm:$0xff]
    %v52 = vld [vmem:[#allocation6 + $0x40] sm:$0xff]
    %v53 = vld [vmem:[#allocation6 + $0x48] sm:$0xff]
    %v54 = vld [vmem:[#allocation6 + $0x50] sm:$0xff]
    %v55 = vld [vmem:[#allocation6 + $0x58] sm:$0xff]
    %v56 = vld [vmem:[#allocation6 + $0x60] sm:$0xff]
    %v57 = vld [vmem:[#allocation6 + $0x68] sm:$0xff]
    %v58 = vld [vmem:[#allocation6 + $0x70] sm:$0xff]
    %v59 = vld [vmem:[#allocation6 + $0x78] sm:$0xff]
    %s60 = sld [smem:[#allocation2]]
    %s61 = sand.u32 %s60, 127
    %s62 = sand.u32 %s61, 7
    %s63 = sshrl.u32 %s61, 3
    %s64 = ssub.s32 8, %s62
    %v65 = vstv %s64
    %v66 = vrot.slane %v44, %v65
    %v67 = vstv %s64
    %v68 = vrot.slane %v45, %v67
    %v69 = vstv %s64
    %v70 = vrot.slane %v46, %v69
    %v71 = vstv %s64
    %v72 = vrot.slane %v47, %v71
    %v73 = vstv %s64
    %v74 = vrot.slane %v48, %v73
    %v75 = vstv %s64
    %v76 = vrot.slane %v49, %v75
    %v77 = vstv %s64
    %v78 = vrot.slane %v50, %v77
    %v79 = vstv %s64
    %v80 = vrot.slane %v51, %v79
    %v81 = vstv %s64
    %v82 = vrot.slane %v52, %v81
    %v83 = vstv %s64
    %v84 = vrot.slane %v53, %v83
    %v85 = vstv %s64
    %v86 = vrot.slane %v54, %v85
    %v87 = vstv %s64
    %v88 = vrot.slane %v55, %v87
    %v89 = vstv %s64
    %v90 = vrot.slane %v56, %v89
    %v91 = vstv %s64
    %v92 = vrot.slane %v57, %v91
    %v93 = vstv %s64
    %v94 = vrot.slane %v58, %v93
    %v95 = vstv %s64
    %v96 = vrot.slane %v59, %v95
    %v97 = vstv %s62
    %v98 = vlaneseq
    %v99 = vshrl.u32 %v98, 7
    %vm100 = vcmp.lt.s32.totalorder %v99, %v97
    %v101 = vsel %vm100, %v94, %v96
    %v102 = vsel %vm100, %v92, %v94
    %v103 = vsel %vm100, %v90, %v92
    %v104 = vsel %vm100, %v88, %v90
    %v105 = vsel %vm100, %v86, %v88
    %v106 = vsel %vm100, %v84, %v86
    %v107 = vsel %vm100, %v82, %v84
    %v108 = vsel %vm100, %v80, %v82
    %v109 = vsel %vm100, %v78, %v80
    %v110 = vsel %vm100, %v76, %v78
    %v111 = vsel %vm100, %v74, %v76
    %v112 = vsel %vm100, %v72, %v74
    %v113 = vsel %vm100, %v70, %v72
    %v114 = vsel %vm100, %v68, %v70
    %v115 = vsel %vm100, %v66, %v68
    %v116 = vsel %vm100, %v96, %v66
    %s117 = sand.u32 %s63, 1
    %v118 = vstv %s117
    %vm119 = vcmp.ne.s32.totalorder %v118, 0
    %v120 = vsel %vm119, %v101, %v116
    %v121 = vsel %vm119, %v116, %v115
    %v122 = vsel %vm119, %v115, %v114
    %v123 = vsel %vm119, %v114, %v113
    %v124 = vsel %vm119, %v113, %v112
    %v125 = vsel %vm119, %v112, %v111
    %v126 = vsel %vm119, %v111, %v110
    %v127 = vsel %vm119, %v110, %v109
    %v128 = vsel %vm119, %v109, %v108
    %v129 = vsel %vm119, %v108, %v107
    %v130 = vsel %vm119, %v107, %v106
    %v131 = vsel %vm119, %v106, %v105
    %v132 = vsel %vm119, %v105, %v104
    %v133 = vsel %vm119, %v104, %v103
    %v134 = vsel %vm119, %v103, %v102
    %v135 = vsel %vm119, %v102, %v101
    %s136 = sand.u32 %s63, 2
    %v137 = vstv %s136
    %vm138 = vcmp.ne.s32.totalorder %v137, 0
    %v139 = vsel %vm138, %v134, %v120
    %v140 = vsel %vm138, %v135, %v121
    %v141 = vsel %vm138, %v120, %v122
    %v142 = vsel %vm138, %v121, %v123
    %v143 = vsel %vm138, %v122, %v124
    %v144 = vsel %vm138, %v123, %v125
    %v145 = vsel %vm138, %v124, %v126
    %v146 = vsel %vm138, %v125, %v127
    %v147 = vsel %vm138, %v126, %v128
    %v148 = vsel %vm138, %v127, %v129
    %v149 = vsel %vm138, %v128, %v130
    %v150 = vsel %vm138, %v129, %v131
    %v151 = vsel %vm138, %v130, %v132
    %v152 = vsel %vm138, %v131, %v133
    %v153 = vsel %vm138, %v132, %v134
    %v154 = vsel %vm138, %v133, %v135
    %s155 = sand.u32 %s63, 4
    %v156 = vstv %s155
    %vm157 = vcmp.ne.s32.totalorder %v156, 0
    %v158 = vsel %vm157, %v151, %v139
    %v159 = vsel %vm157, %v152, %v140
    %v160 = vsel %vm157, %v153, %v141
    %v161 = vsel %vm157, %v154, %v142
    %v162 = vsel %vm157, %v139, %v143
    %v163 = vsel %vm157, %v140, %v144
    %v164 = vsel %vm157, %v141, %v145
    %v165 = vsel %vm157, %v142, %v146
    %v166 = vsel %vm157, %v143, %v147
    %v167 = vsel %vm157, %v144, %v148
    %v168 = vsel %vm157, %v145, %v149
    %v169 = vsel %vm157, %v146, %v150
    %v170 = vsel %vm157, %v147, %v151
    %v171 = vsel %vm157, %v148, %v152
    %v172 = vsel %vm157, %v149, %v153
    %v173 = vsel %vm157, %v150, %v154
    %s174 = sand.u32 %s63, 8
    %v175 = vstv %s174
    %vm176 = vcmp.ne.s32.totalorder %v175, 0
    %v177 = vsel %vm176, %v166, %v158
    %v178 = vsel %vm176, %v167, %v159
    %v179 = vsel %vm176, %v168, %v160
    %v180 = vsel %vm176, %v169, %v161
    %v181 = vsel %vm176, %v170, %v162
    %v182 = vsel %vm176, %v171, %v163
    %v183 = vsel %vm176, %v172, %v164
    %v184 = vsel %vm176, %v173, %v165
    %v185 = vsel %vm176, %v158, %v166
    %v186 = vsel %vm176, %v159, %v167
    %v187 = vsel %vm176, %v160, %v168
    %v188 = vsel %vm176, %v161, %v169
    %v189 = vsel %vm176, %v162, %v170
    %v190 = vsel %vm176, %v163, %v171
    %v191 = vsel %vm176, %v164, %v172
    %v192 = vsel %vm176, %v165, %v173
    %193 = vst [vmem:[#allocation7] sm:$0xff] %v177
    %194 = vst [vmem:[#allocation7 + $0x8] sm:$0xff] %v178
    %195 = vst [vmem:[#allocation7 + $0x10] sm:$0xff] %v179
    %196 = vst [vmem:[#allocation7 + $0x18] sm:$0xff] %v180
    %197 = vst [vmem:[#allocation7 + $0x20] sm:$0xff] %v181
    %198 = vst [vmem:[#allocation7 + $0x28] sm:$0xff] %v182
    %199 = vst [vmem:[#allocation7 + $0x30] sm:$0xff] %v183
    %200 = vst [vmem:[#allocation7 + $0x38] sm:$0xff] %v184
    %201 = vst [vmem:[#allocation7 + $0x40] sm:$0xff] %v185
    %202 = vst [vmem:[#allocation7 + $0x48] sm:$0xff] %v186
    %203 = vst [vmem:[#allocation7 + $0x50] sm:$0xff] %v187
    %204 = vst [vmem:[#allocation7 + $0x58] sm:$0xff] %v188
    %205 = vst [vmem:[#allocation7 + $0x60] sm:$0xff] %v189
    %206 = vst [vmem:[#allocation7 + $0x68] sm:$0xff] %v190
    %207 = vst [vmem:[#allocation7 + $0x70] sm:$0xff] %v191
    %208 = vst [vmem:[#allocation7 + $0x78] sm:$0xff] %v192
    %v209 = vld [vmem:[#allocation6] sm:$0xff]
    %v210 = vld [vmem:[#allocation6 + $0x8] sm:$0xff]
    %v211 = vld [vmem:[#allocation6 + $0x10] sm:$0xff]
    %v212 = vld [vmem:[#allocation6 + $0x18] sm:$0xff]
    %v213 = vld [vmem:[#allocation6 + $0x20] sm:$0xff]
    %v214 = vld [vmem:[#allocation6 + $0x28] sm:$0xff]
    %v215 = vld [vmem:[#allocation6 + $0x30] sm:$0xff]
    %v216 = vld [vmem:[#allocation6 + $0x38] sm:$0xff]
    %v217 = vld [vmem:[#allocation6 + $0x40] sm:$0xff]
    %v218 = vld [vmem:[#allocation6 + $0x48] sm:$0xff]
    %v219 = vld [vmem:[#allocation6 + $0x50] sm:$0xff]
    %v220 = vld [vmem:[#allocation6 + $0x58] sm:$0xff]
    %v221 = vld [vmem:[#allocation6 + $0x60] sm:$0xff]
    %v222 = vld [vmem:[#allocation6 + $0x68] sm:$0xff]
    %v223 = vld [vmem:[#allocation6 + $0x70] sm:$0xff]
    %v224 = vld [vmem:[#allocation6 + $0x78] sm:$0xff]
    %s225 = sld [smem:[#allocation2 + $0x1]]
    %s226 = sand.u32 %s225, 127
    %s227 = sand.u32 %s226, 127
    %228 = vrot.lane.b32.xlu0 %v209, %s227
    %v229 = vpop.permute.xlu0 %228
    %230 = vrot.lane.b32.xlu0 %v210, %s227
    %v231 = vpop.permute.xlu0 %230
    %232 = vrot.lane.b32.xlu0 %v211, %s227
    %v233 = vpop.permute.xlu0 %232
    %234 = vrot.lane.b32.xlu0 %v212, %s227
    %v235 = vpop.permute.xlu0 %234
    %236 = vrot.lane.b32.xlu0 %v213, %s227
    %v237 = vpop.permute.xlu0 %236
    %238 = vrot.lane.b32.xlu0 %v214, %s227
    %v239 = vpop.permute.xlu0 %238
    %240 = vrot.lane.b32.xlu0 %v215, %s227
    %v241 = vpop.permute.xlu0 %240
    %242 = vrot.lane.b32.xlu0 %v216, %s227
    %v243 = vpop.permute.xlu0 %242
    %244 = vrot.lane.b32.xlu0 %v217, %s227
    %v245 = vpop.permute.xlu0 %244
    %246 = vrot.lane.b32.xlu0 %v218, %s227
    %v247 = vpop.permute.xlu0 %246
    %248 = vrot.lane.b32.xlu0 %v219, %s227
    %v249 = vpop.permute.xlu0 %248
    %250 = vrot.lane.b32.xlu0 %v220, %s227
    %v251 = vpop.permute.xlu0 %250
    %252 = vrot.lane.b32.xlu0 %v221, %s227
    %v253 = vpop.permute.xlu0 %252
    %254 = vrot.lane.b32.xlu0 %v222, %s227
    %v255 = vpop.permute.xlu0 %254
    %256 = vrot.lane.b32.xlu0 %v223, %s227
    %v257 = vpop.permute.xlu0 %256
    %258 = vrot.lane.b32.xlu0 %v224, %s227
    %v259 = vpop.permute.xlu0 %258
    %260 = vst [vmem:[#allocation8] sm:$0xff] %v229
    %261 = vst [vmem:[#allocation8 + $0x8] sm:$0xff] %v231
    %262 = vst [vmem:[#allocation8 + $0x10] sm:$0xff] %v233
    %263 = vst [vmem:[#allocation8 + $0x18] sm:$0xff] %v235
    %264 = vst [vmem:[#allocation8 + $0x20] sm:$0xff] %v237
    %265 = vst [vmem:[#allocation8 + $0x28] sm:$0xff] %v239
    %266 = vst [vmem:[#allocation8 + $0x30] sm:$0xff] %v241
    %267 = vst [vmem:[#allocation8 + $0x38] sm:$0xff] %v243
    %268 = vst [vmem:[#allocation8 + $0x40] sm:$0xff] %v245
    %269 = vst [vmem:[#allocation8 + $0x48] sm:$0xff] %v247
    %270 = vst [vmem:[#allocation8 + $0x50] sm:$0xff] %v249
    %271 = vst [vmem:[#allocation8 + $0x58] sm:$0xff] %v251
    %272 = vst [vmem:[#allocation8 + $0x60] sm:$0xff] %v253
    %273 = vst [vmem:[#allocation8 + $0x68] sm:$0xff] %v255
    %274 = vst [vmem:[#allocation8 + $0x70] sm:$0xff] %v257
    %275 = vst [vmem:[#allocation8 + $0x78] sm:$0xff] %v259
    // Predicated region
    $region18: #{tpu_custom_call.1} parent=1 // pred_check
      _
    $region19: #{tpu_custom_call.1} parent=1 // pred_check_branch
      %277 = sbr.rel (0) target = $region21
    $region20: #{tpu_custom_call.1} parent=1 // pred_region
      %279 = vsyncadd [#allocation4], 0
      %s280 = sshll.u32 [#allocation7], 4
      %s281 = int_to_ptr.vmem [resolvable:$true] %s280
      %s282 = sshll.u32 %s2, 4
      %s283 = int_to_ptr.hbm [resolvable:$true] %s282
      %288 = dma.vmem_to_hbm [thread:$0]  %s281, 2048, %s283, [#allocation4], 128, 128, 8
    $region21: #{tpu_custom_call.1} parent=1 // pred_fallthru
      _
    // Predicated region
    $region22: #{tpu_custom_call.1} parent=1 // pred_check
      _
    $region23: #{tpu_custom_call.1} parent=1 // pred_check_branch
      %290 = sbr.rel (0) target = $region25
    $region24: #{tpu_custom_call.1} parent=1 // pred_region
      %292 = vsyncadd [#allocation9], 0
      %s293 = sshll.u32 [#allocation8], 4
      %s294 = int_to_ptr.vmem [resolvable:$true] %s293
      %s295 = sshll.u32 %s3, 4
      %s296 = int_to_ptr.hbm [resolvable:$true] %s295
      %301 = dma.vmem_to_hbm [thread:$0]  %s294, 2048, %s296, [#allocation9], 128, 128, 8
    $region25: #{tpu_custom_call.1} parent=1 // pred_fallthru
      _
    // Predicated region
    $region26: #{tpu_custom_call.1} parent=1 // pred_check
      _
    $region27: #{tpu_custom_call.1} parent=1 // pred_check_branch
      %303 = sbr.rel (0) target = $region29
    $region28: #{tpu_custom_call.1} parent=1 // pred_region
      %305 = dma.done [#allocation4], 2048
    $region29: #{tpu_custom_call.1} parent=1 // pred_fallthru
      _
    // Predicated region
    $region30: #{tpu_custom_call.1} parent=1 // pred_check
      _
    $region31: #{tpu_custom_call.1} parent=1 // pred_check_branch
      %307 = sbr.rel (0) target = $region33
    $region32: #{tpu_custom_call.1} parent=1 // pred_region
      %309 = dma.done [#allocation9], 2048
    $region33: #{tpu_custom_call.1} parent=1 // pred_fallthru
      _
    %310 = vsyncpa [#allocation3], 1
    %311 = vsyncpa [#allocation4], 1
    %312 = vsyncpa [#allocation9], 1
    %313 = vsyncpa [#allocation5], 1

// kernel: tpu_custom_call.1
$region0: #{tpu_custom_call.1}
  #allocation0 [shape = 'u32[]', space=smem, size = 0x4, offset = 0x4, fixed_abs, tag = 'smem constant byte address 0x4 - core index']
  #allocation1 [shape = 'u32[72,128]{1,0:T(1,128)}', space=vmem, size = 0x9000, scoped, tag = 'internal scratch']
  %s0 = inlined_call_operand.hbm [shape: f32[2,28], index: 0, kind: input, shape index: {}]
  %s1 = inlined_call_operand.hbm [shape: f32[2,128,128], index: 1, kind: input, shape index: {}]
  %s2 = inlined_call_operand.hbm [shape: f32[2,128,128], index: 2, kind: output, shape index: {}]
  %s3 = sld [smem:[#allocation0]]
  $region49: #{tpu_custom_call.1} parent=0
    _
  %s5 = ssub.s32 1, %s3
  %s6 = scalar_select 0, %s5, %s3
  $region1: #{tpu_custom_call.1} parent=0
    #allocation2 [shape = 'u8[1024]{0}', space=smem, size = 0x400, scoped, tag = 'input window, operand 0, single buffered']
    #allocation3 [shape = 's32[2]{0}', space=sflag, size = 0x8, scoped, tag = 'scoped memory for tpu_custom_call.1']
    #allocation4 [shape = 's32[2]{0}', space=sflag, size = 0x8, scoped, tag = 'scoped memory for tpu_custom_call.1']
    #allocation5 [shape = 's32[2]{0}', space=sflag, size = 0x8, scoped, tag = 'scoped memory for tpu_custom_call.1']
    #allocation6 [shape = 'u8[131072]{0}', space=vmem, size = 0x20000, scoped, tag = 'input window, operand 1']
    #allocation7 [shape = 'u8[131072]{0}', space=vmem, size = 0x20000, scoped, tag = 'output window, operand 0']
    %7 = vsyncpa [#allocation5], 0
    %8 = vsyncpa [#allocation3], 0
    %s9 = scalar_lea.sflag [#allocation3], 1
    %10 = vsyncpa %s9, 0
    %11 = vsyncpa [#allocation4], 0
    %s12 = scalar_lea.sflag [#allocation4], 1
    %13 = vsyncpa %s12, 0
    loop: start=0, step=1, limit=4
    $region2: #{tpu_custom_call.1} parent=1 // loop_pre_header
      _
    $region3: #{tpu_custom_call.1} parent=1 // loop_header
      %s15 = sphi 0, %s19
      %p16 = scmp.ge.s32.totalorder %s15, 4
      %s23 = sphi 0, %s23
      %s25 = sphi 0, %s23
      %s26 = sphi 0, %s25
      %s40 = sphi 0, %s26
      %s46 = sphi 0, %s48
      %s49 = sphi 0, %s46
      %s50 = sphi 0, %s49
      %s66 = sphi 0, %s50
      %s72 = sphi 0, %s74
      %s75 = sphi 0, %s72
      %s76 = sphi 0, %s75
      %s92 = sphi 0, %s76
    $region4: #{tpu_custom_call.1} parent=1 // loop_header_branch
      %18 = sbr.rel (%p16) target = $region8
    $region5: #{tpu_custom_call.1} parent=1 // loop_body
      %s20 = ssub.s32 %s15, 1
      %s21 = ssub.s32 %s15, 2
      %s22 = sadd.s32 %s15, 1
      %s24 = sadd.s32 %s23, 1
      %p27 = scmp.eq.s32.totalorder %s15, 1
      %p28 = scmp.ne.s32.totalorder %s23, %s25
      %p29 = scmp.eq.s32.totalorder %s15, 0
      %p30 = por %p28, %p29
      %p31 = scmp.ne.s32.totalorder %s23, %s25
      %p32 = scmp.eq.s32.totalorder %s20, 1
      %p33 = por %p31, %p32
      %p34 = scmp.ne.s32.totalorder %s25, %s26
      %p35 = scmp.eq.s32.totalorder %s20, 0
      %p36 = por %p34, %p35
      %p37 = scmp.ne.s32.totalorder %s25, %s26
      %p38 = scmp.eq.s32.totalorder %s21, 1
      %p39 = por %p37, %p38
      %p41 = scmp.ne.s32.totalorder %s26, %s40
      %p42 = scmp.eq.s32.totalorder %s21, 0
      %p43 = por %p41, %p42
      %s44 = ssub.s32 %s15, %s22
      %p45 = scmp.eq.s32.totalorder %s44, 0
      %s47 = sadd.s32 %s46, 1
      %s48 = scalar_select %p45, %s46, %s47
      %p51 = pneg %p45
      %p52 = scmp.eq.s32.totalorder %s15, 1
      %p53 = por %p51, %p52
      %p54 = scmp.ne.s32.totalorder %s46, %s49
      %p55 = scmp.eq.s32.totalorder %s15, 0
      %p56 = por %p54, %p55
      %p57 = scmp.ne.s32.totalorder %s46, %s49
      %p58 = scmp.eq.s32.totalorder %s20, 1
      %p59 = por %p57, %p58
      %p60 = scmp.ne.s32.totalorder %s49, %s50
      %p61 = scmp.eq.s32.totalorder %s20, 0
      %p62 = por %p60, %p61
      %p63 = scmp.ne.s32.totalorder %s49, %s50
      %p64 = scmp.eq.s32.totalorder %s21, 1
      %p65 = por %p63, %p64
      %p67 = scmp.ne.s32.totalorder %s50, %s66
      %p68 = scmp.eq.s32.totalorder %s21, 0
      %p69 = por %p67, %p68
      %s70 = ssub.s32 %s15, %s22
      %p71 = scmp.eq.s32.totalorder %s70, 0
      %s73 = sadd.s32 %s72, 1
      %s74 = scalar_select %p71, %s72, %s73
      %p77 = pneg %p71
      %p78 = scmp.eq.s32.totalorder %s15, 1
      %p79 = por %p77, %p78
      %p80 = scmp.ne.s32.totalorder %s72, %s75
      %p81 = scmp.eq.s32.totalorder %s15, 0
      %p82 = por %p80, %p81
      %p83 = scmp.ne.s32.totalorder %s72, %s75
      %p84 = scmp.eq.s32.totalorder %s20, 1
      %p85 = por %p83, %p84
      %p86 = scmp.ne.s32.totalorder %s75, %s76
      %p87 = scmp.eq.s32.totalorder %s20, 0
      %p88 = por %p86, %p87
      %p89 = scmp.ne.s32.totalorder %s75, %s76
      %p90 = scmp.eq.s32.totalorder %s21, 1
      %p91 = por %p89, %p90
      %p93 = scmp.ne.s32.totalorder %s76, %s92
      %p94 = scmp.eq.s32.totalorder %s21, 0
      %p95 = por %p93, %p94
      %p96 = scmp.le.s32.totalorder 1, %s15
      %p97 = scmp.lt.s32.totalorder %s15, 3
      %p98 = pnand %p96, %p97
      %p99 = pneg %p98
      // Predicated region
      $region9: #{tpu_custom_call.1} parent=5 // pred_check
        _
      $region10: #{tpu_custom_call.1} parent=5 // pred_check_branch
        %101 = sbr.rel (%p98) target = $region12
      $region11: #{tpu_custom_call.1} parent=5 // pred_region
        %s102 = ssub.s32 %s15, 1
        // Predicated region
        $region13: #{tpu_custom_call.1} parent=11 // pred_check
          %p103 = pneg %p36
        $region14: #{tpu_custom_call.1} parent=11 // pred_check_branch
          %105 = sbr.rel (%p103) target = $region16
        $region15: #{tpu_custom_call.1} parent=11 // pred_region
          %107 = vsyncadd [#allocation5], 0
          %s109 = sshll.u32 %s0, 4
          %s110 = int_to_ptr.hbm [resolvable:$true] %s109
          %112 = dma.hbm_to_smem %s110, 32, [#allocation2], [#allocation5]
        $region16: #{tpu_custom_call.1} parent=11 // pred_fallthru
          _
      $region12: #{tpu_custom_call.1} parent=5 // pred_fallthru
        _
      %p113 = scmp.lt.s32.totalorder %s15, 2
      // Predicated region
      $region17: #{tpu_custom_call.1} parent=5 // pred_check
        %p114 = pneg %p113
      $region18: #{tpu_custom_call.1} parent=5 // pred_check_branch
        %116 = sbr.rel (%p114) target = $region20
      $region19: #{tpu_custom_call.1} parent=5 // pred_region
        // Predicated region
        $region21: #{tpu_custom_call.1} parent=19 // pred_check
          %p117 = pneg %p56
        $region22: #{tpu_custom_call.1} parent=19 // pred_check_branch
          %119 = sbr.rel (%p117) target = $region24
        $region23: #{tpu_custom_call.1} parent=19 // pred_region
          %s120 = sand.u32 %s46, 1
          %s121 = scalar_lea.sflag [#allocation3], %s120
          %s122 = sand.u32 %s46, 1
          %s123 = smul.addr %s122, 128
          %s124 = scalar_lea.vmem [#allocation6], %s123
          %126 = vsyncadd %s121, 0
          %s127 = smul.addr %s15, 16
          %s128 = smul.addr %s127, 8
          %s129 = scalar_lea.hbm %s1, %s128
          %s130 = sshll.u32 %s129, 4
          %s131 = int_to_ptr.hbm [resolvable:$true] %s130
          %s132 = sshll.u32 %s124, 4
          %s133 = int_to_ptr.vmem [resolvable:$true] %s132
          %138 = dma.hbm_to_vmem [thread:$0]  %s131, 2048, %s133, %s121, 128, 128, 8
        $region24: #{tpu_custom_call.1} parent=19 // pred_fallthru
          _
      $region20: #{tpu_custom_call.1} parent=5 // pred_fallthru
        _
      %p139 = scmp.le.s32.totalorder 1, %s15
      %p140 = scmp.lt.s32.totalorder %s15, 3
      %p141 = pnand %p139, %p140
      %p142 = pneg %p141
      // Predicated region
      $region25: #{tpu_custom_call.1} parent=5 // pred_check
        _
      $region26: #{tpu_custom_call.1} parent=5 // pred_check_branch
        %144 = sbr.rel (%p141) target = $region28
      $region27: #{tpu_custom_call.1} parent=5 // pred_region
        %s145 = ssub.s32 %s15, 1
        // Predicated region
        $region29: #{tpu_custom_call.1} parent=27 // pred_check
          %p146 = pneg %p36
        $region30: #{tpu_custom_call.1} parent=27 // pred_check_branch
          %148 = sbr.rel (%p146) target = $region32
        $region31: #{tpu_custom_call.1} parent=27 // pred_region
          %150 = dma.done [#allocation5], 32
        $region32: #{tpu_custom_call.1} parent=27 // pred_fallthru
          _
        %s151 = sand.u32 %s49, 1
        %s152 = scalar_lea.sflag [#allocation3], %s151
        %s153 = sand.u32 %s49, 1
        %s154 = smul.addr %s153, 128
        %s155 = scalar_lea.vmem [#allocation6], %s154
        // Predicated region
        $region33: #{tpu_custom_call.1} parent=27 // pred_check
          %p156 = pneg %p62
        $region34: #{tpu_custom_call.1} parent=27 // pred_check_branch
          %158 = sbr.rel (%p156) target = $region36
        $region35: #{tpu_custom_call.1} parent=27 // pred_region
          %160 = dma.done %s152, 2048
        $region36: #{tpu_custom_call.1} parent=27 // pred_fallthru
          _
        %161 = sfence
        %p162 = pneg %p36
        %p163 = pneg %p33
        %s164 = sand.u32 %s49, 1
        %s165 = scalar_lea.sflag [#allocation3], %s164
        %s166 = sand.u32 %s49, 1
        %s167 = smul.addr %s166, 128
        %s168 = scalar_lea.vmem [#allocation6], %s167
        %p169 = pneg %p62
        %p170 = pneg %p59
        %p171 = pneg %p88
        %p172 = pneg %p85
        %s173 = sand.u32 %s75, 1
        %s174 = scalar_lea.sflag [#allocation4], %s173
        %s175 = sand.u32 %s75, 1
        %s176 = smul.addr %s175, 128
        %s177 = scalar_lea.vmem [#allocation7], %s176
        %s178 = smul.u32 %s20, 128
        %s179 = sadd.s32 %s178, 24
        %s180 = sld [smem:[#allocation2 + %s179]]
        %s181 = sadd.s32 %s178, 25
        %s182 = sld [smem:[#allocation2 + %s181]]
        %s183 = sadd.s32 %s178, 26
        %s184 = sld [smem:[#allocation2 + %s183]]
        %s185 = sadd.s32 %s178, 27
        %s186 = sld [smem:[#allocation2 + %s185]]
        %v187 = vld [vmem:[%s155] sm:$0xff]
        %v188 = vld [vmem:[%s155 + $0x8] sm:$0xff]
        %v189 = vld [vmem:[%s155 + $0x10] sm:$0xff]
        %v190 = vld [vmem:[%s155 + $0x18] sm:$0xff]
        %v191 = vld [vmem:[%s155 + $0x20] sm:$0xff]
        %v192 = vld [vmem:[%s155 + $0x28] sm:$0xff]
        %v193 = vld [vmem:[%s155 + $0x30] sm:$0xff]
        %v194 = vld [vmem:[%s155 + $0x38] sm:$0xff]
        %v195 = vld [vmem:[%s155 + $0x40] sm:$0xff]
        %v196 = vld [vmem:[%s155 + $0x48] sm:$0xff]
        %v197 = vld [vmem:[%s155 + $0x50] sm:$0xff]
        %v198 = vld [vmem:[%s155 + $0x58] sm:$0xff]
        %v199 = vld [vmem:[%s155 + $0x60] sm:$0xff]
        %v200 = vld [vmem:[%s155 + $0x68] sm:$0xff]
        %v201 = vld [vmem:[%s155 + $0x70] sm:$0xff]
        %v202 = vld [vmem:[%s155 + $0x78] sm:$0xff]
        %v203 = vstv %s180
        %v204 = vsub.f32 %v187, %v203
        %v205 = vsub.f32 %v188, %v203
        %v206 = vsub.f32 %v189, %v203
        %v207 = vsub.f32 %v190, %v203
        %v208 = vsub.f32 %v191, %v203
        %v209 = vsub.f32 %v192, %v203
        %v210 = vsub.f32 %v193, %v203
        %v211 = vsub.f32 %v194, %v203
        %v212 = vsub.f32 %v195, %v203
        %v213 = vsub.f32 %v196, %v203
        %v214 = vsub.f32 %v197, %v203
        %v215 = vsub.f32 %v198, %v203
        %v216 = vsub.f32 %v199, %v203
        %v217 = vsub.f32 %v200, %v203
        %v218 = vsub.f32 %v201, %v203
        %v219 = vsub.f32 %v202, %v203
        %v220 = vmul.f32 %v204, 128.0
        %v221 = vmul.f32 %v205, 128.0
        %v222 = vmul.f32 %v206, 128.0
        %v223 = vmul.f32 %v207, 128.0
        %v224 = vmul.f32 %v208, 128.0
        %v225 = vmul.f32 %v209, 128.0
        %v226 = vmul.f32 %v210, 128.0
        %v227 = vmul.f32 %v211, 128.0
        %v228 = vmul.f32 %v212, 128.0
        %v229 = vmul.f32 %v213, 128.0
        %v230 = vmul.f32 %v214, 128.0
        %v231 = vmul.f32 %v215, 128.0
        %v232 = vmul.f32 %v216, 128.0
        %v233 = vmul.f32 %v217, 128.0
        %v234 = vmul.f32 %v218, 128.0
        %v235 = vmul.f32 %v219, 128.0
        %s236 = sadd.s32 %s178, 2
        %s237 = sld [smem:[#allocation2 + %s236]]
        %v238 = vlaneseq
        %v239 = vshrl.u32 %v238, 7
        %v240 = vadd.s32 %v239, 8
        %v241 = vadd.s32 %v239, 16
        %v242 = vadd.s32 %v239, 24
        %v243 = vadd.s32 %v239, 32
        %v244 = vadd.s32 %v239, 40
        %v245 = vadd.s32 %v239, 48
        %v246 = vadd.s32 %v239, 56
        %v247 = vadd.s32 %v239, 64
        %v248 = vadd.s32 %v239, 72
        %v249 = vadd.s32 %v239, 80
        %v250 = vadd.s32 %v239, 88
        %v251 = vadd.s32 %v239, 96
        %v252 = vadd.s32 %v239, 104
        %v253 = vadd.s32 %v239, 112
        %v254 = vadd.s32 %v239, 120
        %v255 = vlaneseq
        %v256 = vand.u32 %v255, 127
        %v257 = vsub.s32 %v256, %v239
        %v258 = vsub.s32 %v256, %v240
        %v259 = vsub.s32 %v256, %v241
        %v260 = vsub.s32 %v256, %v242
        %v261 = vsub.s32 %v256, %v243
        %v262 = vsub.s32 %v256, %v244
        %v263 = vsub.s32 %v256, %v245
        %v264 = vsub.s32 %v256, %v246
        %v265 = vsub.s32 %v256, %v247
        %v266 = vsub.s32 %v256, %v248
        %v267 = vsub.s32 %v256, %v249
        %v268 = vsub.s32 %v256, %v250
        %v269 = vsub.s32 %v256, %v251
        %v270 = vsub.s32 %v256, %v252
        %v271 = vsub.s32 %v256, %v253
        %v272 = vsub.s32 %v256, %v254
        %v273 = vcvt.s32.f32 %v257
        %v274 = vcvt.s32.f32 %v258
        %v275 = vcvt.s32.f32 %v259
        %v276 = vcvt.s32.f32 %v260
        %v277 = vcvt.s32.f32 %v261
        %v278 = vcvt.s32.f32 %v262
        %v279 = vcvt.s32.f32 %v263
        %v280 = vcvt.s32.f32 %v264
        %v281 = vcvt.s32.f32 %v265
        %v282 = vcvt.s32.f32 %v266
        %v283 = vcvt.s32.f32 %v267
        %v284 = vcvt.s32.f32 %v268
        %v285 = vcvt.s32.f32 %v269
        %v286 = vcvt.s32.f32 %v270
        %v287 = vcvt.s32.f32 %v271
        %v288 = vcvt.s32.f32 %v272
        %v289 = vstv %s186
        %v290 = vsub.f32 %v273, %v289
        %v291 = vsub.f32 %v274, %v289
        %v292 = vsub.f32 %v275, %v289
        %v293 = vsub.f32 %v276, %v289
        %v294 = vsub.f32 %v277, %v289
        %v295 = vsub.f32 %v278, %v289
        %v296 = vsub.f32 %v279, %v289
        %v297 = vsub.f32 %v280, %v289
        %v298 = vsub.f32 %v281, %v289
        %v299 = vsub.f32 %v282, %v289
        %v300 = vsub.f32 %v283, %v289
        %v301 = vsub.f32 %v284, %v289
        %v302 = vsub.f32 %v285, %v289
        %v303 = vsub.f32 %v286, %v289
        %v304 = vsub.f32 %v287, %v289
        %v305 = vsub.f32 %v288, %v289
        %v306 = vand.u32 2147483647, %v290
        %v307 = vand.u32 2147483647, %v291
        %v308 = vand.u32 2147483647, %v292
        %v309 = vand.u32 2147483647, %v293
        %v310 = vand.u32 2147483647, %v294
        %v311 = vand.u32 2147483647, %v295
        %v312 = vand.u32 2147483647, %v296
        %v313 = vand.u32 2147483647, %v297
        %v314 = vand.u32 2147483647, %v298
        %v315 = vand.u32 2147483647, %v299
        %v316 = vand.u32 2147483647, %v300
        %v317 = vand.u32 2147483647, %v301
        %v318 = vand.u32 2147483647, %v302
        %v319 = vand.u32 2147483647, %v303
        %v320 = vand.u32 2147483647, %v304
        %v321 = vand.u32 2147483647, %v305
        %v322 = vsub.f32 1.0, %v306
        %v323 = vsub.f32 1.0, %v307
        %v324 = vsub.f32 1.0, %v308
        %v325 = vsub.f32 1.0, %v309
        %v326 = vsub.f32 1.0, %v310
        %v327 = vsub.f32 1.0, %v311
        %v328 = vsub.f32 1.0, %v312
        %v329 = vsub.f32 1.0, %v313
        %v330 = vsub.f32 1.0, %v314
        %v331 = vsub.f32 1.0, %v315
        %v332 = vsub.f32 1.0, %v316
        %v333 = vsub.f32 1.0, %v317
        %v334 = vsub.f32 1.0, %v318
        %v335 = vsub.f32 1.0, %v319
        %v336 = vsub.f32 1.0, %v320
        %v337 = vsub.f32 1.0, %v321
        %v338 = vmax.f32 %v322, 0.0
        %v339 = vmax.f32 %v323, 0.0
        %v340 = vmax.f32 %v324, 0.0
        %v341 = vmax.f32 %v325, 0.0
        %v342 = vmax.f32 %v326, 0.0
        %v343 = vmax.f32 %v327, 0.0
        %v344 = vmax.f32 %v328, 0.0
        %v345 = vmax.f32 %v329, 0.0
        %v346 = vmax.f32 %v330, 0.0
        %v347 = vmax.f32 %v331, 0.0
        %v348 = vmax.f32 %v332, 0.0
        %v349 = vmax.f32 %v333, 0.0
        %v350 = vmax.f32 %v334, 0.0
        %v351 = vmax.f32 %v335, 0.0
        %v352 = vmax.f32 %v336, 0.0
        %v353 = vmax.f32 %v337, 0.0
        %v354 = vsub.s32 %v239, %v256
        %v355 = vsub.s32 %v240, %v256
        %v356 = vsub.s32 %v241, %v256
        %v357 = vsub.s32 %v242, %v256
        %v358 = vsub.s32 %v243, %v256
        %v359 = vsub.s32 %v244, %v256
        %v360 = vsub.s32 %v245, %v256
        %v361 = vsub.s32 %v246, %v256
        %v362 = vsub.s32 %v247, %v256
        %v363 = vsub.s32 %v248, %v256
        %v364 = vsub.s32 %v249, %v256
        %v365 = vsub.s32 %v250, %v256
        %v366 = vsub.s32 %v251, %v256
        %v367 = vsub.s32 %v252, %v256
        %v368 = vsub.s32 %v253, %v256
        %v369 = vsub.s32 %v254, %v256
        %v370 = vcvt.s32.f32 %v354
        %v371 = vcvt.s32.f32 %v355
        %v372 = vcvt.s32.f32 %v356
        %v373 = vcvt.s32.f32 %v357
        %v374 = vcvt.s32.f32 %v358
        %v375 = vcvt.s32.f32 %v359
        %v376 = vcvt.s32.f32 %v360
        %v377 = vcvt.s32.f32 %v361
        %v378 = vcvt.s32.f32 %v362
        %v379 = vcvt.s32.f32 %v363
        %v380 = vcvt.s32.f32 %v364
        %v381 = vcvt.s32.f32 %v365
        %v382 = vcvt.s32.f32 %v366
        %v383 = vcvt.s32.f32 %v367
        %v384 = vcvt.s32.f32 %v368
        %v385 = vcvt.s32.f32 %v369
        %v386 = vstv %s184
        %v387 = vsub.f32 %v370, %v386
        %v388 = vsub.f32 %v371, %v386
        %v389 = vsub.f32 %v372, %v386
        %v390 = vsub.f32 %v373, %v386
        %v391 = vsub.f32 %v374, %v386
        %v392 = vsub.f32 %v375, %v386
        %v393 = vsub.f32 %v376, %v386
        %v394 = vsub.f32 %v377, %v386
        %v395 = vsub.f32 %v378, %v386
        %v396 = vsub.f32 %v379, %v386
        %v397 = vsub.f32 %v380, %v386
        %v398 = vsub.f32 %v381, %v386
        %v399 = vsub.f32 %v382, %v386
        %v400 = vsub.f32 %v383, %v386
        %v401 = vsub.f32 %v384, %v386
        %v402 = vsub.f32 %v385, %v386
        %v403 = vand.u32 2147483647, %v387
        %v404 = vand.u32 2147483647, %v388
        %v405 = vand.u32 2147483647, %v389
        %v406 = vand.u32 2147483647, %v390
        %v407 = vand.u32 2147483647, %v391
        %v408 = vand.u32 2147483647, %v392
        %v409 = vand.u32 2147483647, %v393
        %v410 = vand.u32 2147483647, %v394
        %v411 = vand.u32 2147483647, %v395
        %v412 = vand.u32 2147483647, %v396
        %v413 = vand.u32 2147483647, %v397
        %v414 = vand.u32 2147483647, %v398
        %v415 = vand.u32 2147483647, %v399
        %v416 = vand.u32 2147483647, %v400
        %v417 = vand.u32 2147483647, %v401
        %v418 = vand.u32 2147483647, %v402
        %v419 = vsub.f32 1.0, %v403
        %v420 = vsub.f32 1.0, %v404
        %v421 = vsub.f32 1.0, %v405
        %v422 = vsub.f32 1.0, %v406
        %v423 = vsub.f32 1.0, %v407
        %v424 = vsub.f32 1.0, %v408
        %v425 = vsub.f32 1.0, %v409
        %v426 = vsub.f32 1.0, %v410
        %v427 = vsub.f32 1.0, %v411
        %v428 = vsub.f32 1.0, %v412
        %v429 = vsub.f32 1.0, %v413
        %v430 = vsub.f32 1.0, %v414
        %v431 = vsub.f32 1.0, %v415
        %v432 = vsub.f32 1.0, %v416
        %v433 = vsub.f32 1.0, %v417
        %v434 = vsub.f32 1.0, %v418
        %v435 = vmax.f32 %v419, 0.0
        %v436 = vmax.f32 %v420, 0.0
        %v437 = vmax.f32 %v421, 0.0
        %v438 = vmax.f32 %v422, 0.0
        %v439 = vmax.f32 %v423, 0.0
        %v440 = vmax.f32 %v424, 0.0
        %v441 = vmax.f32 %v425, 0.0
        %v442 = vmax.f32 %v426, 0.0
        %v443 = vmax.f32 %v427, 0.0
        %v444 = vmax.f32 %v428, 0.0
        %v445 = vmax.f32 %v429, 0.0
        %v446 = vmax.f32 %v430, 0.0
        %v447 = vmax.f32 %v431, 0.0
        %v448 = vmax.f32 %v432, 0.0
        %v449 = vmax.f32 %v433, 0.0
        %v450 = vmax.f32 %v434, 0.0
        %v451 = vstv %s237
        %v452 = vsub.f32 %v220, %v451
        %v453 = vsub.f32 %v221, %v451
        %v454 = vsub.f32 %v222, %v451
        %v455 = vsub.f32 %v223, %v451
        %v456 = vsub.f32 %v224, %v451
        %v457 = vsub.f32 %v225, %v451
        %v458 = vsub.f32 %v226, %v451
        %v459 = vsub.f32 %v227, %v451
        %v460 = vsub.f32 %v228, %v451
        %v461 = vsub.f32 %v229, %v451
        %v462 = vsub.f32 %v230, %v451
        %v463 = vsub.f32 %v231, %v451
        %v464 = vsub.f32 %v232, %v451
        %v465 = vsub.f32 %v233, %v451
        %v466 = vsub.f32 %v234, %v451
        %v467 = vsub.f32 %v235, %v451
        %468 = vmatpush.msra.mxu0 %v467
        %469 = vmatpush.msra.mxu0 %v466
        %470 = vmatpush.msra.mxu0 %v465
        %471 = vmatpush.msra.mxu0 %v464
        %472 = vmatpush.msra.mxu0 %v463
        %473 = vmatpush.msra.mxu0 %v462
        %474 = vmatpush.msra.mxu0 %v461
        %475 = vmatpush.msra.mxu0 %v460
        %476 = vmatpush.msra.mxu0 %v459
        %477 = vmatpush.msra.mxu0 %v458
        %478 = vmatpush.msra.mxu0 %v457
        %479 = vmatpush.msra.mxu0 %v456
        %480 = vmatpush.msra.mxu0 %v455
        %481 = vmatpush.msra.mxu0 %v454
        %482 = vmatpush.msra.mxu0 %v453
        %483 = vmatpush.msra.mxu0 %v452
        %484 = vmatmul.f32.gmra.mxu0 %v338
        %v485 = vpop.f32.mrf.mxu0
        %v486 = vadd.f32 0.0, %v485
        %487 = vmatmul.f32.gmra.mxu0 %v339
        %v488 = vpop.f32.mrf.mxu0
        %v489 = vadd.f32 0.0, %v488
        %490 = vmatmul.f32.gmra.mxu0 %v340
        %v491 = vpop.f32.mrf.mxu0
        %v492 = vadd.f32 0.0, %v491
        %493 = vmatmul.f32.gmra.mxu0 %v341
        %v494 = vpop.f32.mrf.mxu0
        %v495 = vadd.f32 0.0, %v494
        %496 = vmatmul.f32.gmra.mxu0 %v342
        %v497 = vpop.f32.mrf.mxu0
        %v498 = vadd.f32 0.0, %v497
        %499 = vmatmul.f32.gmra.mxu0 %v343
        %v500 = vpop.f32.mrf.mxu0
        %v501 = vadd.f32 0.0, %v500
        %502 = vmatmul.f32.gmra.mxu0 %v344
        %v503 = vpop.f32.mrf.mxu0
        %v504 = vadd.f32 0.0, %v503
        %505 = vmatmul.f32.gmra.mxu0 %v345
        %v506 = vpop.f32.mrf.mxu0
        %v507 = vadd.f32 0.0, %v506
        %508 = vmatmul.f32.gmra.mxu0 %v346
        %v509 = vpop.f32.mrf.mxu0
        %v510 = vadd.f32 0.0, %v509
        %511 = vmatmul.f32.gmra.mxu0 %v347
        %v512 = vpop.f32.mrf.mxu0
        %v513 = vadd.f32 0.0, %v512
        %514 = vmatmul.f32.gmra.mxu0 %v348
        %v515 = vpop.f32.mrf.mxu0
        %v516 = vadd.f32 0.0, %v515
        %517 = vmatmul.f32.gmra.mxu0 %v349
        %v518 = vpop.f32.mrf.mxu0
        %v519 = vadd.f32 0.0, %v518
        %520 = vmatmul.f32.gmra.mxu0 %v350
        %v521 = vpop.f32.mrf.mxu0
        %v522 = vadd.f32 0.0, %v521
        %523 = vmatmul.f32.gmra.mxu0 %v351
        %v524 = vpop.f32.mrf.mxu0
        %v525 = vadd.f32 0.0, %v524
        %526 = vmatmul.f32.gmra.mxu0 %v352
        %v527 = vpop.f32.mrf.mxu0
        %v528 = vadd.f32 0.0, %v527
        %529 = vmatmul.f32.gmra.mxu0 %v353
        %v530 = vpop.f32.mrf.mxu0
        %v531 = vadd.f32 0.0, %v530
        %532 = vdwg.mxu0
        %533 = vmatpush.msra.mxu0 %v450
        %534 = vmatpush.msra.mxu0 %v449
        %535 = vmatpush.msra.mxu0 %v448
        %536 = vmatpush.msra.mxu0 %v447
        %537 = vmatpush.msra.mxu0 %v446
        %538 = vmatpush.msra.mxu0 %v445
        %539 = vmatpush.msra.mxu0 %v444
        %540 = vmatpush.msra.mxu0 %v443
        %541 = vmatpush.msra.mxu0 %v442
        %542 = vmatpush.msra.mxu0 %v441
        %543 = vmatpush.msra.mxu0 %v440
        %544 = vmatpush.msra.mxu0 %v439
        %545 = vmatpush.msra.mxu0 %v438
        %546 = vmatpush.msra.mxu0 %v437
        %547 = vmatpush.msra.mxu0 %v436
        %548 = vmatpush.msra.mxu0 %v435
        %549 = vmatmul.f32.gmra.mxu0 %v486
        %v550 = vpop.f32.mrf.mxu0
        %v551 = vadd.f32 0.0, %v550
        %552 = vmatmul.f32.gmra.mxu0 %v489
        %v553 = vpop.f32.mrf.mxu0
        %v554 = vadd.f32 0.0, %v553
        %555 = vmatmul.f32.gmra.mxu0 %v492
        %v556 = vpop.f32.mrf.mxu0
        %v557 = vadd.f32 0.0, %v556
        %558 = vmatmul.f32.gmra.mxu0 %v495
        %v559 = vpop.f32.mrf.mxu0
        %v560 = vadd.f32 0.0, %v559
        %561 = vmatmul.f32.gmra.mxu0 %v498
        %v562 = vpop.f32.mrf.mxu0
        %v563 = vadd.f32 0.0, %v562
        %564 = vmatmul.f32.gmra.mxu0 %v501
        %v565 = vpop.f32.mrf.mxu0
        %v566 = vadd.f32 0.0, %v565
        %567 = vmatmul.f32.gmra.mxu0 %v504
        %v568 = vpop.f32.mrf.mxu0
        %v569 = vadd.f32 0.0, %v568
        %570 = vmatmul.f32.gmra.mxu0 %v507
        %v571 = vpop.f32.mrf.mxu0
        %v572 = vadd.f32 0.0, %v571
        %573 = vmatmul.f32.gmra.mxu0 %v510
        %v574 = vpop.f32.mrf.mxu0
        %v575 = vadd.f32 0.0, %v574
        %576 = vmatmul.f32.gmra.mxu0 %v513
        %v577 = vpop.f32.mrf.mxu0
        %v578 = vadd.f32 0.0, %v577
        %579 = vmatmul.f32.gmra.mxu0 %v516
        %v580 = vpop.f32.mrf.mxu0
        %v581 = vadd.f32 0.0, %v580
        %582 = vmatmul.f32.gmra.mxu0 %v519
        %v583 = vpop.f32.mrf.mxu0
        %v584 = vadd.f32 0.0, %v583
        %585 = vmatmul.f32.gmra.mxu0 %v522
        %v586 = vpop.f32.mrf.mxu0
        %v587 = vadd.f32 0.0, %v586
        %588 = vmatmul.f32.gmra.mxu0 %v525
        %v589 = vpop.f32.mrf.mxu0
        %v590 = vadd.f32 0.0, %v589
        %591 = vmatmul.f32.gmra.mxu0 %v528
        %v592 = vpop.f32.mrf.mxu0
        %v593 = vadd.f32 0.0, %v592
        %594 = vmatmul.f32.gmra.mxu0 %v531
        %v595 = vpop.f32.mrf.mxu0
        %v596 = vadd.f32 0.0, %v595
        %597 = vdwg.mxu0
        %v598 = vmax.f32 %v220, %v551
        %v599 = vmax.f32 %v221, %v554
        %v600 = vmax.f32 %v222, %v557
        %v601 = vmax.f32 %v223, %v560
        %v602 = vmax.f32 %v224, %v563
        %v603 = vmax.f32 %v225, %v566
        %v604 = vmax.f32 %v226, %v569
        %v605 = vmax.f32 %v227, %v572
        %v606 = vmax.f32 %v228, %v575
        %v607 = vmax.f32 %v229, %v578
        %v608 = vmax.f32 %v230, %v581
        %v609 = vmax.f32 %v231, %v584
        %v610 = vmax.f32 %v232, %v587
        %v611 = vmax.f32 %v233, %v590
        %v612 = vmax.f32 %v234, %v593
        %v613 = vmax.f32 %v235, %v596
        %s614 = smul.f32 %s186, 2.0
        %s615 = smul.f32 %s184, 2.0
        %s616 = sadd.s32 %s178, 5
        %s617 = sld [smem:[#allocation2 + %s616]]
        %v618 = vstv %s614
        %v619 = vsub.f32 %v273, %v618
        %v620 = vsub.f32 %v274, %v618
        %v621 = vsub.f32 %v275, %v618
        %v622 = vsub.f32 %v276, %v618
        %v623 = vsub.f32 %v277, %v618
        %v624 = vsub.f32 %v278, %v618
        %v625 = vsub.f32 %v279, %v618
        %v626 = vsub.f32 %v280, %v618
        %v627 = vsub.f32 %v281, %v618
        %v628 = vsub.f32 %v282, %v618
        %v629 = vsub.f32 %v283, %v618
        %v630 = vsub.f32 %v284, %v618
        %v631 = vsub.f32 %v285, %v618
        %v632 = vsub.f32 %v286, %v618
        %v633 = vsub.f32 %v287, %v618
        %v634 = vsub.f32 %v288, %v618
        %v635 = vand.u32 2147483647, %v619
        %v636 = vand.u32 2147483647, %v620
        %v637 = vand.u32 2147483647, %v621
        %v638 = vand.u32 2147483647, %v622
        %v639 = vand.u32 2147483647, %v623
        %v640 = vand.u32 2147483647, %v624
        %v641 = vand.u32 2147483647, %v625
        %v642 = vand.u32 2147483647, %v626
        %v643 = vand.u32 2147483647, %v627
        %v644 = vand.u32 2147483647, %v628
        %v645 = vand.u32 2147483647, %v629
        %v646 = vand.u32 2147483647, %v630
        %v647 = vand.u32 2147483647, %v631
        %v648 = vand.u32 2147483647, %v632
        %v649 = vand.u32 2147483647, %v633
        %v650 = vand.u32 2147483647, %v634
        %v651 = vsub.f32 1.0, %v635
        %v652 = vsub.f32 1.0, %v636
        %v653 = vsub.f32 1.0, %v637
        %v654 = vsub.f32 1.0, %v638
        %v655 = vsub.f32 1.0, %v639
        %v656 = vsub.f32 1.0, %v640
        %v657 = vsub.f32 1.0, %v641
        %v658 = vsub.f32 1.0, %v642
        %v659 = vsub.f32 1.0, %v643
        %v660 = vsub.f32 1.0, %v644
        %v661 = vsub.f32 1.0, %v645
        %v662 = vsub.f32 1.0, %v646
        %v663 = vsub.f32 1.0, %v647
        %v664 = vsub.f32 1.0, %v648
        %v665 = vsub.f32 1.0, %v649
        %v666 = vsub.f32 1.0, %v650
        %v667 = vmax.f32 %v651, 0.0
        %v668 = vmax.f32 %v652, 0.0
        %v669 = vmax.f32 %v653, 0.0
        %v670 = vmax.f32 %v654, 0.0
        %v671 = vmax.f32 %v655, 0.0
        %v672 = vmax.f32 %v656, 0.0
        %v673 = vmax.f32 %v657, 0.0
        %v674 = vmax.f32 %v658, 0.0
        %v675 = vmax.f32 %v659, 0.0
        %v676 = vmax.f32 %v660, 0.0
        %v677 = vmax.f32 %v661, 0.0
        %v678 = vmax.f32 %v662, 0.0
        %v679 = vmax.f32 %v663, 0.0
        %v680 = vmax.f32 %v664, 0.0
        %v681 = vmax.f32 %v665, 0.0
        %v682 = vmax.f32 %v666, 0.0
        %v683 = vstv %s615
        %v684 = vsub.f32 %v370, %v683
        %v685 = vsub.f32 %v371, %v683
        %v686 = vsub.f32 %v372, %v683
        %v687 = vsub.f32 %v373, %v683
        %v688 = vsub.f32 %v374, %v683
        %v689 = vsub.f32 %v375, %v683
        %v690 = vsub.f32 %v376, %v683
        %v691 = vsub.f32 %v377, %v683
        %v692 = vsub.f32 %v378, %v683
        %v693 = vsub.f32 %v379, %v683
        %v694 = vsub.f32 %v380, %v683
        %v695 = vsub.f32 %v381, %v683
        %v696 = vsub.f32 %v382, %v683
        %v697 = vsub.f32 %v383, %v683
        %v698 = vsub.f32 %v384, %v683
        %v699 = vsub.f32 %v385, %v683
        %v700 = vand.u32 2147483647, %v684
        %v701 = vand.u32 2147483647, %v685
        %v702 = vand.u32 2147483647, %v686
        %v703 = vand.u32 2147483647, %v687
        %v704 = vand.u32 2147483647, %v688
        %v705 = vand.u32 2147483647, %v689
        %v706 = vand.u32 2147483647, %v690
        %v707 = vand.u32 2147483647, %v691
        %v708 = vand.u32 2147483647, %v692
        %v709 = vand.u32 2147483647, %v693
        %v710 = vand.u32 2147483647, %v694
        %v711 = vand.u32 2147483647, %v695
        %v712 = vand.u32 2147483647, %v696
        %v713 = vand.u32 2147483647, %v697
        %v714 = vand.u32 2147483647, %v698
        %v715 = vand.u32 2147483647, %v699
        %v716 = vsub.f32 1.0, %v700
        %v717 = vsub.f32 1.0, %v701
        %v718 = vsub.f32 1.0, %v702
        %v719 = vsub.f32 1.0, %v703
        %v720 = vsub.f32 1.0, %v704
        %v721 = vsub.f32 1.0, %v705
        %v722 = vsub.f32 1.0, %v706
        %v723 = vsub.f32 1.0, %v707
        %v724 = vsub.f32 1.0, %v708
        %v725 = vsub.f32 1.0, %v709
        %v726 = vsub.f32 1.0, %v710
        %v727 = vsub.f32 1.0, %v711
        %v728 = vsub.f32 1.0, %v712
        %v729 = vsub.f32 1.0, %v713
        %v730 = vsub.f32 1.0, %v714
        %v731 = vsub.f32 1.0, %v715
        %v732 = vmax.f32 %v716, 0.0
        %v733 = vmax.f32 %v717, 0.0
        %v734 = vmax.f32 %v718, 0.0
        %v735 = vmax.f32 %v719, 0.0
        %v736 = vmax.f32 %v720, 0.0
        %v737 = vmax.f32 %v721, 0.0
        %v738 = vmax.f32 %v722, 0.0
        %v739 = vmax.f32 %v723, 0.0
        %v740 = vmax.f32 %v724, 0.0
        %v741 = vmax.f32 %v725, 0.0
        %v742 = vmax.f32 %v726, 0.0
        %v743 = vmax.f32 %v727, 0.0
        %v744 = vmax.f32 %v728, 0.0
        %v745 = vmax.f32 %v729, 0.0
        %v746 = vmax.f32 %v730, 0.0
        %v747 = vmax.f32 %v731, 0.0
        %v748 = vstv %s617
        %v749 = vsub.f32 %v598, %v748
        %v750 = vsub.f32 %v599, %v748
        %v751 = vsub.f32 %v600, %v748
        %v752 = vsub.f32 %v601, %v748
        %v753 = vsub.f32 %v602, %v748
        %v754 = vsub.f32 %v603, %v748
        %v755 = vsub.f32 %v604, %v748
        %v756 = vsub.f32 %v605, %v748
        %v757 = vsub.f32 %v606, %v748
        %v758 = vsub.f32 %v607, %v748
        %v759 = vsub.f32 %v608, %v748
        %v760 = vsub.f32 %v609, %v748
        %v761 = vsub.f32 %v610, %v748
        %v762 = vsub.f32 %v611, %v748
        %v763 = vsub.f32 %v612, %v748
        %v764 = vsub.f32 %v613, %v748
        %765 = vmatpush.msra.mxu0 %v764
        %766 = vmatpush.msra.mxu0 %v763
        %767 = vmatpush.msra.mxu0 %v762
        %768 = vmatpush.msra.mxu0 %v761
        %769 = vmatpush.msra.mxu0 %v760
        %770 = vmatpush.msra.mxu0 %v759
        %771 = vmatpush.msra.mxu0 %v758
        %772 = vmatpush.msra.mxu0 %v757
        %773 = vmatpush.msra.mxu0 %v756
        %774 = vmatpush.msra.mxu0 %v755
        %775 = vmatpush.msra.mxu0 %v754
        %776 = vmatpush.msra.mxu0 %v753
        %777 = vmatpush.msra.mxu0 %v752
        %778 = vmatpush.msra.mxu0 %v751
        %779 = vmatpush.msra.mxu0 %v750
        %780 = vmatpush.msra.mxu0 %v749
        %781 = vmatmul.f32.gmra.mxu0 %v667
        %v782 = vpop.f32.mrf.mxu0
        %v783 = vadd.f32 0.0, %v782
        %784 = vmatmul.f32.gmra.mxu0 %v668
        %v785 = vpop.f32.mrf.mxu0
        %v786 = vadd.f32 0.0, %v785
        %787 = vmatmul.f32.gmra.mxu0 %v669
        %v788 = vpop.f32.mrf.mxu0
        %v789 = vadd.f32 0.0, %v788
        %790 = vmatmul.f32.gmra.mxu0 %v670
        %v791 = vpop.f32.mrf.mxu0
        %v792 = vadd.f32 0.0, %v791
        %793 = vmatmul.f32.gmra.mxu0 %v671
        %v794 = vpop.f32.mrf.mxu0
        %v795 = vadd.f32 0.0, %v794
        %796 = vmatmul.f32.gmra.mxu0 %v672
        %v797 = vpop.f32.mrf.mxu0
        %v798 = vadd.f32 0.0, %v797
        %799 = vmatmul.f32.gmra.mxu0 %v673
        %v800 = vpop.f32.mrf.mxu0
        %v801 = vadd.f32 0.0, %v800
        %802 = vmatmul.f32.gmra.mxu0 %v674
        %v803 = vpop.f32.mrf.mxu0
        %v804 = vadd.f32 0.0, %v803
        %805 = vmatmul.f32.gmra.mxu0 %v675
        %v806 = vpop.f32.mrf.mxu0
        %v807 = vadd.f32 0.0, %v806
        %808 = vmatmul.f32.gmra.mxu0 %v676
        %v809 = vpop.f32.mrf.mxu0
        %v810 = vadd.f32 0.0, %v809
        %811 = vmatmul.f32.gmra.mxu0 %v677
        %v812 = vpop.f32.mrf.mxu0
        %v813 = vadd.f32 0.0, %v812
        %814 = vmatmul.f32.gmra.mxu0 %v678
        %v815 = vpop.f32.mrf.mxu0
        %v816 = vadd.f32 0.0, %v815
        %817 = vmatmul.f32.gmra.mxu0 %v679
        %v818 = vpop.f32.mrf.mxu0
        %v819 = vadd.f32 0.0, %v818
        %820 = vmatmul.f32.gmra.mxu0 %v680
        %v821 = vpop.f32.mrf.mxu0
        %v822 = vadd.f32 0.0, %v821
        %823 = vmatmul.f32.gmra.mxu0 %v681
        %v824 = vpop.f32.mrf.mxu0
        %v825 = vadd.f32 0.0, %v824
        %826 = vmatmul.f32.gmra.mxu0 %v682
        %v827 = vpop.f32.mrf.mxu0
        %v828 = vadd.f32 0.0, %v827
        %829 = vdwg.mxu0
        %830 = vmatpush.msra.mxu0 %v747
        %831 = vmatpush.msra.mxu0 %v746
        %832 = vmatpush.msra.mxu0 %v745
        %833 = vmatpush.msra.mxu0 %v744
        %834 = vmatpush.msra.mxu0 %v743
        %835 = vmatpush.msra.mxu0 %v742
        %836 = vmatpush.msra.mxu0 %v741
        %837 = vmatpush.msra.mxu0 %v740
        %838 = vmatpush.msra.mxu0 %v739
        %839 = vmatpush.msra.mxu0 %v738
        %840 = vmatpush.msra.mxu0 %v737
        %841 = vmatpush.msra.mxu0 %v736
        %842 = vmatpush.msra.mxu0 %v735
        %843 = vmatpush.msra.mxu0 %v734
        %844 = vmatpush.msra.mxu0 %v733
        %845 = vmatpush.msra.mxu0 %v732
        %846 = vmatmul.f32.gmra.mxu0 %v783
        %v847 = vpop.f32.mrf.mxu0
        %v848 = vadd.f32 0.0, %v847
        %849 = vmatmul.f32.gmra.mxu0 %v786
        %v850 = vpop.f32.mrf.mxu0
        %v851 = vadd.f32 0.0, %v850
        %852 = vmatmul.f32.gmra.mxu0 %v789
        %v853 = vpop.f32.mrf.mxu0
        %v854 = vadd.f32 0.0, %v853
        %855 = vmatmul.f32.gmra.mxu0 %v792
        %v856 = vpop.f32.mrf.mxu0
        %v857 = vadd.f32 0.0, %v856
        %858 = vmatmul.f32.gmra.mxu0 %v795
        %v859 = vpop.f32.mrf.mxu0
        %v860 = vadd.f32 0.0, %v859
        %861 = vmatmul.f32.gmra.mxu0 %v798
        %v862 = vpop.f32.mrf.mxu0
        %v863 = vadd.f32 0.0, %v862
        %864 = vmatmul.f32.gmra.mxu0 %v801
        %v865 = vpop.f32.mrf.mxu0
        %v866 = vadd.f32 0.0, %v865
        %867 = vmatmul.f32.gmra.mxu0 %v804
        %v868 = vpop.f32.mrf.mxu0
        %v869 = vadd.f32 0.0, %v868
        %870 = vmatmul.f32.gmra.mxu0 %v807
        %v871 = vpop.f32.mrf.mxu0
        %v872 = vadd.f32 0.0, %v871
        %873 = vmatmul.f32.gmra.mxu0 %v810
        %v874 = vpop.f32.mrf.mxu0
        %v875 = vadd.f32 0.0, %v874
        %876 = vmatmul.f32.gmra.mxu0 %v813
        %v877 = vpop.f32.mrf.mxu0
        %v878 = vadd.f32 0.0, %v877
        %879 = vmatmul.f32.gmra.mxu0 %v816
        %v880 = vpop.f32.mrf.mxu0
        %v881 = vadd.f32 0.0, %v880
        %882 = vmatmul.f32.gmra.mxu0 %v819
        %v883 = vpop.f32.mrf.mxu0
        %v884 = vadd.f32 0.0, %v883
        %885 = vmatmul.f32.gmra.mxu0 %v822
        %v886 = vpop.f32.mrf.mxu0
        %v887 = vadd.f32 0.0, %v886
        %888 = vmatmul.f32.gmra.mxu0 %v825
        %v889 = vpop.f32.mrf.mxu0
        %v890 = vadd.f32 0.0, %v889
        %891 = vmatmul.f32.gmra.mxu0 %v828
        %v892 = vpop.f32.mrf.mxu0
        %v893 = vadd.f32 0.0, %v892
        %894 = vdwg.mxu0
        %v895 = vmax.f32 %v598, %v848
        %v896 = vmax.f32 %v599, %v851
        %v897 = vmax.f32 %v600, %v854
        %v898 = vmax.f32 %v601, %v857
        %v899 = vmax.f32 %v602, %v860
        %v900 = vmax.f32 %v603, %v863
        %v901 = vmax.f32 %v604, %v866
        %v902 = vmax.f32 %v605, %v869
        %v903 = vmax.f32 %v606, %v872
        %v904 = vmax.f32 %v607, %v875
        %v905 = vmax.f32 %v608, %v878
        %v906 = vmax.f32 %v609, %v881
        %v907 = vmax.f32 %v610, %v884
        %v908 = vmax.f32 %v611, %v887
        %v909 = vmax.f32 %v612, %v890
        %v910 = vmax.f32 %v613, %v893
        %s911 = smul.f32 %s186, 4.0
        %s912 = smul.f32 %s184, 4.0
        %s913 = sadd.s32 %s178, 8
        %s914 = sld [smem:[#allocation2 + %s913]]
        %v915 = vstv %s911
        %v916 = vsub.f32 %v273, %v915
        %v917 = vsub.f32 %v274, %v915
        %v918 = vsub.f32 %v275, %v915
        %v919 = vsub.f32 %v276, %v915
        %v920 = vsub.f32 %v277, %v915
        %v921 = vsub.f32 %v278, %v915
        %v922 = vsub.f32 %v279, %v915
        %v923 = vsub.f32 %v280, %v915
        %v924 = vsub.f32 %v281, %v915
        %v925 = vsub.f32 %v282, %v915
        %v926 = vsub.f32 %v283, %v915
        %v927 = vsub.f32 %v284, %v915
        %v928 = vsub.f32 %v285, %v915
        %v929 = vsub.f32 %v286, %v915
        %v930 = vsub.f32 %v287, %v915
        %v931 = vsub.f32 %v288, %v915
        %v932 = vand.u32 2147483647, %v916
        %v933 = vand.u32 2147483647, %v917
        %v934 = vand.u32 2147483647, %v918
        %v935 = vand.u32 2147483647, %v919
        %v936 = vand.u32 2147483647, %v920
        %v937 = vand.u32 2147483647, %v921
        %v938 = vand.u32 2147483647, %v922
        %v939 = vand.u32 2147483647, %v923
        %v940 = vand.u32 2147483647, %v924
        %v941 = vand.u32 2147483647, %v925
        %v942 = vand.u32 2147483647, %v926
        %v943 = vand.u32 2147483647, %v927
        %v944 = vand.u32 2147483647, %v928
        %v945 = vand.u32 2147483647, %v929
        %v946 = vand.u32 2147483647, %v930
        %v947 = vand.u32 2147483647, %v931
        %v948 = vsub.f32 1.0, %v932
        %v949 = vsub.f32 1.0, %v933
        %v950 = vsub.f32 1.0, %v934
        %v951 = vsub.f32 1.0, %v935
        %v952 = vsub.f32 1.0, %v936
        %v953 = vsub.f32 1.0, %v937
        %v954 = vsub.f32 1.0, %v938
        %v955 = vsub.f32 1.0, %v939
        %v956 = vsub.f32 1.0, %v940
        %v957 = vsub.f32 1.0, %v941
        %v958 = vsub.f32 1.0, %v942
        %v959 = vsub.f32 1.0, %v943
        %v960 = vsub.f32 1.0, %v944
        %v961 = vsub.f32 1.0, %v945
        %v962 = vsub.f32 1.0, %v946
        %v963 = vsub.f32 1.0, %v947
        %v964 = vmax.f32 %v948, 0.0
        %v965 = vmax.f32 %v949, 0.0
        %v966 = vmax.f32 %v950, 0.0
        %v967 = vmax.f32 %v951, 0.0
        %v968 = vmax.f32 %v952, 0.0
        %v969 = vmax.f32 %v953, 0.0
        %v970 = vmax.f32 %v954, 0.0
        %v971 = vmax.f32 %v955, 0.0
        %v972 = vmax.f32 %v956, 0.0
        %v973 = vmax.f32 %v957, 0.0
        %v974 = vmax.f32 %v958, 0.0
        %v975 = vmax.f32 %v959, 0.0
        %v976 = vmax.f32 %v960, 0.0
        %v977 = vmax.f32 %v961, 0.0
        %v978 = vmax.f32 %v962, 0.0
        %v979 = vmax.f32 %v963, 0.0
        %v980 = vstv %s912
        %v981 = vsub.f32 %v370, %v980
        %v982 = vsub.f32 %v371, %v980
        %v983 = vsub.f32 %v372, %v980
        %v984 = vsub.f32 %v373, %v980
        %v985 = vsub.f32 %v374, %v980
        %v986 = vsub.f32 %v375, %v980
        %v987 = vsub.f32 %v376, %v980
        %v988 = vsub.f32 %v377, %v980
        %v989 = vsub.f32 %v378, %v980
        %v990 = vsub.f32 %v379, %v980
        %v991 = vsub.f32 %v380, %v980
        %v992 = vsub.f32 %v381, %v980
        %v993 = vsub.f32 %v382, %v980
        %v994 = vsub.f32 %v383, %v980
        %v995 = vsub.f32 %v384, %v980
        %v996 = vsub.f32 %v385, %v980
        %v997 = vand.u32 2147483647, %v981
        %v998 = vand.u32 2147483647, %v982
        %v999 = vand.u32 2147483647, %v983
        %v1000 = vand.u32 2147483647, %v984
        %v1001 = vand.u32 2147483647, %v985
        %v1002 = vand.u32 2147483647, %v986
        %v1003 = vand.u32 2147483647, %v987
        %v1004 = vand.u32 2147483647, %v988
        %v1005 = vand.u32 2147483647, %v989
        %v1006 = vand.u32 2147483647, %v990
        %v1007 = vand.u32 2147483647, %v991
        %v1008 = vand.u32 2147483647, %v992
        %v1009 = vand.u32 2147483647, %v993
        %v1010 = vand.u32 2147483647, %v994
        %v1011 = vand.u32 2147483647, %v995
        %v1012 = vand.u32 2147483647, %v996
        %v1013 = vsub.f32 1.0, %v997
        %v1014 = vsub.f32 1.0, %v998
        %v1015 = vsub.f32 1.0, %v999
        %v1016 = vsub.f32 1.0, %v1000
        %v1017 = vsub.f32 1.0, %v1001
        %v1018 = vsub.f32 1.0, %v1002
        %v1019 = vsub.f32 1.0, %v1003
        %v1020 = vsub.f32 1.0, %v1004
        %v1021 = vsub.f32 1.0, %v1005
        %v1022 = vsub.f32 1.0, %v1006
        %v1023 = vsub.f32 1.0, %v1007
        %v1024 = vsub.f32 1.0, %v1008
        %v1025 = vsub.f32 1.0, %v1009
        %v1026 = vsub.f32 1.0, %v1010
        %v1027 = vsub.f32 1.0, %v1011
        %v1028 = vsub.f32 1.0, %v1012
        %v1029 = vmax.f32 %v1013, 0.0
        %v1030 = vmax.f32 %v1014, 0.0
        %v1031 = vmax.f32 %v1015, 0.0
        %v1032 = vmax.f32 %v1016, 0.0
        %v1033 = vmax.f32 %v1017, 0.0
        %v1034 = vmax.f32 %v1018, 0.0
        %v1035 = vmax.f32 %v1019, 0.0
        %v1036 = vmax.f32 %v1020, 0.0
        %v1037 = vmax.f32 %v1021, 0.0
        %v1038 = vmax.f32 %v1022, 0.0
        %v1039 = vmax.f32 %v1023, 0.0
        %v1040 = vmax.f32 %v1024, 0.0
        %v1041 = vmax.f32 %v1025, 0.0
        %v1042 = vmax.f32 %v1026, 0.0
        %v1043 = vmax.f32 %v1027, 0.0
        %v1044 = vmax.f32 %v1028, 0.0
        %v1045 = vstv %s914
        %v1046 = vsub.f32 %v895, %v1045
        %v1047 = vsub.f32 %v896, %v1045
        %v1048 = vsub.f32 %v897, %v1045
        %v1049 = vsub.f32 %v898, %v1045
        %v1050 = vsub.f32 %v899, %v1045
        %v1051 = vsub.f32 %v900, %v1045
        %v1052 = vsub.f32 %v901, %v1045
        %v1053 = vsub.f32 %v902, %v1045
        %v1054 = vsub.f32 %v903, %v1045
        %v1055 = vsub.f32 %v904, %v1045
        %v1056 = vsub.f32 %v905, %v1045
        %v1057 = vsub.f32 %v906, %v1045
        %v1058 = vsub.f32 %v907, %v1045
        %v1059 = vsub.f32 %v908, %v1045
        %v1060 = vsub.f32 %v909, %v1045
        %v1061 = vsub.f32 %v910, %v1045
        %1062 = vmatpush.msra.mxu0 %v1061
        %1063 = vmatpush.msra.mxu0 %v1060
        %1064 = vmatpush.msra.mxu0 %v1059
        %1065 = vmatpush.msra.mxu0 %v1058
        %1066 = vmatpush.msra.mxu0 %v1057
        %1067 = vmatpush.msra.mxu0 %v1056
        %1068 = vmatpush.msra.mxu0 %v1055
        %1069 = vmatpush.msra.mxu0 %v1054
        %1070 = vmatpush.msra.mxu0 %v1053
        %1071 = vmatpush.msra.mxu0 %v1052
        %1072 = vmatpush.msra.mxu0 %v1051
        %1073 = vmatpush.msra.mxu0 %v1050
        %1074 = vmatpush.msra.mxu0 %v1049
        %1075 = vmatpush.msra.mxu0 %v1048
        %1076 = vmatpush.msra.mxu0 %v1047
        %1077 = vmatpush.msra.mxu0 %v1046
        %1078 = vmatmul.f32.gmra.mxu0 %v964
        %v1079 = vpop.f32.mrf.mxu0
        %v1080 = vadd.f32 0.0, %v1079
        %1081 = vmatmul.f32.gmra.mxu0 %v965
        %v1082 = vpop.f32.mrf.mxu0
        %v1083 = vadd.f32 0.0, %v1082
        %1084 = vmatmul.f32.gmra.mxu0 %v966
        %v1085 = vpop.f32.mrf.mxu0
        %v1086 = vadd.f32 0.0, %v1085
        %1087 = vmatmul.f32.gmra.mxu0 %v967
        %v1088 = vpop.f32.mrf.mxu0
        %v1089 = vadd.f32 0.0, %v1088
        %1090 = vmatmul.f32.gmra.mxu0 %v968
        %v1091 = vpop.f32.mrf.mxu0
        %v1092 = vadd.f32 0.0, %v1091
        %1093 = vmatmul.f32.gmra.mxu0 %v969
        %v1094 = vpop.f32.mrf.mxu0
        %v1095 = vadd.f32 0.0, %v1094
        %1096 = vmatmul.f32.gmra.mxu0 %v970
        %v1097 = vpop.f32.mrf.mxu0
        %v1098 = vadd.f32 0.0, %v1097
        %1099 = vmatmul.f32.gmra.mxu0 %v971
        %v1100 = vpop.f32.mrf.mxu0
        %v1101 = vadd.f32 0.0, %v1100
        %1102 = vmatmul.f32.gmra.mxu0 %v972
        %v1103 = vpop.f32.mrf.mxu0
        %v1104 = vadd.f32 0.0, %v1103
        %1105 = vmatmul.f32.gmra.mxu0 %v973
        %v1106 = vpop.f32.mrf.mxu0
        %v1107 = vadd.f32 0.0, %v1106
        %1108 = vmatmul.f32.gmra.mxu0 %v974
        %v1109 = vpop.f32.mrf.mxu0
        %v1110 = vadd.f32 0.0, %v1109
        %1111 = vmatmul.f32.gmra.mxu0 %v975
        %v1112 = vpop.f32.mrf.mxu0
        %v1113 = vadd.f32 0.0, %v1112
        %1114 = vmatmul.f32.gmra.mxu0 %v976
        %v1115 = vpop.f32.mrf.mxu0
        %v1116 = vadd.f32 0.0, %v1115
        %1117 = vmatmul.f32.gmra.mxu0 %v977
        %v1118 = vpop.f32.mrf.mxu0
        %v1119 = vadd.f32 0.0, %v1118
        %1120 = vmatmul.f32.gmra.mxu0 %v978
        %v1121 = vpop.f32.mrf.mxu0
        %v1122 = vadd.f32 0.0, %v1121
        %1123 = vmatmul.f32.gmra.mxu0 %v979
        %v1124 = vpop.f32.mrf.mxu0
        %v1125 = vadd.f32 0.0, %v1124
        %1126 = vdwg.mxu0
        %1127 = vmatpush.msra.mxu0 %v1044
        %1128 = vmatpush.msra.mxu0 %v1043
        %1129 = vmatpush.msra.mxu0 %v1042
        %1130 = vmatpush.msra.mxu0 %v1041
        %1131 = vmatpush.msra.mxu0 %v1040
        %1132 = vmatpush.msra.mxu0 %v1039
        %1133 = vmatpush.msra.mxu0 %v1038
        %1134 = vmatpush.msra.mxu0 %v1037
        %1135 = vmatpush.msra.mxu0 %v1036
        %1136 = vmatpush.msra.mxu0 %v1035
        %1137 = vmatpush.msra.mxu0 %v1034
        %1138 = vmatpush.msra.mxu0 %v1033
        %1139 = vmatpush.msra.mxu0 %v1032
        %1140 = vmatpush.msra.mxu0 %v1031
        %1141 = vmatpush.msra.mxu0 %v1030
        %1142 = vmatpush.msra.mxu0 %v1029
        %1143 = vmatmul.f32.gmra.mxu0 %v1080
        %v1144 = vpop.f32.mrf.mxu0
        %v1145 = vadd.f32 0.0, %v1144
        %1146 = vmatmul.f32.gmra.mxu0 %v1083
        %v1147 = vpop.f32.mrf.mxu0
        %v1148 = vadd.f32 0.0, %v1147
        %1149 = vmatmul.f32.gmra.mxu0 %v1086
        %v1150 = vpop.f32.mrf.mxu0
        %v1151 = vadd.f32 0.0, %v1150
        %1152 = vmatmul.f32.gmra.mxu0 %v1089
        %v1153 = vpop.f32.mrf.mxu0
        %v1154 = vadd.f32 0.0, %v1153
        %1155 = vmatmul.f32.gmra.mxu0 %v1092
        %v1156 = vpop.f32.mrf.mxu0
        %v1157 = vadd.f32 0.0, %v1156
        %1158 = vmatmul.f32.gmra.mxu0 %v1095
        %v1159 = vpop.f32.mrf.mxu0
        %v1160 = vadd.f32 0.0, %v1159
        %1161 = vmatmul.f32.gmra.mxu0 %v1098
        %v1162 = vpop.f32.mrf.mxu0
        %v1163 = vadd.f32 0.0, %v1162
        %1164 = vmatmul.f32.gmra.mxu0 %v1101
        %v1165 = vpop.f32.mrf.mxu0
        %v1166 = vadd.f32 0.0, %v1165
        %1167 = vmatmul.f32.gmra.mxu0 %v1104
        %v1168 = vpop.f32.mrf.mxu0
        %v1169 = vadd.f32 0.0, %v1168
        %1170 = vmatmul.f32.gmra.mxu0 %v1107
        %v1171 = vpop.f32.mrf.mxu0
        %v1172 = vadd.f32 0.0, %v1171
        %1173 = vmatmul.f32.gmra.mxu0 %v1110
        %v1174 = vpop.f32.mrf.mxu0
        %v1175 = vadd.f32 0.0, %v1174
        %1176 = vmatmul.f32.gmra.mxu0 %v1113
        %v1177 = vpop.f32.mrf.mxu0
        %v1178 = vadd.f32 0.0, %v1177
        %1179 = vmatmul.f32.gmra.mxu0 %v1116
        %v1180 = vpop.f32.mrf.mxu0
        %v1181 = vadd.f32 0.0, %v1180
        %1182 = vmatmul.f32.gmra.mxu0 %v1119
        %v1183 = vpop.f32.mrf.mxu0
        %v1184 = vadd.f32 0.0, %v1183
        %1185 = vmatmul.f32.gmra.mxu0 %v1122
        %v1186 = vpop.f32.mrf.mxu0
        %v1187 = vadd.f32 0.0, %v1186
        %1188 = vmatmul.f32.gmra.mxu0 %v1125
        %v1189 = vpop.f32.mrf.mxu0
        %v1190 = vadd.f32 0.0, %v1189
        %1191 = vdwg.mxu0
        %v1192 = vmax.f32 %v895, %v1145
        %v1193 = vmax.f32 %v896, %v1148
        %v1194 = vmax.f32 %v897, %v1151
        %v1195 = vmax.f32 %v898, %v1154
        %v1196 = vmax.f32 %v899, %v1157
        %v1197 = vmax.f32 %v900, %v1160
        %v1198 = vmax.f32 %v901, %v1163
        %v1199 = vmax.f32 %v902, %v1166
        %v1200 = vmax.f32 %v903, %v1169
        %v1201 = vmax.f32 %v904, %v1172
        %v1202 = vmax.f32 %v905, %v1175
        %v1203 = vmax.f32 %v906, %v1178
        %v1204 = vmax.f32 %v907, %v1181
        %v1205 = vmax.f32 %v908, %v1184
        %v1206 = vmax.f32 %v909, %v1187
        %v1207 = vmax.f32 %v910, %v1190
        %s1208 = smul.f32 %s186, 8.0
        %s1209 = smul.f32 %s184, 8.0
        %s1210 = sadd.s32 %s178, 11
        %s1211 = sld [smem:[#allocation2 + %s1210]]
        %v1212 = vstv %s1208
        %v1213 = vsub.f32 %v273, %v1212
        %v1214 = vsub.f32 %v274, %v1212
        %v1215 = vsub.f32 %v275, %v1212
        %v1216 = vsub.f32 %v276, %v1212
        %v1217 = vsub.f32 %v277, %v1212
        %v1218 = vsub.f32 %v278, %v1212
        %v1219 = vsub.f32 %v279, %v1212
        %v1220 = vsub.f32 %v280, %v1212
        %v1221 = vsub.f32 %v281, %v1212
        %v1222 = vsub.f32 %v282, %v1212
        %v1223 = vsub.f32 %v283, %v1212
        %v1224 = vsub.f32 %v284, %v1212
        %v1225 = vsub.f32 %v285, %v1212
        %v1226 = vsub.f32 %v286, %v1212
        %v1227 = vsub.f32 %v287, %v1212
        %v1228 = vsub.f32 %v288, %v1212
        %v1229 = vand.u32 2147483647, %v1213
        %v1230 = vand.u32 2147483647, %v1214
        %v1231 = vand.u32 2147483647, %v1215
        %v1232 = vand.u32 2147483647, %v1216
        %v1233 = vand.u32 2147483647, %v1217
        %v1234 = vand.u32 2147483647, %v1218
        %v1235 = vand.u32 2147483647, %v1219
        %v1236 = vand.u32 2147483647, %v1220
        %v1237 = vand.u32 2147483647, %v1221
        %v1238 = vand.u32 2147483647, %v1222
        %v1239 = vand.u32 2147483647, %v1223
        %v1240 = vand.u32 2147483647, %v1224
        %v1241 = vand.u32 2147483647, %v1225
        %v1242 = vand.u32 2147483647, %v1226
        %v1243 = vand.u32 2147483647, %v1227
        %v1244 = vand.u32 2147483647, %v1228
        %v1245 = vsub.f32 1.0, %v1229
        %v1246 = vsub.f32 1.0, %v1230
        %v1247 = vsub.f32 1.0, %v1231
        %v1248 = vsub.f32 1.0, %v1232
        %v1249 = vsub.f32 1.0, %v1233
        %v1250 = vsub.f32 1.0, %v1234
        %v1251 = vsub.f32 1.0, %v1235
        %v1252 = vsub.f32 1.0, %v1236
        %v1253 = vsub.f32 1.0, %v1237
        %v1254 = vsub.f32 1.0, %v1238
        %v1255 = vsub.f32 1.0, %v1239
        %v1256 = vsub.f32 1.0, %v1240
        %v1257 = vsub.f32 1.0, %v1241
        %v1258 = vsub.f32 1.0, %v1242
        %v1259 = vsub.f32 1.0, %v1243
        %v1260 = vsub.f32 1.0, %v1244
        %v1261 = vmax.f32 %v1245, 0.0
        %v1262 = vmax.f32 %v1246, 0.0
        %v1263 = vmax.f32 %v1247, 0.0
        %v1264 = vmax.f32 %v1248, 0.0
        %v1265 = vmax.f32 %v1249, 0.0
        %v1266 = vmax.f32 %v1250, 0.0
        %v1267 = vmax.f32 %v1251, 0.0
        %v1268 = vmax.f32 %v1252, 0.0
        %v1269 = vmax.f32 %v1253, 0.0
        %v1270 = vmax.f32 %v1254, 0.0
        %v1271 = vmax.f32 %v1255, 0.0
        %v1272 = vmax.f32 %v1256, 0.0
        %v1273 = vmax.f32 %v1257, 0.0
        %v1274 = vmax.f32 %v1258, 0.0
        %v1275 = vmax.f32 %v1259, 0.0
        %v1276 = vmax.f32 %v1260, 0.0
        %v1277 = vstv %s1209
        %v1278 = vsub.f32 %v370, %v1277
        %v1279 = vsub.f32 %v371, %v1277
        %v1280 = vsub.f32 %v372, %v1277
        %v1281 = vsub.f32 %v373, %v1277
        %v1282 = vsub.f32 %v374, %v1277
        %v1283 = vsub.f32 %v375, %v1277
        %v1284 = vsub.f32 %v376, %v1277
        %v1285 = vsub.f32 %v377, %v1277
        %v1286 = vsub.f32 %v378, %v1277
        %v1287 = vsub.f32 %v379, %v1277
        %v1288 = vsub.f32 %v380, %v1277
        %v1289 = vsub.f32 %v381, %v1277
        %v1290 = vsub.f32 %v382, %v1277
        %v1291 = vsub.f32 %v383, %v1277
        %v1292 = vsub.f32 %v384, %v1277
        %v1293 = vsub.f32 %v385, %v1277
        %v1294 = vand.u32 2147483647, %v1278
        %v1295 = vand.u32 2147483647, %v1279
        %v1296 = vand.u32 2147483647, %v1280
        %v1297 = vand.u32 2147483647, %v1281
        %v1298 = vand.u32 2147483647, %v1282
        %v1299 = vand.u32 2147483647, %v1283
        %v1300 = vand.u32 2147483647, %v1284
        %v1301 = vand.u32 2147483647, %v1285
        %v1302 = vand.u32 2147483647, %v1286
        %v1303 = vand.u32 2147483647, %v1287
        %v1304 = vand.u32 2147483647, %v1288
        %v1305 = vand.u32 2147483647, %v1289
        %v1306 = vand.u32 2147483647, %v1290
        %v1307 = vand.u32 2147483647, %v1291
        %v1308 = vand.u32 2147483647, %v1292
        %v1309 = vand.u32 2147483647, %v1293
        %v1310 = vsub.f32 1.0, %v1294
        %v1311 = vsub.f32 1.0, %v1295
        %v1312 = vsub.f32 1.0, %v1296
        %v1313 = vsub.f32 1.0, %v1297
        %v1314 = vsub.f32 1.0, %v1298
        %v1315 = vsub.f32 1.0, %v1299
        %v1316 = vsub.f32 1.0, %v1300
        %v1317 = vsub.f32 1.0, %v1301
        %v1318 = vsub.f32 1.0, %v1302
        %v1319 = vsub.f32 1.0, %v1303
        %v1320 = vsub.f32 1.0, %v1304
        %v1321 = vsub.f32 1.0, %v1305
        %v1322 = vsub.f32 1.0, %v1306
        %v1323 = vsub.f32 1.0, %v1307
        %v1324 = vsub.f32 1.0, %v1308
        %v1325 = vsub.f32 1.0, %v1309
        %v1326 = vmax.f32 %v1310, 0.0
        %v1327 = vmax.f32 %v1311, 0.0
        %v1328 = vmax.f32 %v1312, 0.0
        %v1329 = vmax.f32 %v1313, 0.0
        %v1330 = vmax.f32 %v1314, 0.0
        %v1331 = vmax.f32 %v1315, 0.0
        %v1332 = vmax.f32 %v1316, 0.0
        %v1333 = vmax.f32 %v1317, 0.0
        %v1334 = vmax.f32 %v1318, 0.0
        %v1335 = vmax.f32 %v1319, 0.0
        %v1336 = vmax.f32 %v1320, 0.0
        %v1337 = vmax.f32 %v1321, 0.0
        %v1338 = vmax.f32 %v1322, 0.0
        %v1339 = vmax.f32 %v1323, 0.0
        %v1340 = vmax.f32 %v1324, 0.0
        %v1341 = vmax.f32 %v1325, 0.0
        %v1342 = vstv %s1211
        %v1343 = vsub.f32 %v1192, %v1342
        %v1344 = vsub.f32 %v1193, %v1342
        %v1345 = vsub.f32 %v1194, %v1342
        %v1346 = vsub.f32 %v1195, %v1342
        %v1347 = vsub.f32 %v1196, %v1342
        %v1348 = vsub.f32 %v1197, %v1342
        %v1349 = vsub.f32 %v1198, %v1342
        %v1350 = vsub.f32 %v1199, %v1342
        %v1351 = vsub.f32 %v1200, %v1342
        %v1352 = vsub.f32 %v1201, %v1342
        %v1353 = vsub.f32 %v1202, %v1342
        %v1354 = vsub.f32 %v1203, %v1342
        %v1355 = vsub.f32 %v1204, %v1342
        %v1356 = vsub.f32 %v1205, %v1342
        %v1357 = vsub.f32 %v1206, %v1342
        %v1358 = vsub.f32 %v1207, %v1342
        %1359 = vmatpush.msra.mxu0 %v1358
        %1360 = vmatpush.msra.mxu0 %v1357
        %1361 = vmatpush.msra.mxu0 %v1356
        %1362 = vmatpush.msra.mxu0 %v1355
        %1363 = vmatpush.msra.mxu0 %v1354
        %1364 = vmatpush.msra.mxu0 %v1353
        %1365 = vmatpush.msra.mxu0 %v1352
        %1366 = vmatpush.msra.mxu0 %v1351
        %1367 = vmatpush.msra.mxu0 %v1350
        %1368 = vmatpush.msra.mxu0 %v1349
        %1369 = vmatpush.msra.mxu0 %v1348
        %1370 = vmatpush.msra.mxu0 %v1347
        %1371 = vmatpush.msra.mxu0 %v1346
        %1372 = vmatpush.msra.mxu0 %v1345
        %1373 = vmatpush.msra.mxu0 %v1344
        %1374 = vmatpush.msra.mxu0 %v1343
        %1375 = vmatmul.f32.gmra.mxu0 %v1261
        %v1376 = vpop.f32.mrf.mxu0
        %v1377 = vadd.f32 0.0, %v1376
        %1378 = vmatmul.f32.gmra.mxu0 %v1262
        %v1379 = vpop.f32.mrf.mxu0
        %v1380 = vadd.f32 0.0, %v1379
        %1381 = vmatmul.f32.gmra.mxu0 %v1263
        %v1382 = vpop.f32.mrf.mxu0
        %v1383 = vadd.f32 0.0, %v1382
        %1384 = vmatmul.f32.gmra.mxu0 %v1264
        %v1385 = vpop.f32.mrf.mxu0
        %v1386 = vadd.f32 0.0, %v1385
        %1387 = vmatmul.f32.gmra.mxu0 %v1265
        %v1388 = vpop.f32.mrf.mxu0
        %v1389 = vadd.f32 0.0, %v1388
        %1390 = vmatmul.f32.gmra.mxu0 %v1266
        %v1391 = vpop.f32.mrf.mxu0
        %v1392 = vadd.f32 0.0, %v1391
        %1393 = vmatmul.f32.gmra.mxu0 %v1267
        %v1394 = vpop.f32.mrf.mxu0
        %v1395 = vadd.f32 0.0, %v1394
        %1396 = vmatmul.f32.gmra.mxu0 %v1268
        %v1397 = vpop.f32.mrf.mxu0
        %v1398 = vadd.f32 0.0, %v1397
        %1399 = vmatmul.f32.gmra.mxu0 %v1269
        %v1400 = vpop.f32.mrf.mxu0
        %v1401 = vadd.f32 0.0, %v1400
        %1402 = vmatmul.f32.gmra.mxu0 %v1270
        %v1403 = vpop.f32.mrf.mxu0
        %v1404 = vadd.f32 0.0, %v1403
        %1405 = vmatmul.f32.gmra.mxu0 %v1271
        %v1406 = vpop.f32.mrf.mxu0
        %v1407 = vadd.f32 0.0, %v1406
        %1408 = vmatmul.f32.gmra.mxu0 %v1272
        %v1409 = vpop.f32.mrf.mxu0
        %v1410 = vadd.f32 0.0, %v1409
        %1411 = vmatmul.f32.gmra.mxu0 %v1273
        %v1412 = vpop.f32.mrf.mxu0
        %v1413 = vadd.f32 0.0, %v1412
        %1414 = vmatmul.f32.gmra.mxu0 %v1274
        %v1415 = vpop.f32.mrf.mxu0
        %v1416 = vadd.f32 0.0, %v1415
        %1417 = vmatmul.f32.gmra.mxu0 %v1275
        %v1418 = vpop.f32.mrf.mxu0
        %v1419 = vadd.f32 0.0, %v1418
        %1420 = vmatmul.f32.gmra.mxu0 %v1276
        %v1421 = vpop.f32.mrf.mxu0
        %v1422 = vadd.f32 0.0, %v1421
        %1423 = vdwg.mxu0
        %1424 = vmatpush.msra.mxu0 %v1341
        %1425 = vmatpush.msra.mxu0 %v1340
        %1426 = vmatpush.msra.mxu0 %v1339
        %1427 = vmatpush.msra.mxu0 %v1338
        %1428 = vmatpush.msra.mxu0 %v1337
        %1429 = vmatpush.msra.mxu0 %v1336
        %1430 = vmatpush.msra.mxu0 %v1335
        %1431 = vmatpush.msra.mxu0 %v1334
        %1432 = vmatpush.msra.mxu0 %v1333
        %1433 = vmatpush.msra.mxu0 %v1332
        %1434 = vmatpush.msra.mxu0 %v1331
        %1435 = vmatpush.msra.mxu0 %v1330
        %1436 = vmatpush.msra.mxu0 %v1329
        %1437 = vmatpush.msra.mxu0 %v1328
        %1438 = vmatpush.msra.mxu0 %v1327
        %1439 = vmatpush.msra.mxu0 %v1326
        %1440 = vmatmul.f32.gmra.mxu0 %v1377
        %v1441 = vpop.f32.mrf.mxu0
        %v1442 = vadd.f32 0.0, %v1441
        %1443 = vmatmul.f32.gmra.mxu0 %v1380
        %v1444 = vpop.f32.mrf.mxu0
        %v1445 = vadd.f32 0.0, %v1444
        %1446 = vmatmul.f32.gmra.mxu0 %v1383
        %v1447 = vpop.f32.mrf.mxu0
        %v1448 = vadd.f32 0.0, %v1447
        %1449 = vmatmul.f32.gmra.mxu0 %v1386
        %v1450 = vpop.f32.mrf.mxu0
        %v1451 = vadd.f32 0.0, %v1450
        %1452 = vmatmul.f32.gmra.mxu0 %v1389
        %v1453 = vpop.f32.mrf.mxu0
        %v1454 = vadd.f32 0.0, %v1453
        %1455 = vmatmul.f32.gmra.mxu0 %v1392
        %v1456 = vpop.f32.mrf.mxu0
        %v1457 = vadd.f32 0.0, %v1456
        %1458 = vmatmul.f32.gmra.mxu0 %v1395
        %v1459 = vpop.f32.mrf.mxu0
        %v1460 = vadd.f32 0.0, %v1459
        %1461 = vmatmul.f32.gmra.mxu0 %v1398
        %v1462 = vpop.f32.mrf.mxu0
        %v1463 = vadd.f32 0.0, %v1462
        %1464 = vmatmul.f32.gmra.mxu0 %v1401
        %v1465 = vpop.f32.mrf.mxu0
        %v1466 = vadd.f32 0.0, %v1465
        %1467 = vmatmul.f32.gmra.mxu0 %v1404
        %v1468 = vpop.f32.mrf.mxu0
        %v1469 = vadd.f32 0.0, %v1468
        %1470 = vmatmul.f32.gmra.mxu0 %v1407
        %v1471 = vpop.f32.mrf.mxu0
        %v1472 = vadd.f32 0.0, %v1471
        %1473 = vmatmul.f32.gmra.mxu0 %v1410
        %v1474 = vpop.f32.mrf.mxu0
        %v1475 = vadd.f32 0.0, %v1474
        %1476 = vmatmul.f32.gmra.mxu0 %v1413
        %v1477 = vpop.f32.mrf.mxu0
        %v1478 = vadd.f32 0.0, %v1477
        %1479 = vmatmul.f32.gmra.mxu0 %v1416
        %v1480 = vpop.f32.mrf.mxu0
        %v1481 = vadd.f32 0.0, %v1480
        %1482 = vmatmul.f32.gmra.mxu0 %v1419
        %v1483 = vpop.f32.mrf.mxu0
        %v1484 = vadd.f32 0.0, %v1483
        %1485 = vmatmul.f32.gmra.mxu0 %v1422
        %v1486 = vpop.f32.mrf.mxu0
        %v1487 = vadd.f32 0.0, %v1486
        %1488 = vdwg.mxu0
        %v1489 = vmax.f32 %v1192, %v1442
        %v1490 = vmax.f32 %v1193, %v1445
        %v1491 = vmax.f32 %v1194, %v1448
        %v1492 = vmax.f32 %v1195, %v1451
        %v1493 = vmax.f32 %v1196, %v1454
        %v1494 = vmax.f32 %v1197, %v1457
        %v1495 = vmax.f32 %v1198, %v1460
        %v1496 = vmax.f32 %v1199, %v1463
        %v1497 = vmax.f32 %v1200, %v1466
        %v1498 = vmax.f32 %v1201, %v1469
        %v1499 = vmax.f32 %v1202, %v1472
        %v1500 = vmax.f32 %v1203, %v1475
        %v1501 = vmax.f32 %v1204, %v1478
        %v1502 = vmax.f32 %v1205, %v1481
        %v1503 = vmax.f32 %v1206, %v1484
        %v1504 = vmax.f32 %v1207, %v1487
        %s1505 = smul.f32 %s186, 16.0
        %s1506 = smul.f32 %s184, 16.0
        %s1507 = sadd.s32 %s178, 14
        %s1508 = sld [smem:[#allocation2 + %s1507]]
        %v1509 = vstv %s1505
        %v1510 = vsub.f32 %v273, %v1509
        %v1511 = vsub.f32 %v274, %v1509
        %v1512 = vsub.f32 %v275, %v1509
        %v1513 = vsub.f32 %v276, %v1509
        %v1514 = vsub.f32 %v277, %v1509
        %v1515 = vsub.f32 %v278, %v1509
        %v1516 = vsub.f32 %v279, %v1509
        %v1517 = vsub.f32 %v280, %v1509
        %v1518 = vsub.f32 %v281, %v1509
        %v1519 = vsub.f32 %v282, %v1509
        %v1520 = vsub.f32 %v283, %v1509
        %v1521 = vsub.f32 %v284, %v1509
        %v1522 = vsub.f32 %v285, %v1509
        %v1523 = vsub.f32 %v286, %v1509
        %v1524 = vsub.f32 %v287, %v1509
        %v1525 = vsub.f32 %v288, %v1509
        %v1526 = vand.u32 2147483647, %v1510
        %v1527 = vand.u32 2147483647, %v1511
        %v1528 = vand.u32 2147483647, %v1512
        %v1529 = vand.u32 2147483647, %v1513
        %v1530 = vand.u32 2147483647, %v1514
        %v1531 = vand.u32 2147483647, %v1515
        %v1532 = vand.u32 2147483647, %v1516
        %v1533 = vand.u32 2147483647, %v1517
        %v1534 = vand.u32 2147483647, %v1518
        %v1535 = vand.u32 2147483647, %v1519
        %v1536 = vand.u32 2147483647, %v1520
        %v1537 = vand.u32 2147483647, %v1521
        %v1538 = vand.u32 2147483647, %v1522
        %v1539 = vand.u32 2147483647, %v1523
        %v1540 = vand.u32 2147483647, %v1524
        %v1541 = vand.u32 2147483647, %v1525
        %v1542 = vsub.f32 1.0, %v1526
        %v1543 = vsub.f32 1.0, %v1527
        %v1544 = vsub.f32 1.0, %v1528
        %v1545 = vsub.f32 1.0, %v1529
        %v1546 = vsub.f32 1.0, %v1530
        %v1547 = vsub.f32 1.0, %v1531
        %v1548 = vsub.f32 1.0, %v1532
        %v1549 = vsub.f32 1.0, %v1533
        %v1550 = vsub.f32 1.0, %v1534
        %v1551 = vsub.f32 1.0, %v1535
        %v1552 = vsub.f32 1.0, %v1536
        %v1553 = vsub.f32 1.0, %v1537
        %v1554 = vsub.f32 1.0, %v1538
        %v1555 = vsub.f32 1.0, %v1539
        %v1556 = vsub.f32 1.0, %v1540
        %v1557 = vsub.f32 1.0, %v1541
        %v1558 = vmax.f32 %v1542, 0.0
        %v1559 = vmax.f32 %v1543, 0.0
        %v1560 = vmax.f32 %v1544, 0.0
        %v1561 = vmax.f32 %v1545, 0.0
        %v1562 = vmax.f32 %v1546, 0.0
        %v1563 = vmax.f32 %v1547, 0.0
        %v1564 = vmax.f32 %v1548, 0.0
        %v1565 = vmax.f32 %v1549, 0.0
        %v1566 = vmax.f32 %v1550, 0.0
        %v1567 = vmax.f32 %v1551, 0.0
        %v1568 = vmax.f32 %v1552, 0.0
        %v1569 = vmax.f32 %v1553, 0.0
        %v1570 = vmax.f32 %v1554, 0.0
        %v1571 = vmax.f32 %v1555, 0.0
        %v1572 = vmax.f32 %v1556, 0.0
        %v1573 = vmax.f32 %v1557, 0.0
        %v1574 = vstv %s1506
        %v1575 = vsub.f32 %v370, %v1574
        %v1576 = vsub.f32 %v371, %v1574
        %v1577 = vsub.f32 %v372, %v1574
        %v1578 = vsub.f32 %v373, %v1574
        %v1579 = vsub.f32 %v374, %v1574
        %v1580 = vsub.f32 %v375, %v1574
        %v1581 = vsub.f32 %v376, %v1574
        %v1582 = vsub.f32 %v377, %v1574
        %v1583 = vsub.f32 %v378, %v1574
        %v1584 = vsub.f32 %v379, %v1574
        %v1585 = vsub.f32 %v380, %v1574
        %v1586 = vsub.f32 %v381, %v1574
        %v1587 = vsub.f32 %v382, %v1574
        %v1588 = vsub.f32 %v383, %v1574
        %v1589 = vsub.f32 %v384, %v1574
        %v1590 = vsub.f32 %v385, %v1574
        %v1591 = vand.u32 2147483647, %v1575
        %v1592 = vand.u32 2147483647, %v1576
        %v1593 = vand.u32 2147483647, %v1577
        %v1594 = vand.u32 2147483647, %v1578
        %v1595 = vand.u32 2147483647, %v1579
        %v1596 = vand.u32 2147483647, %v1580
        %v1597 = vand.u32 2147483647, %v1581
        %v1598 = vand.u32 2147483647, %v1582
        %v1599 = vand.u32 2147483647, %v1583
        %v1600 = vand.u32 2147483647, %v1584
        %v1601 = vand.u32 2147483647, %v1585
        %v1602 = vand.u32 2147483647, %v1586
        %v1603 = vand.u32 2147483647, %v1587
        %v1604 = vand.u32 2147483647, %v1588
        %v1605 = vand.u32 2147483647, %v1589
        %v1606 = vand.u32 2147483647, %v1590
        %v1607 = vsub.f32 1.0, %v1591
        %v1608 = vsub.f32 1.0, %v1592
        %v1609 = vsub.f32 1.0, %v1593
        %v1610 = vsub.f32 1.0, %v1594
        %v1611 = vsub.f32 1.0, %v1595
        %v1612 = vsub.f32 1.0, %v1596
        %v1613 = vsub.f32 1.0, %v1597
        %v1614 = vsub.f32 1.0, %v1598
        %v1615 = vsub.f32 1.0, %v1599
        %v1616 = vsub.f32 1.0, %v1600
        %v1617 = vsub.f32 1.0, %v1601
        %v1618 = vsub.f32 1.0, %v1602
        %v1619 = vsub.f32 1.0, %v1603
        %v1620 = vsub.f32 1.0, %v1604
        %v1621 = vsub.f32 1.0, %v1605
        %v1622 = vsub.f32 1.0, %v1606
        %v1623 = vmax.f32 %v1607, 0.0
        %v1624 = vmax.f32 %v1608, 0.0
        %v1625 = vmax.f32 %v1609, 0.0
        %v1626 = vmax.f32 %v1610, 0.0
        %v1627 = vmax.f32 %v1611, 0.0
        %v1628 = vmax.f32 %v1612, 0.0
        %v1629 = vmax.f32 %v1613, 0.0
        %v1630 = vmax.f32 %v1614, 0.0
        %v1631 = vmax.f32 %v1615, 0.0
        %v1632 = vmax.f32 %v1616, 0.0
        %v1633 = vmax.f32 %v1617, 0.0
        %v1634 = vmax.f32 %v1618, 0.0
        %v1635 = vmax.f32 %v1619, 0.0
        %v1636 = vmax.f32 %v1620, 0.0
        %v1637 = vmax.f32 %v1621, 0.0
        %v1638 = vmax.f32 %v1622, 0.0
        %v1639 = vstv %s1508
        %v1640 = vsub.f32 %v1489, %v1639
        %v1641 = vsub.f32 %v1490, %v1639
        %v1642 = vsub.f32 %v1491, %v1639
        %v1643 = vsub.f32 %v1492, %v1639
        %v1644 = vsub.f32 %v1493, %v1639
        %v1645 = vsub.f32 %v1494, %v1639
        %v1646 = vsub.f32 %v1495, %v1639
        %v1647 = vsub.f32 %v1496, %v1639
        %v1648 = vsub.f32 %v1497, %v1639
        %v1649 = vsub.f32 %v1498, %v1639
        %v1650 = vsub.f32 %v1499, %v1639
        %v1651 = vsub.f32 %v1500, %v1639
        %v1652 = vsub.f32 %v1501, %v1639
        %v1653 = vsub.f32 %v1502, %v1639
        %v1654 = vsub.f32 %v1503, %v1639
        %v1655 = vsub.f32 %v1504, %v1639
        %1656 = vmatpush.msra.mxu0 %v1655
        %1657 = vmatpush.msra.mxu0 %v1654
        %1658 = vmatpush.msra.mxu0 %v1653
        %1659 = vmatpush.msra.mxu0 %v1652
        %1660 = vmatpush.msra.mxu0 %v1651
        %1661 = vmatpush.msra.mxu0 %v1650
        %1662 = vmatpush.msra.mxu0 %v1649
        %1663 = vmatpush.msra.mxu0 %v1648
        %1664 = vmatpush.msra.mxu0 %v1647
        %1665 = vmatpush.msra.mxu0 %v1646
        %1666 = vmatpush.msra.mxu0 %v1645
        %1667 = vmatpush.msra.mxu0 %v1644
        %1668 = vmatpush.msra.mxu0 %v1643
        %1669 = vmatpush.msra.mxu0 %v1642
        %1670 = vmatpush.msra.mxu0 %v1641
        %1671 = vmatpush.msra.mxu0 %v1640
        %1672 = vmatmul.f32.gmra.mxu0 %v1558
        %v1673 = vpop.f32.mrf.mxu0
        %v1674 = vadd.f32 0.0, %v1673
        %1675 = vmatmul.f32.gmra.mxu0 %v1559
        %v1676 = vpop.f32.mrf.mxu0
        %v1677 = vadd.f32 0.0, %v1676
        %1678 = vmatmul.f32.gmra.mxu0 %v1560
        %v1679 = vpop.f32.mrf.mxu0
        %v1680 = vadd.f32 0.0, %v1679
        %1681 = vmatmul.f32.gmra.mxu0 %v1561
        %v1682 = vpop.f32.mrf.mxu0
        %v1683 = vadd.f32 0.0, %v1682
        %1684 = vmatmul.f32.gmra.mxu0 %v1562
        %v1685 = vpop.f32.mrf.mxu0
        %v1686 = vadd.f32 0.0, %v1685
        %1687 = vmatmul.f32.gmra.mxu0 %v1563
        %v1688 = vpop.f32.mrf.mxu0
        %v1689 = vadd.f32 0.0, %v1688
        %1690 = vmatmul.f32.gmra.mxu0 %v1564
        %v1691 = vpop.f32.mrf.mxu0
        %v1692 = vadd.f32 0.0, %v1691
        %1693 = vmatmul.f32.gmra.mxu0 %v1565
        %v1694 = vpop.f32.mrf.mxu0
        %v1695 = vadd.f32 0.0, %v1694
        %1696 = vmatmul.f32.gmra.mxu0 %v1566
        %v1697 = vpop.f32.mrf.mxu0
        %v1698 = vadd.f32 0.0, %v1697
        %1699 = vmatmul.f32.gmra.mxu0 %v1567
        %v1700 = vpop.f32.mrf.mxu0
        %v1701 = vadd.f32 0.0, %v1700
        %1702 = vmatmul.f32.gmra.mxu0 %v1568
        %v1703 = vpop.f32.mrf.mxu0
        %v1704 = vadd.f32 0.0, %v1703
        %1705 = vmatmul.f32.gmra.mxu0 %v1569
        %v1706 = vpop.f32.mrf.mxu0
        %v1707 = vadd.f32 0.0, %v1706
        %1708 = vmatmul.f32.gmra.mxu0 %v1570
        %v1709 = vpop.f32.mrf.mxu0
        %v1710 = vadd.f32 0.0, %v1709
        %1711 = vmatmul.f32.gmra.mxu0 %v1571
        %v1712 = vpop.f32.mrf.mxu0
        %v1713 = vadd.f32 0.0, %v1712
        %1714 = vmatmul.f32.gmra.mxu0 %v1572
        %v1715 = vpop.f32.mrf.mxu0
        %v1716 = vadd.f32 0.0, %v1715
        %1717 = vmatmul.f32.gmra.mxu0 %v1573
        %v1718 = vpop.f32.mrf.mxu0
        %v1719 = vadd.f32 0.0, %v1718
        %1720 = vdwg.mxu0
        %1721 = vmatpush.msra.mxu0 %v1638
        %1722 = vmatpush.msra.mxu0 %v1637
        %1723 = vmatpush.msra.mxu0 %v1636
        %1724 = vmatpush.msra.mxu0 %v1635
        %1725 = vmatpush.msra.mxu0 %v1634
        %1726 = vmatpush.msra.mxu0 %v1633
        %1727 = vmatpush.msra.mxu0 %v1632
        %1728 = vmatpush.msra.mxu0 %v1631
        %1729 = vmatpush.msra.mxu0 %v1630
        %1730 = vmatpush.msra.mxu0 %v1629
        %1731 = vmatpush.msra.mxu0 %v1628
        %1732 = vmatpush.msra.mxu0 %v1627
        %1733 = vmatpush.msra.mxu0 %v1626
        %1734 = vmatpush.msra.mxu0 %v1625
        %1735 = vmatpush.msra.mxu0 %v1624
        %1736 = vmatpush.msra.mxu0 %v1623
        %1737 = vmatmul.f32.gmra.mxu0 %v1674
        %v1738 = vpop.f32.mrf.mxu0
        %v1739 = vadd.f32 0.0, %v1738
        %1740 = vmatmul.f32.gmra.mxu0 %v1677
        %v1741 = vpop.f32.mrf.mxu0
        %v1742 = vadd.f32 0.0, %v1741
        %1743 = vmatmul.f32.gmra.mxu0 %v1680
        %v1744 = vpop.f32.mrf.mxu0
        %v1745 = vadd.f32 0.0, %v1744
        %1746 = vmatmul.f32.gmra.mxu0 %v1683
        %v1747 = vpop.f32.mrf.mxu0
        %v1748 = vadd.f32 0.0, %v1747
        %1749 = vmatmul.f32.gmra.mxu0 %v1686
        %v1750 = vpop.f32.mrf.mxu0
        %v1751 = vadd.f32 0.0, %v1750
        %1752 = vmatmul.f32.gmra.mxu0 %v1689
        %v1753 = vpop.f32.mrf.mxu0
        %v1754 = vadd.f32 0.0, %v1753
        %1755 = vmatmul.f32.gmra.mxu0 %v1692
        %v1756 = vpop.f32.mrf.mxu0
        %v1757 = vadd.f32 0.0, %v1756
        %1758 = vmatmul.f32.gmra.mxu0 %v1695
        %v1759 = vpop.f32.mrf.mxu0
        %v1760 = vadd.f32 0.0, %v1759
        %1761 = vmatmul.f32.gmra.mxu0 %v1698
        %v1762 = vpop.f32.mrf.mxu0
        %v1763 = vadd.f32 0.0, %v1762
        %1764 = vmatmul.f32.gmra.mxu0 %v1701
        %v1765 = vpop.f32.mrf.mxu0
        %v1766 = vadd.f32 0.0, %v1765
        %1767 = vmatmul.f32.gmra.mxu0 %v1704
        %v1768 = vpop.f32.mrf.mxu0
        %v1769 = vadd.f32 0.0, %v1768
        %1770 = vmatmul.f32.gmra.mxu0 %v1707
        %v1771 = vpop.f32.mrf.mxu0
        %v1772 = vadd.f32 0.0, %v1771
        %1773 = vmatmul.f32.gmra.mxu0 %v1710
        %v1774 = vpop.f32.mrf.mxu0
        %v1775 = vadd.f32 0.0, %v1774
        %1776 = vmatmul.f32.gmra.mxu0 %v1713
        %v1777 = vpop.f32.mrf.mxu0
        %v1778 = vadd.f32 0.0, %v1777
        %1779 = vmatmul.f32.gmra.mxu0 %v1716
        %v1780 = vpop.f32.mrf.mxu0
        %v1781 = vadd.f32 0.0, %v1780
        %1782 = vmatmul.f32.gmra.mxu0 %v1719
        %v1783 = vpop.f32.mrf.mxu0
        %v1784 = vadd.f32 0.0, %v1783
        %1785 = vdwg.mxu0
        %v1786 = vmax.f32 %v1489, %v1739
        %v1787 = vmax.f32 %v1490, %v1742
        %v1788 = vmax.f32 %v1491, %v1745
        %v1789 = vmax.f32 %v1492, %v1748
        %v1790 = vmax.f32 %v1493, %v1751
        %v1791 = vmax.f32 %v1494, %v1754
        %v1792 = vmax.f32 %v1495, %v1757
        %v1793 = vmax.f32 %v1496, %v1760
        %v1794 = vmax.f32 %v1497, %v1763
        %v1795 = vmax.f32 %v1498, %v1766
        %v1796 = vmax.f32 %v1499, %v1769
        %v1797 = vmax.f32 %v1500, %v1772
        %v1798 = vmax.f32 %v1501, %v1775
        %v1799 = vmax.f32 %v1502, %v1778
        %v1800 = vmax.f32 %v1503, %v1781
        %v1801 = vmax.f32 %v1504, %v1784
        %s1802 = smul.f32 %s186, 32.0
        %s1803 = smul.f32 %s184, 32.0
        %s1804 = sadd.s32 %s178, 17
        %s1805 = sld [smem:[#allocation2 + %s1804]]
        %v1806 = vstv %s1802
        %v1807 = vsub.f32 %v273, %v1806
        %v1808 = vsub.f32 %v274, %v1806
        %v1809 = vsub.f32 %v275, %v1806
        %v1810 = vsub.f32 %v276, %v1806
        %v1811 = vsub.f32 %v277, %v1806
        %v1812 = vsub.f32 %v278, %v1806
        %v1813 = vsub.f32 %v279, %v1806
        %v1814 = vsub.f32 %v280, %v1806
        %v1815 = vsub.f32 %v281, %v1806
        %v1816 = vsub.f32 %v282, %v1806
        %v1817 = vsub.f32 %v283, %v1806
        %v1818 = vsub.f32 %v284, %v1806
        %v1819 = vsub.f32 %v285, %v1806
        %v1820 = vsub.f32 %v286, %v1806
        %v1821 = vsub.f32 %v287, %v1806
        %v1822 = vsub.f32 %v288, %v1806
        %v1823 = vand.u32 2147483647, %v1807
        %v1824 = vand.u32 2147483647, %v1808
        %v1825 = vand.u32 2147483647, %v1809
        %v1826 = vand.u32 2147483647, %v1810
        %v1827 = vand.u32 2147483647, %v1811
        %v1828 = vand.u32 2147483647, %v1812
        %v1829 = vand.u32 2147483647, %v1813
        %v1830 = vand.u32 2147483647, %v1814
        %v1831 = vand.u32 2147483647, %v1815
        %v1832 = vand.u32 2147483647, %v1816
        %v1833 = vand.u32 2147483647, %v1817
        %v1834 = vand.u32 2147483647, %v1818
        %v1835 = vand.u32 2147483647, %v1819
        %v1836 = vand.u32 2147483647, %v1820
        %v1837 = vand.u32 2147483647, %v1821
        %v1838 = vand.u32 2147483647, %v1822
        %v1839 = vsub.f32 1.0, %v1823
        %v1840 = vsub.f32 1.0, %v1824
        %v1841 = vsub.f32 1.0, %v1825
        %v1842 = vsub.f32 1.0, %v1826
        %v1843 = vsub.f32 1.0, %v1827
        %v1844 = vsub.f32 1.0, %v1828
        %v1845 = vsub.f32 1.0, %v1829
        %v1846 = vsub.f32 1.0, %v1830
        %v1847 = vsub.f32 1.0, %v1831
        %v1848 = vsub.f32 1.0, %v1832
        %v1849 = vsub.f32 1.0, %v1833
        %v1850 = vsub.f32 1.0, %v1834
        %v1851 = vsub.f32 1.0, %v1835
        %v1852 = vsub.f32 1.0, %v1836
        %v1853 = vsub.f32 1.0, %v1837
        %v1854 = vsub.f32 1.0, %v1838
        %v1855 = vmax.f32 %v1839, 0.0
        %v1856 = vmax.f32 %v1840, 0.0
        %v1857 = vmax.f32 %v1841, 0.0
        %v1858 = vmax.f32 %v1842, 0.0
        %v1859 = vmax.f32 %v1843, 0.0
        %v1860 = vmax.f32 %v1844, 0.0
        %v1861 = vmax.f32 %v1845, 0.0
        %v1862 = vmax.f32 %v1846, 0.0
        %v1863 = vmax.f32 %v1847, 0.0
        %v1864 = vmax.f32 %v1848, 0.0
        %v1865 = vmax.f32 %v1849, 0.0
        %v1866 = vmax.f32 %v1850, 0.0
        %v1867 = vmax.f32 %v1851, 0.0
        %v1868 = vmax.f32 %v1852, 0.0
        %v1869 = vmax.f32 %v1853, 0.0
        %v1870 = vmax.f32 %v1854, 0.0
        %v1871 = vstv %s1803
        %v1872 = vsub.f32 %v370, %v1871
        %v1873 = vsub.f32 %v371, %v1871
        %v1874 = vsub.f32 %v372, %v1871
        %v1875 = vsub.f32 %v373, %v1871
        %v1876 = vsub.f32 %v374, %v1871
        %v1877 = vsub.f32 %v375, %v1871
        %v1878 = vsub.f32 %v376, %v1871
        %v1879 = vsub.f32 %v377, %v1871
        %v1880 = vsub.f32 %v378, %v1871
        %v1881 = vsub.f32 %v379, %v1871
        %v1882 = vsub.f32 %v380, %v1871
        %v1883 = vsub.f32 %v381, %v1871
        %v1884 = vsub.f32 %v382, %v1871
        %v1885 = vsub.f32 %v383, %v1871
        %v1886 = vsub.f32 %v384, %v1871
        %v1887 = vsub.f32 %v385, %v1871
        %v1888 = vand.u32 2147483647, %v1872
        %v1889 = vand.u32 2147483647, %v1873
        %v1890 = vand.u32 2147483647, %v1874
        %v1891 = vand.u32 2147483647, %v1875
        %v1892 = vand.u32 2147483647, %v1876
        %v1893 = vand.u32 2147483647, %v1877
        %v1894 = vand.u32 2147483647, %v1878
        %v1895 = vand.u32 2147483647, %v1879
        %v1896 = vand.u32 2147483647, %v1880
        %v1897 = vand.u32 2147483647, %v1881
        %v1898 = vand.u32 2147483647, %v1882
        %v1899 = vand.u32 2147483647, %v1883
        %v1900 = vand.u32 2147483647, %v1884
        %v1901 = vand.u32 2147483647, %v1885
        %v1902 = vand.u32 2147483647, %v1886
        %v1903 = vand.u32 2147483647, %v1887
        %v1904 = vsub.f32 1.0, %v1888
        %v1905 = vsub.f32 1.0, %v1889
        %v1906 = vsub.f32 1.0, %v1890
        %v1907 = vsub.f32 1.0, %v1891
        %v1908 = vsub.f32 1.0, %v1892
        %v1909 = vsub.f32 1.0, %v1893
        %v1910 = vsub.f32 1.0, %v1894
        %v1911 = vsub.f32 1.0, %v1895
        %v1912 = vsub.f32 1.0, %v1896
        %v1913 = vsub.f32 1.0, %v1897
        %v1914 = vsub.f32 1.0, %v1898
        %v1915 = vsub.f32 1.0, %v1899
        %v1916 = vsub.f32 1.0, %v1900
        %v1917 = vsub.f32 1.0, %v1901
        %v1918 = vsub.f32 1.0, %v1902
        %v1919 = vsub.f32 1.0, %v1903
        %v1920 = vmax.f32 %v1904, 0.0
        %v1921 = vmax.f32 %v1905, 0.0
        %v1922 = vmax.f32 %v1906, 0.0
        %v1923 = vmax.f32 %v1907, 0.0
        %v1924 = vmax.f32 %v1908, 0.0
        %v1925 = vmax.f32 %v1909, 0.0
        %v1926 = vmax.f32 %v1910, 0.0
        %v1927 = vmax.f32 %v1911, 0.0
        %v1928 = vmax.f32 %v1912, 0.0
        %v1929 = vmax.f32 %v1913, 0.0
        %v1930 = vmax.f32 %v1914, 0.0
        %v1931 = vmax.f32 %v1915, 0.0
        %v1932 = vmax.f32 %v1916, 0.0
        %v1933 = vmax.f32 %v1917, 0.0
        %v1934 = vmax.f32 %v1918, 0.0
        %v1935 = vmax.f32 %v1919, 0.0
        %v1936 = vstv %s1805
        %v1937 = vsub.f32 %v1786, %v1936
        %v1938 = vsub.f32 %v1787, %v1936
        %v1939 = vsub.f32 %v1788, %v1936
        %v1940 = vsub.f32 %v1789, %v1936
        %v1941 = vsub.f32 %v1790, %v1936
        %v1942 = vsub.f32 %v1791, %v1936
        %v1943 = vsub.f32 %v1792, %v1936
        %v1944 = vsub.f32 %v1793, %v1936
        %v1945 = vsub.f32 %v1794, %v1936
        %v1946 = vsub.f32 %v1795, %v1936
        %v1947 = vsub.f32 %v1796, %v1936
        %v1948 = vsub.f32 %v1797, %v1936
        %v1949 = vsub.f32 %v1798, %v1936
        %v1950 = vsub.f32 %v1799, %v1936
        %v1951 = vsub.f32 %v1800, %v1936
        %v1952 = vsub.f32 %v1801, %v1936
        %1953 = vmatpush.msra.mxu0 %v1952
        %1954 = vmatpush.msra.mxu0 %v1951
        %1955 = vmatpush.msra.mxu0 %v1950
        %1956 = vmatpush.msra.mxu0 %v1949
        %1957 = vmatpush.msra.mxu0 %v1948
        %1958 = vmatpush.msra.mxu0 %v1947
        %1959 = vmatpush.msra.mxu0 %v1946
        %1960 = vmatpush.msra.mxu0 %v1945
        %1961 = vmatpush.msra.mxu0 %v1944
        %1962 = vmatpush.msra.mxu0 %v1943
        %1963 = vmatpush.msra.mxu0 %v1942
        %1964 = vmatpush.msra.mxu0 %v1941
        %1965 = vmatpush.msra.mxu0 %v1940
        %1966 = vmatpush.msra.mxu0 %v1939
        %1967 = vmatpush.msra.mxu0 %v1938
        %1968 = vmatpush.msra.mxu0 %v1937
        %1969 = vmatmul.f32.gmra.mxu0 %v1855
        %v1970 = vpop.f32.mrf.mxu0
        %v1971 = vadd.f32 0.0, %v1970
        %1972 = vmatmul.f32.gmra.mxu0 %v1856
        %v1973 = vpop.f32.mrf.mxu0
        %v1974 = vadd.f32 0.0, %v1973
        %1975 = vmatmul.f32.gmra.mxu0 %v1857
        %v1976 = vpop.f32.mrf.mxu0
        %v1977 = vadd.f32 0.0, %v1976
        %1978 = vmatmul.f32.gmra.mxu0 %v1858
        %v1979 = vpop.f32.mrf.mxu0
        %v1980 = vadd.f32 0.0, %v1979
        %1981 = vmatmul.f32.gmra.mxu0 %v1859
        %v1982 = vpop.f32.mrf.mxu0
        %v1983 = vadd.f32 0.0, %v1982
        %1984 = vmatmul.f32.gmra.mxu0 %v1860
        %v1985 = vpop.f32.mrf.mxu0
        %v1986 = vadd.f32 0.0, %v1985
        %1987 = vmatmul.f32.gmra.mxu0 %v1861
        %v1988 = vpop.f32.mrf.mxu0
        %v1989 = vadd.f32 0.0, %v1988
        %1990 = vmatmul.f32.gmra.mxu0 %v1862
        %v1991 = vpop.f32.mrf.mxu0
        %v1992 = vadd.f32 0.0, %v1991
        %1993 = vmatmul.f32.gmra.mxu0 %v1863
        %v1994 = vpop.f32.mrf.mxu0
        %v1995 = vadd.f32 0.0, %v1994
        %1996 = vmatmul.f32.gmra.mxu0 %v1864
        %v1997 = vpop.f32.mrf.mxu0
        %v1998 = vadd.f32 0.0, %v1997
        %1999 = vmatmul.f32.gmra.mxu0 %v1865
        %v2000 = vpop.f32.mrf.mxu0
        %v2001 = vadd.f32 0.0, %v2000
        %2002 = vmatmul.f32.gmra.mxu0 %v1866
        %v2003 = vpop.f32.mrf.mxu0
        %v2004 = vadd.f32 0.0, %v2003
        %2005 = vmatmul.f32.gmra.mxu0 %v1867
        %v2006 = vpop.f32.mrf.mxu0
        %v2007 = vadd.f32 0.0, %v2006
        %2008 = vmatmul.f32.gmra.mxu0 %v1868
        %v2009 = vpop.f32.mrf.mxu0
        %v2010 = vadd.f32 0.0, %v2009
        %2011 = vmatmul.f32.gmra.mxu0 %v1869
        %v2012 = vpop.f32.mrf.mxu0
        %v2013 = vadd.f32 0.0, %v2012
        %2014 = vmatmul.f32.gmra.mxu0 %v1870
        %v2015 = vpop.f32.mrf.mxu0
        %v2016 = vadd.f32 0.0, %v2015
        %2017 = vdwg.mxu0
        %2018 = vmatpush.msra.mxu0 %v1935
        %2019 = vmatpush.msra.mxu0 %v1934
        %2020 = vmatpush.msra.mxu0 %v1933
        %2021 = vmatpush.msra.mxu0 %v1932
        %2022 = vmatpush.msra.mxu0 %v1931
        %2023 = vmatpush.msra.mxu0 %v1930
        %2024 = vmatpush.msra.mxu0 %v1929
        %2025 = vmatpush.msra.mxu0 %v1928
        %2026 = vmatpush.msra.mxu0 %v1927
        %2027 = vmatpush.msra.mxu0 %v1926
        %2028 = vmatpush.msra.mxu0 %v1925
        %2029 = vmatpush.msra.mxu0 %v1924
        %2030 = vmatpush.msra.mxu0 %v1923
        %2031 = vmatpush.msra.mxu0 %v1922
        %2032 = vmatpush.msra.mxu0 %v1921
        %2033 = vmatpush.msra.mxu0 %v1920
        %2034 = vmatmul.f32.gmra.mxu0 %v1971
        %v2035 = vpop.f32.mrf.mxu0
        %v2036 = vadd.f32 0.0, %v2035
        %2037 = vmatmul.f32.gmra.mxu0 %v1974
        %v2038 = vpop.f32.mrf.mxu0
        %v2039 = vadd.f32 0.0, %v2038
        %2040 = vmatmul.f32.gmra.mxu0 %v1977
        %v2041 = vpop.f32.mrf.mxu0
        %v2042 = vadd.f32 0.0, %v2041
        %2043 = vmatmul.f32.gmra.mxu0 %v1980
        %v2044 = vpop.f32.mrf.mxu0
        %v2045 = vadd.f32 0.0, %v2044
        %2046 = vmatmul.f32.gmra.mxu0 %v1983
        %v2047 = vpop.f32.mrf.mxu0
        %v2048 = vadd.f32 0.0, %v2047
        %2049 = vmatmul.f32.gmra.mxu0 %v1986
        %v2050 = vpop.f32.mrf.mxu0
        %v2051 = vadd.f32 0.0, %v2050
        %2052 = vmatmul.f32.gmra.mxu0 %v1989
        %v2053 = vpop.f32.mrf.mxu0
        %v2054 = vadd.f32 0.0, %v2053
        %2055 = vmatmul.f32.gmra.mxu0 %v1992
        %v2056 = vpop.f32.mrf.mxu0
        %v2057 = vadd.f32 0.0, %v2056
        %2058 = vmatmul.f32.gmra.mxu0 %v1995
        %v2059 = vpop.f32.mrf.mxu0
        %v2060 = vadd.f32 0.0, %v2059
        %2061 = vmatmul.f32.gmra.mxu0 %v1998
        %v2062 = vpop.f32.mrf.mxu0
        %v2063 = vadd.f32 0.0, %v2062
        %2064 = vmatmul.f32.gmra.mxu0 %v2001
        %v2065 = vpop.f32.mrf.mxu0
        %v2066 = vadd.f32 0.0, %v2065
        %2067 = vmatmul.f32.gmra.mxu0 %v2004
        %v2068 = vpop.f32.mrf.mxu0
        %v2069 = vadd.f32 0.0, %v2068
        %2070 = vmatmul.f32.gmra.mxu0 %v2007
        %v2071 = vpop.f32.mrf.mxu0
        %v2072 = vadd.f32 0.0, %v2071
        %2073 = vmatmul.f32.gmra.mxu0 %v2010
        %v2074 = vpop.f32.mrf.mxu0
        %v2075 = vadd.f32 0.0, %v2074
        %2076 = vmatmul.f32.gmra.mxu0 %v2013
        %v2077 = vpop.f32.mrf.mxu0
        %v2078 = vadd.f32 0.0, %v2077
        %2079 = vmatmul.f32.gmra.mxu0 %v2016
        %v2080 = vpop.f32.mrf.mxu0
        %v2081 = vadd.f32 0.0, %v2080
        %2082 = vdwg.mxu0
        %v2083 = vmax.f32 %v1786, %v2036
        %v2084 = vmax.f32 %v1787, %v2039
        %v2085 = vmax.f32 %v1788, %v2042
        %v2086 = vmax.f32 %v1789, %v2045
        %v2087 = vmax.f32 %v1790, %v2048
        %v2088 = vmax.f32 %v1791, %v2051
        %v2089 = vmax.f32 %v1792, %v2054
        %v2090 = vmax.f32 %v1793, %v2057
        %v2091 = vmax.f32 %v1794, %v2060
        %v2092 = vmax.f32 %v1795, %v2063
        %v2093 = vmax.f32 %v1796, %v2066
        %v2094 = vmax.f32 %v1797, %v2069
        %v2095 = vmax.f32 %v1798, %v2072
        %v2096 = vmax.f32 %v1799, %v2075
        %v2097 = vmax.f32 %v1800, %v2078
        %v2098 = vmax.f32 %v1801, %v2081
        %s2099 = smul.f32 %s186, 64.0
        %s2100 = smul.f32 %s184, 64.0
        %s2101 = sadd.s32 %s178, 20
        %s2102 = sld [smem:[#allocation2 + %s2101]]
        %v2103 = vstv %s2099
        %v2104 = vsub.f32 %v273, %v2103
        %v2105 = vsub.f32 %v274, %v2103
        %v2106 = vsub.f32 %v275, %v2103
        %v2107 = vsub.f32 %v276, %v2103
        %v2108 = vsub.f32 %v277, %v2103
        %v2109 = vsub.f32 %v278, %v2103
        %v2110 = vsub.f32 %v279, %v2103
        %v2111 = vsub.f32 %v280, %v2103
        %v2112 = vsub.f32 %v281, %v2103
        %v2113 = vsub.f32 %v282, %v2103
        %v2114 = vsub.f32 %v283, %v2103
        %v2115 = vsub.f32 %v284, %v2103
        %v2116 = vsub.f32 %v285, %v2103
        %v2117 = vsub.f32 %v286, %v2103
        %v2118 = vsub.f32 %v287, %v2103
        %v2119 = vsub.f32 %v288, %v2103
        %v2120 = vand.u32 2147483647, %v2104
        %v2121 = vand.u32 2147483647, %v2105
        %v2122 = vand.u32 2147483647, %v2106
        %v2123 = vand.u32 2147483647, %v2107
        %v2124 = vand.u32 2147483647, %v2108
        %v2125 = vand.u32 2147483647, %v2109
        %v2126 = vand.u32 2147483647, %v2110
        %v2127 = vand.u32 2147483647, %v2111
        %v2128 = vand.u32 2147483647, %v2112
        %v2129 = vand.u32 2147483647, %v2113
        %v2130 = vand.u32 2147483647, %v2114
        %v2131 = vand.u32 2147483647, %v2115
        %v2132 = vand.u32 2147483647, %v2116
        %v2133 = vand.u32 2147483647, %v2117
        %v2134 = vand.u32 2147483647, %v2118
        %v2135 = vand.u32 2147483647, %v2119
        %v2136 = vsub.f32 1.0, %v2120
        %v2137 = vsub.f32 1.0, %v2121
        %v2138 = vsub.f32 1.0, %v2122
        %v2139 = vsub.f32 1.0, %v2123
        %v2140 = vsub.f32 1.0, %v2124
        %v2141 = vsub.f32 1.0, %v2125
        %v2142 = vsub.f32 1.0, %v2126
        %v2143 = vsub.f32 1.0, %v2127
        %v2144 = vsub.f32 1.0, %v2128
        %v2145 = vsub.f32 1.0, %v2129
        %v2146 = vsub.f32 1.0, %v2130
        %v2147 = vsub.f32 1.0, %v2131
        %v2148 = vsub.f32 1.0, %v2132
        %v2149 = vsub.f32 1.0, %v2133
        %v2150 = vsub.f32 1.0, %v2134
        %v2151 = vsub.f32 1.0, %v2135
        %v2152 = vmax.f32 %v2136, 0.0
        %v2153 = vmax.f32 %v2137, 0.0
        %v2154 = vmax.f32 %v2138, 0.0
        %v2155 = vmax.f32 %v2139, 0.0
        %v2156 = vmax.f32 %v2140, 0.0
        %v2157 = vmax.f32 %v2141, 0.0
        %v2158 = vmax.f32 %v2142, 0.0
        %v2159 = vmax.f32 %v2143, 0.0
        %v2160 = vmax.f32 %v2144, 0.0
        %v2161 = vmax.f32 %v2145, 0.0
        %v2162 = vmax.f32 %v2146, 0.0
        %v2163 = vmax.f32 %v2147, 0.0
        %v2164 = vmax.f32 %v2148, 0.0
        %v2165 = vmax.f32 %v2149, 0.0
        %v2166 = vmax.f32 %v2150, 0.0
        %v2167 = vmax.f32 %v2151, 0.0
        %v2168 = vstv %s2100
        %v2169 = vsub.f32 %v370, %v2168
        %v2170 = vsub.f32 %v371, %v2168
        %v2171 = vsub.f32 %v372, %v2168
        %v2172 = vsub.f32 %v373, %v2168
        %v2173 = vsub.f32 %v374, %v2168
        %v2174 = vsub.f32 %v375, %v2168
        %v2175 = vsub.f32 %v376, %v2168
        %v2176 = vsub.f32 %v377, %v2168
        %v2177 = vsub.f32 %v378, %v2168
        %v2178 = vsub.f32 %v379, %v2168
        %v2179 = vsub.f32 %v380, %v2168
        %v2180 = vsub.f32 %v381, %v2168
        %v2181 = vsub.f32 %v382, %v2168
        %v2182 = vsub.f32 %v383, %v2168
        %v2183 = vsub.f32 %v384, %v2168
        %v2184 = vsub.f32 %v385, %v2168
        %v2185 = vand.u32 2147483647, %v2169
        %v2186 = vand.u32 2147483647, %v2170
        %v2187 = vand.u32 2147483647, %v2171
        %v2188 = vand.u32 2147483647, %v2172
        %v2189 = vand.u32 2147483647, %v2173
        %v2190 = vand.u32 2147483647, %v2174
        %v2191 = vand.u32 2147483647, %v2175
        %v2192 = vand.u32 2147483647, %v2176
        %v2193 = vand.u32 2147483647, %v2177
        %v2194 = vand.u32 2147483647, %v2178
        %v2195 = vand.u32 2147483647, %v2179
        %v2196 = vand.u32 2147483647, %v2180
        %v2197 = vand.u32 2147483647, %v2181
        %v2198 = vand.u32 2147483647, %v2182
        %v2199 = vand.u32 2147483647, %v2183
        %v2200 = vand.u32 2147483647, %v2184
        %v2201 = vsub.f32 1.0, %v2185
        %v2202 = vsub.f32 1.0, %v2186
        %v2203 = vsub.f32 1.0, %v2187
        %v2204 = vsub.f32 1.0, %v2188
        %v2205 = vsub.f32 1.0, %v2189
        %v2206 = vsub.f32 1.0, %v2190
        %v2207 = vsub.f32 1.0, %v2191
        %v2208 = vsub.f32 1.0, %v2192
        %v2209 = vsub.f32 1.0, %v2193
        %v2210 = vsub.f32 1.0, %v2194
        %v2211 = vsub.f32 1.0, %v2195
        %v2212 = vsub.f32 1.0, %v2196
        %v2213 = vsub.f32 1.0, %v2197
        %v2214 = vsub.f32 1.0, %v2198
        %v2215 = vsub.f32 1.0, %v2199
        %v2216 = vsub.f32 1.0, %v2200
        %v2217 = vmax.f32 %v2201, 0.0
        %v2218 = vmax.f32 %v2202, 0.0
        %v2219 = vmax.f32 %v2203, 0.0
        %v2220 = vmax.f32 %v2204, 0.0
        %v2221 = vmax.f32 %v2205, 0.0
        %v2222 = vmax.f32 %v2206, 0.0
        %v2223 = vmax.f32 %v2207, 0.0
        %v2224 = vmax.f32 %v2208, 0.0
        %v2225 = vmax.f32 %v2209, 0.0
        %v2226 = vmax.f32 %v2210, 0.0
        %v2227 = vmax.f32 %v2211, 0.0
        %v2228 = vmax.f32 %v2212, 0.0
        %v2229 = vmax.f32 %v2213, 0.0
        %v2230 = vmax.f32 %v2214, 0.0
        %v2231 = vmax.f32 %v2215, 0.0
        %v2232 = vmax.f32 %v2216, 0.0
        %v2233 = vstv %s2102
        %v2234 = vsub.f32 %v2083, %v2233
        %v2235 = vsub.f32 %v2084, %v2233
        %v2236 = vsub.f32 %v2085, %v2233
        %v2237 = vsub.f32 %v2086, %v2233
        %v2238 = vsub.f32 %v2087, %v2233
        %v2239 = vsub.f32 %v2088, %v2233
        %v2240 = vsub.f32 %v2089, %v2233
        %v2241 = vsub.f32 %v2090, %v2233
        %v2242 = vsub.f32 %v2091, %v2233
        %v2243 = vsub.f32 %v2092, %v2233
        %v2244 = vsub.f32 %v2093, %v2233
        %v2245 = vsub.f32 %v2094, %v2233
        %v2246 = vsub.f32 %v2095, %v2233
        %v2247 = vsub.f32 %v2096, %v2233
        %v2248 = vsub.f32 %v2097, %v2233
        %v2249 = vsub.f32 %v2098, %v2233
        %2250 = vmatpush.msra.mxu0 %v2249
        %2251 = vmatpush.msra.mxu0 %v2248
        %2252 = vmatpush.msra.mxu0 %v2247
        %2253 = vmatpush.msra.mxu0 %v2246
        %2254 = vmatpush.msra.mxu0 %v2245
        %2255 = vmatpush.msra.mxu0 %v2244
        %2256 = vmatpush.msra.mxu0 %v2243
        %2257 = vmatpush.msra.mxu0 %v2242
        %2258 = vmatpush.msra.mxu0 %v2241
        %2259 = vmatpush.msra.mxu0 %v2240
        %2260 = vmatpush.msra.mxu0 %v2239
        %2261 = vmatpush.msra.mxu0 %v2238
        %2262 = vmatpush.msra.mxu0 %v2237
        %2263 = vmatpush.msra.mxu0 %v2236
        %2264 = vmatpush.msra.mxu0 %v2235
        %2265 = vmatpush.msra.mxu0 %v2234
        %2266 = vmatmul.f32.gmra.mxu0 %v2152
        %v2267 = vpop.f32.mrf.mxu0
        %v2268 = vadd.f32 0.0, %v2267
        %2269 = vmatmul.f32.gmra.mxu0 %v2153
        %v2270 = vpop.f32.mrf.mxu0
        %v2271 = vadd.f32 0.0, %v2270
        %2272 = vmatmul.f32.gmra.mxu0 %v2154
        %v2273 = vpop.f32.mrf.mxu0
        %v2274 = vadd.f32 0.0, %v2273
        %2275 = vmatmul.f32.gmra.mxu0 %v2155
        %v2276 = vpop.f32.mrf.mxu0
        %v2277 = vadd.f32 0.0, %v2276
        %2278 = vmatmul.f32.gmra.mxu0 %v2156
        %v2279 = vpop.f32.mrf.mxu0
        %v2280 = vadd.f32 0.0, %v2279
        %2281 = vmatmul.f32.gmra.mxu0 %v2157
        %v2282 = vpop.f32.mrf.mxu0
        %v2283 = vadd.f32 0.0, %v2282
        %2284 = vmatmul.f32.gmra.mxu0 %v2158
        %v2285 = vpop.f32.mrf.mxu0
        %v2286 = vadd.f32 0.0, %v2285
        %2287 = vmatmul.f32.gmra.mxu0 %v2159
        %v2288 = vpop.f32.mrf.mxu0
        %v2289 = vadd.f32 0.0, %v2288
        %2290 = vmatmul.f32.gmra.mxu0 %v2160
        %v2291 = vpop.f32.mrf.mxu0
        %v2292 = vadd.f32 0.0, %v2291
        %2293 = vmatmul.f32.gmra.mxu0 %v2161
        %v2294 = vpop.f32.mrf.mxu0
        %v2295 = vadd.f32 0.0, %v2294
        %2296 = vmatmul.f32.gmra.mxu0 %v2162
        %v2297 = vpop.f32.mrf.mxu0
        %v2298 = vadd.f32 0.0, %v2297
        %2299 = vmatmul.f32.gmra.mxu0 %v2163
        %v2300 = vpop.f32.mrf.mxu0
        %v2301 = vadd.f32 0.0, %v2300
        %2302 = vmatmul.f32.gmra.mxu0 %v2164
        %v2303 = vpop.f32.mrf.mxu0
        %v2304 = vadd.f32 0.0, %v2303
        %2305 = vmatmul.f32.gmra.mxu0 %v2165
        %v2306 = vpop.f32.mrf.mxu0
        %v2307 = vadd.f32 0.0, %v2306
        %2308 = vmatmul.f32.gmra.mxu0 %v2166
        %v2309 = vpop.f32.mrf.mxu0
        %v2310 = vadd.f32 0.0, %v2309
        %2311 = vmatmul.f32.gmra.mxu0 %v2167
        %v2312 = vpop.f32.mrf.mxu0
        %v2313 = vadd.f32 0.0, %v2312
        %2314 = vdwg.mxu0
        %2315 = vmatpush.msra.mxu0 %v2232
        %2316 = vmatpush.msra.mxu0 %v2231
        %2317 = vmatpush.msra.mxu0 %v2230
        %2318 = vmatpush.msra.mxu0 %v2229
        %2319 = vmatpush.msra.mxu0 %v2228
        %2320 = vmatpush.msra.mxu0 %v2227
        %2321 = vmatpush.msra.mxu0 %v2226
        %2322 = vmatpush.msra.mxu0 %v2225
        %2323 = vmatpush.msra.mxu0 %v2224
        %2324 = vmatpush.msra.mxu0 %v2223
        %2325 = vmatpush.msra.mxu0 %v2222
        %2326 = vmatpush.msra.mxu0 %v2221
        %2327 = vmatpush.msra.mxu0 %v2220
        %2328 = vmatpush.msra.mxu0 %v2219
        %2329 = vmatpush.msra.mxu0 %v2218
        %2330 = vmatpush.msra.mxu0 %v2217
        %2331 = vmatmul.f32.gmra.mxu0 %v2268
        %v2332 = vpop.f32.mrf.mxu0
        %v2333 = vadd.f32 0.0, %v2332
        %2334 = vmatmul.f32.gmra.mxu0 %v2271
        %v2335 = vpop.f32.mrf.mxu0
        %v2336 = vadd.f32 0.0, %v2335
        %2337 = vmatmul.f32.gmra.mxu0 %v2274
        %v2338 = vpop.f32.mrf.mxu0
        %v2339 = vadd.f32 0.0, %v2338
        %2340 = vmatmul.f32.gmra.mxu0 %v2277
        %v2341 = vpop.f32.mrf.mxu0
        %v2342 = vadd.f32 0.0, %v2341
        %2343 = vmatmul.f32.gmra.mxu0 %v2280
        %v2344 = vpop.f32.mrf.mxu0
        %v2345 = vadd.f32 0.0, %v2344
        %2346 = vmatmul.f32.gmra.mxu0 %v2283
        %v2347 = vpop.f32.mrf.mxu0
        %v2348 = vadd.f32 0.0, %v2347
        %2349 = vmatmul.f32.gmra.mxu0 %v2286
        %v2350 = vpop.f32.mrf.mxu0
        %v2351 = vadd.f32 0.0, %v2350
        %2352 = vmatmul.f32.gmra.mxu0 %v2289
        %v2353 = vpop.f32.mrf.mxu0
        %v2354 = vadd.f32 0.0, %v2353
        %2355 = vmatmul.f32.gmra.mxu0 %v2292
        %v2356 = vpop.f32.mrf.mxu0
        %v2357 = vadd.f32 0.0, %v2356
        %2358 = vmatmul.f32.gmra.mxu0 %v2295
        %v2359 = vpop.f32.mrf.mxu0
        %v2360 = vadd.f32 0.0, %v2359
        %2361 = vmatmul.f32.gmra.mxu0 %v2298
        %v2362 = vpop.f32.mrf.mxu0
        %v2363 = vadd.f32 0.0, %v2362
        %2364 = vmatmul.f32.gmra.mxu0 %v2301
        %v2365 = vpop.f32.mrf.mxu0
        %v2366 = vadd.f32 0.0, %v2365
        %2367 = vmatmul.f32.gmra.mxu0 %v2304
        %v2368 = vpop.f32.mrf.mxu0
        %v2369 = vadd.f32 0.0, %v2368
        %2370 = vmatmul.f32.gmra.mxu0 %v2307
        %v2371 = vpop.f32.mrf.mxu0
        %v2372 = vadd.f32 0.0, %v2371
        %2373 = vmatmul.f32.gmra.mxu0 %v2310
        %v2374 = vpop.f32.mrf.mxu0
        %v2375 = vadd.f32 0.0, %v2374
        %2376 = vmatmul.f32.gmra.mxu0 %v2313
        %v2377 = vpop.f32.mrf.mxu0
        %v2378 = vadd.f32 0.0, %v2377
        %2379 = vdwg.mxu0
        %v2380 = vmax.f32 %v2083, %v2333
        %v2381 = vmax.f32 %v2084, %v2336
        %v2382 = vmax.f32 %v2085, %v2339
        %v2383 = vmax.f32 %v2086, %v2342
        %v2384 = vmax.f32 %v2087, %v2345
        %v2385 = vmax.f32 %v2088, %v2348
        %v2386 = vmax.f32 %v2089, %v2351
        %v2387 = vmax.f32 %v2090, %v2354
        %v2388 = vmax.f32 %v2091, %v2357
        %v2389 = vmax.f32 %v2092, %v2360
        %v2390 = vmax.f32 %v2093, %v2363
        %v2391 = vmax.f32 %v2094, %v2366
        %v2392 = vmax.f32 %v2095, %v2369
        %v2393 = vmax.f32 %v2096, %v2372
        %v2394 = vmax.f32 %v2097, %v2375
        %v2395 = vmax.f32 %v2098, %v2378
        %s2396 = smul.f32 %s186, 128.0
        %s2397 = smul.f32 %s184, 128.0
        %s2398 = sadd.s32 %s178, 23
        %s2399 = sld [smem:[#allocation2 + %s2398]]
        %v2400 = vstv %s2396
        %v2401 = vsub.f32 %v273, %v2400
        %v2402 = vsub.f32 %v274, %v2400
        %v2403 = vsub.f32 %v275, %v2400
        %v2404 = vsub.f32 %v276, %v2400
        %v2405 = vsub.f32 %v277, %v2400
        %v2406 = vsub.f32 %v278, %v2400
        %v2407 = vsub.f32 %v279, %v2400
        %v2408 = vsub.f32 %v280, %v2400
        %v2409 = vsub.f32 %v281, %v2400
        %v2410 = vsub.f32 %v282, %v2400
        %v2411 = vsub.f32 %v283, %v2400
        %v2412 = vsub.f32 %v284, %v2400
        %v2413 = vsub.f32 %v285, %v2400
        %v2414 = vsub.f32 %v286, %v2400
        %v2415 = vsub.f32 %v287, %v2400
        %v2416 = vsub.f32 %v288, %v2400
        %v2417 = vand.u32 2147483647, %v2401
        %v2418 = vand.u32 2147483647, %v2402
        %v2419 = vand.u32 2147483647, %v2403
        %v2420 = vand.u32 2147483647, %v2404
        %v2421 = vand.u32 2147483647, %v2405
        %v2422 = vand.u32 2147483647, %v2406
        %v2423 = vand.u32 2147483647, %v2407
        %v2424 = vand.u32 2147483647, %v2408
        %v2425 = vand.u32 2147483647, %v2409
        %v2426 = vand.u32 2147483647, %v2410
        %v2427 = vand.u32 2147483647, %v2411
        %v2428 = vand.u32 2147483647, %v2412
        %v2429 = vand.u32 2147483647, %v2413
        %v2430 = vand.u32 2147483647, %v2414
        %v2431 = vand.u32 2147483647, %v2415
        %v2432 = vand.u32 2147483647, %v2416
        %v2433 = vsub.f32 1.0, %v2417
        %v2434 = vsub.f32 1.0, %v2418
        %v2435 = vsub.f32 1.0, %v2419
        %v2436 = vsub.f32 1.0, %v2420
        %v2437 = vsub.f32 1.0, %v2421
        %v2438 = vsub.f32 1.0, %v2422
        %v2439 = vsub.f32 1.0, %v2423
        %v2440 = vsub.f32 1.0, %v2424
        %v2441 = vsub.f32 1.0, %v2425
        %v2442 = vsub.f32 1.0, %v2426
        %v2443 = vsub.f32 1.0, %v2427
        %v2444 = vsub.f32 1.0, %v2428
        %v2445 = vsub.f32 1.0, %v2429
        %v2446 = vsub.f32 1.0, %v2430
        %v2447 = vsub.f32 1.0, %v2431
        %v2448 = vsub.f32 1.0, %v2432
        %v2449 = vmax.f32 %v2433, 0.0
        %v2450 = vmax.f32 %v2434, 0.0
        %v2451 = vmax.f32 %v2435, 0.0
        %v2452 = vmax.f32 %v2436, 0.0
        %v2453 = vmax.f32 %v2437, 0.0
        %v2454 = vmax.f32 %v2438, 0.0
        %v2455 = vmax.f32 %v2439, 0.0
        %v2456 = vmax.f32 %v2440, 0.0
        %v2457 = vmax.f32 %v2441, 0.0
        %v2458 = vmax.f32 %v2442, 0.0
        %v2459 = vmax.f32 %v2443, 0.0
        %v2460 = vmax.f32 %v2444, 0.0
        %v2461 = vmax.f32 %v2445, 0.0
        %v2462 = vmax.f32 %v2446, 0.0
        %v2463 = vmax.f32 %v2447, 0.0
        %v2464 = vmax.f32 %v2448, 0.0
        %v2465 = vstv %s2397
        %v2466 = vsub.f32 %v370, %v2465
        %v2467 = vsub.f32 %v371, %v2465
        %v2468 = vsub.f32 %v372, %v2465
        %v2469 = vsub.f32 %v373, %v2465
        %v2470 = vsub.f32 %v374, %v2465
        %v2471 = vsub.f32 %v375, %v2465
        %v2472 = vsub.f32 %v376, %v2465
        %v2473 = vsub.f32 %v377, %v2465
        %v2474 = vsub.f32 %v378, %v2465
        %v2475 = vsub.f32 %v379, %v2465
        %v2476 = vsub.f32 %v380, %v2465
        %v2477 = vsub.f32 %v381, %v2465
        %v2478 = vsub.f32 %v382, %v2465
        %v2479 = vsub.f32 %v383, %v2465
        %v2480 = vsub.f32 %v384, %v2465
        %v2481 = vsub.f32 %v385, %v2465
        %v2482 = vand.u32 2147483647, %v2466
        %v2483 = vand.u32 2147483647, %v2467
        %v2484 = vand.u32 2147483647, %v2468
        %v2485 = vand.u32 2147483647, %v2469
        %v2486 = vand.u32 2147483647, %v2470
        %v2487 = vand.u32 2147483647, %v2471
        %v2488 = vand.u32 2147483647, %v2472
        %v2489 = vand.u32 2147483647, %v2473
        %v2490 = vand.u32 2147483647, %v2474
        %v2491 = vand.u32 2147483647, %v2475
        %v2492 = vand.u32 2147483647, %v2476
        %v2493 = vand.u32 2147483647, %v2477
        %v2494 = vand.u32 2147483647, %v2478
        %v2495 = vand.u32 2147483647, %v2479
        %v2496 = vand.u32 2147483647, %v2480
        %v2497 = vand.u32 2147483647, %v2481
        %v2498 = vsub.f32 1.0, %v2482
        %v2499 = vsub.f32 1.0, %v2483
        %v2500 = vsub.f32 1.0, %v2484
        %v2501 = vsub.f32 1.0, %v2485
        %v2502 = vsub.f32 1.0, %v2486
        %v2503 = vsub.f32 1.0, %v2487
        %v2504 = vsub.f32 1.0, %v2488
        %v2505 = vsub.f32 1.0, %v2489
        %v2506 = vsub.f32 1.0, %v2490
        %v2507 = vsub.f32 1.0, %v2491
        %v2508 = vsub.f32 1.0, %v2492
        %v2509 = vsub.f32 1.0, %v2493
        %v2510 = vsub.f32 1.0, %v2494
        %v2511 = vsub.f32 1.0, %v2495
        %v2512 = vsub.f32 1.0, %v2496
        %v2513 = vsub.f32 1.0, %v2497
        %v2514 = vmax.f32 %v2498, 0.0
        %v2515 = vmax.f32 %v2499, 0.0
        %v2516 = vmax.f32 %v2500, 0.0
        %v2517 = vmax.f32 %v2501, 0.0
        %v2518 = vmax.f32 %v2502, 0.0
        %v2519 = vmax.f32 %v2503, 0.0
        %v2520 = vmax.f32 %v2504, 0.0
        %v2521 = vmax.f32 %v2505, 0.0
        %v2522 = vmax.f32 %v2506, 0.0
        %v2523 = vmax.f32 %v2507, 0.0
        %v2524 = vmax.f32 %v2508, 0.0
        %v2525 = vmax.f32 %v2509, 0.0
        %v2526 = vmax.f32 %v2510, 0.0
        %v2527 = vmax.f32 %v2511, 0.0
        %v2528 = vmax.f32 %v2512, 0.0
        %v2529 = vmax.f32 %v2513, 0.0
        %v2530 = vstv %s2399
        %v2531 = vsub.f32 %v2380, %v2530
        %v2532 = vsub.f32 %v2381, %v2530
        %v2533 = vsub.f32 %v2382, %v2530
        %v2534 = vsub.f32 %v2383, %v2530
        %v2535 = vsub.f32 %v2384, %v2530
        %v2536 = vsub.f32 %v2385, %v2530
        %v2537 = vsub.f32 %v2386, %v2530
        %v2538 = vsub.f32 %v2387, %v2530
        %v2539 = vsub.f32 %v2388, %v2530
        %v2540 = vsub.f32 %v2389, %v2530
        %v2541 = vsub.f32 %v2390, %v2530
        %v2542 = vsub.f32 %v2391, %v2530
        %v2543 = vsub.f32 %v2392, %v2530
        %v2544 = vsub.f32 %v2393, %v2530
        %v2545 = vsub.f32 %v2394, %v2530
        %v2546 = vsub.f32 %v2395, %v2530
        %2547 = vmatpush.msra.mxu0 %v2546
        %2548 = vmatpush.msra.mxu0 %v2545
        %2549 = vmatpush.msra.mxu0 %v2544
        %2550 = vmatpush.msra.mxu0 %v2543
        %2551 = vmatpush.msra.mxu0 %v2542
        %2552 = vmatpush.msra.mxu0 %v2541
        %2553 = vmatpush.msra.mxu0 %v2540
        %2554 = vmatpush.msra.mxu0 %v2539
        %2555 = vmatpush.msra.mxu0 %v2538
        %2556 = vmatpush.msra.mxu0 %v2537
        %2557 = vmatpush.msra.mxu0 %v2536
        %2558 = vmatpush.msra.mxu0 %v2535
        %2559 = vmatpush.msra.mxu0 %v2534
        %2560 = vmatpush.msra.mxu0 %v2533
        %2561 = vmatpush.msra.mxu0 %v2532
        %2562 = vmatpush.msra.mxu0 %v2531
        %2563 = vmatmul.f32.gmra.mxu0 %v2449
        %v2564 = vpop.f32.mrf.mxu0
        %v2565 = vadd.f32 0.0, %v2564
        %2566 = vmatmul.f32.gmra.mxu0 %v2450
        %v2567 = vpop.f32.mrf.mxu0
        %v2568 = vadd.f32 0.0, %v2567
        %2569 = vmatmul.f32.gmra.mxu0 %v2451
        %v2570 = vpop.f32.mrf.mxu0
        %v2571 = vadd.f32 0.0, %v2570
        %2572 = vmatmul.f32.gmra.mxu0 %v2452
        %v2573 = vpop.f32.mrf.mxu0
        %v2574 = vadd.f32 0.0, %v2573
        %2575 = vmatmul.f32.gmra.mxu0 %v2453
        %v2576 = vpop.f32.mrf.mxu0
        %v2577 = vadd.f32 0.0, %v2576
        %2578 = vmatmul.f32.gmra.mxu0 %v2454
        %v2579 = vpop.f32.mrf.mxu0
        %v2580 = vadd.f32 0.0, %v2579
        %2581 = vmatmul.f32.gmra.mxu0 %v2455
        %v2582 = vpop.f32.mrf.mxu0
        %v2583 = vadd.f32 0.0, %v2582
        %2584 = vmatmul.f32.gmra.mxu0 %v2456
        %v2585 = vpop.f32.mrf.mxu0
        %v2586 = vadd.f32 0.0, %v2585
        %2587 = vmatmul.f32.gmra.mxu0 %v2457
        %v2588 = vpop.f32.mrf.mxu0
        %v2589 = vadd.f32 0.0, %v2588
        %2590 = vmatmul.f32.gmra.mxu0 %v2458
        %v2591 = vpop.f32.mrf.mxu0
        %v2592 = vadd.f32 0.0, %v2591
        %2593 = vmatmul.f32.gmra.mxu0 %v2459
        %v2594 = vpop.f32.mrf.mxu0
        %v2595 = vadd.f32 0.0, %v2594
        %2596 = vmatmul.f32.gmra.mxu0 %v2460
        %v2597 = vpop.f32.mrf.mxu0
        %v2598 = vadd.f32 0.0, %v2597
        %2599 = vmatmul.f32.gmra.mxu0 %v2461
        %v2600 = vpop.f32.mrf.mxu0
        %v2601 = vadd.f32 0.0, %v2600
        %2602 = vmatmul.f32.gmra.mxu0 %v2462
        %v2603 = vpop.f32.mrf.mxu0
        %v2604 = vadd.f32 0.0, %v2603
        %2605 = vmatmul.f32.gmra.mxu0 %v2463
        %v2606 = vpop.f32.mrf.mxu0
        %v2607 = vadd.f32 0.0, %v2606
        %2608 = vmatmul.f32.gmra.mxu0 %v2464
        %v2609 = vpop.f32.mrf.mxu0
        %v2610 = vadd.f32 0.0, %v2609
        %2611 = vdwg.mxu0
        %2612 = vmatpush.msra.mxu0 %v2529
        %2613 = vmatpush.msra.mxu0 %v2528
        %2614 = vmatpush.msra.mxu0 %v2527
        %2615 = vmatpush.msra.mxu0 %v2526
        %2616 = vmatpush.msra.mxu0 %v2525
        %2617 = vmatpush.msra.mxu0 %v2524
        %2618 = vmatpush.msra.mxu0 %v2523
        %2619 = vmatpush.msra.mxu0 %v2522
        %2620 = vmatpush.msra.mxu0 %v2521
        %2621 = vmatpush.msra.mxu0 %v2520
        %2622 = vmatpush.msra.mxu0 %v2519
        %2623 = vmatpush.msra.mxu0 %v2518
        %2624 = vmatpush.msra.mxu0 %v2517
        %2625 = vmatpush.msra.mxu0 %v2516
        %2626 = vmatpush.msra.mxu0 %v2515
        %2627 = vmatpush.msra.mxu0 %v2514
        %2628 = vmatmul.f32.gmra.mxu0 %v2565
        %v2629 = vpop.f32.mrf.mxu0
        %v2630 = vadd.f32 0.0, %v2629
        %2631 = vmatmul.f32.gmra.mxu0 %v2568
        %v2632 = vpop.f32.mrf.mxu0
        %v2633 = vadd.f32 0.0, %v2632
        %2634 = vmatmul.f32.gmra.mxu0 %v2571
        %v2635 = vpop.f32.mrf.mxu0
        %v2636 = vadd.f32 0.0, %v2635
        %2637 = vmatmul.f32.gmra.mxu0 %v2574
        %v2638 = vpop.f32.mrf.mxu0
        %v2639 = vadd.f32 0.0, %v2638
        %2640 = vmatmul.f32.gmra.mxu0 %v2577
        %v2641 = vpop.f32.mrf.mxu0
        %v2642 = vadd.f32 0.0, %v2641
        %2643 = vmatmul.f32.gmra.mxu0 %v2580
        %v2644 = vpop.f32.mrf.mxu0
        %v2645 = vadd.f32 0.0, %v2644
        %2646 = vmatmul.f32.gmra.mxu0 %v2583
        %v2647 = vpop.f32.mrf.mxu0
        %v2648 = vadd.f32 0.0, %v2647
        %2649 = vmatmul.f32.gmra.mxu0 %v2586
        %v2650 = vpop.f32.mrf.mxu0
        %v2651 = vadd.f32 0.0, %v2650
        %2652 = vmatmul.f32.gmra.mxu0 %v2589
        %v2653 = vpop.f32.mrf.mxu0
        %v2654 = vadd.f32 0.0, %v2653
        %2655 = vmatmul.f32.gmra.mxu0 %v2592
        %v2656 = vpop.f32.mrf.mxu0
        %v2657 = vadd.f32 0.0, %v2656
        %2658 = vmatmul.f32.gmra.mxu0 %v2595
        %v2659 = vpop.f32.mrf.mxu0
        %v2660 = vadd.f32 0.0, %v2659
        %2661 = vmatmul.f32.gmra.mxu0 %v2598
        %v2662 = vpop.f32.mrf.mxu0
        %v2663 = vadd.f32 0.0, %v2662
        %2664 = vmatmul.f32.gmra.mxu0 %v2601
        %v2665 = vpop.f32.mrf.mxu0
        %v2666 = vadd.f32 0.0, %v2665
        %2667 = vmatmul.f32.gmra.mxu0 %v2604
        %v2668 = vpop.f32.mrf.mxu0
        %v2669 = vadd.f32 0.0, %v2668
        %2670 = vmatmul.f32.gmra.mxu0 %v2607
        %v2671 = vpop.f32.mrf.mxu0
        %v2672 = vadd.f32 0.0, %v2671
        %2673 = vmatmul.f32.gmra.mxu0 %v2610
        %v2674 = vpop.f32.mrf.mxu0
        %v2675 = vadd.f32 0.0, %v2674
        %2676 = vdwg.mxu0
        %v2677 = vmax.f32 %v2380, %v2630
        %v2678 = vmax.f32 %v2381, %v2633
        %v2679 = vmax.f32 %v2382, %v2636
        %v2680 = vmax.f32 %v2383, %v2639
        %v2681 = vmax.f32 %v2384, %v2642
        %v2682 = vmax.f32 %v2385, %v2645
        %v2683 = vmax.f32 %v2386, %v2648
        %v2684 = vmax.f32 %v2387, %v2651
        %v2685 = vmax.f32 %v2388, %v2654
        %v2686 = vmax.f32 %v2389, %v2657
        %v2687 = vmax.f32 %v2390, %v2660
        %v2688 = vmax.f32 %v2391, %v2663
        %v2689 = vmax.f32 %v2392, %v2666
        %v2690 = vmax.f32 %v2393, %v2669
        %v2691 = vmax.f32 %v2394, %v2672
        %v2692 = vmax.f32 %v2395, %v2675
        %v2693 = vsub.f32 %v220, %v2677
        %v2694 = vsub.f32 %v221, %v2678
        %v2695 = vsub.f32 %v222, %v2679
        %v2696 = vsub.f32 %v223, %v2680
        %v2697 = vsub.f32 %v224, %v2681
        %v2698 = vsub.f32 %v225, %v2682
        %v2699 = vsub.f32 %v226, %v2683
        %v2700 = vsub.f32 %v227, %v2684
        %v2701 = vsub.f32 %v228, %v2685
        %v2702 = vsub.f32 %v229, %v2686
        %v2703 = vsub.f32 %v230, %v2687
        %v2704 = vsub.f32 %v231, %v2688
        %v2705 = vsub.f32 %v232, %v2689
        %v2706 = vsub.f32 %v233, %v2690
        %v2707 = vsub.f32 %v234, %v2691
        %v2708 = vsub.f32 %v235, %v2692
        %v2709 = vstv %s182
        %v2710 = vmul.f32 %v2693, %v2709
        %v2711 = vmul.f32 %v2694, %v2709
        %v2712 = vmul.f32 %v2695, %v2709
        %v2713 = vmul.f32 %v2696, %v2709
        %v2714 = vmul.f32 %v2697, %v2709
        %v2715 = vmul.f32 %v2698, %v2709
        %v2716 = vmul.f32 %v2699, %v2709
        %v2717 = vmul.f32 %v2700, %v2709
        %v2718 = vmul.f32 %v2701, %v2709
        %v2719 = vmul.f32 %v2702, %v2709
        %v2720 = vmul.f32 %v2703, %v2709
        %v2721 = vmul.f32 %v2704, %v2709
        %v2722 = vmul.f32 %v2705, %v2709
        %v2723 = vmul.f32 %v2706, %v2709
        %v2724 = vmul.f32 %v2707, %v2709
        %v2725 = vmul.f32 %v2708, %v2709
        %v2726 = vmul.f32 %v2710, 1.442695
        %v2727 = vpow.pop %v2726
        %v2728 = vmul.f32 %v2711, 1.442695
        %v2729 = vpow.pop %v2728
        %v2730 = vmul.f32 %v2712, 1.442695
        %v2731 = vpow.pop %v2730
        %v2732 = vmul.f32 %v2713, 1.442695
        %v2733 = vpow.pop %v2732
        %v2734 = vmul.f32 %v2714, 1.442695
        %v2735 = vpow.pop %v2734
        %v2736 = vmul.f32 %v2715, 1.442695
        %v2737 = vpow.pop %v2736
        %v2738 = vmul.f32 %v2716, 1.442695
        %v2739 = vpow.pop %v2738
        %v2740 = vmul.f32 %v2717, 1.442695
        %v2741 = vpow.pop %v2740
        %v2742 = vmul.f32 %v2718, 1.442695
        %v2743 = vpow.pop %v2742
        %v2744 = vmul.f32 %v2719, 1.442695
        %v2745 = vpow.pop %v2744
        %v2746 = vmul.f32 %v2720, 1.442695
        %v2747 = vpow.pop %v2746
        %v2748 = vmul.f32 %v2721, 1.442695
        %v2749 = vpow.pop %v2748
        %v2750 = vmul.f32 %v2722, 1.442695
        %v2751 = vpow.pop %v2750
        %v2752 = vmul.f32 %v2723, 1.442695
        %v2753 = vpow.pop %v2752
        %v2754 = vmul.f32 %v2724, 1.442695
        %v2755 = vpow.pop %v2754
        %v2756 = vmul.f32 %v2725, 1.442695
        %v2757 = vpow.pop %v2756
        %2758 = vst [vmem:[%s177] sm:$0xff] %v2727
        %2759 = vst [vmem:[%s177 + $0x8] sm:$0xff] %v2729
        %2760 = vst [vmem:[%s177 + $0x10] sm:$0xff] %v2731
        %2761 = vst [vmem:[%s177 + $0x18] sm:$0xff] %v2733
        %2762 = vst [vmem:[%s177 + $0x20] sm:$0xff] %v2735
        %2763 = vst [vmem:[%s177 + $0x28] sm:$0xff] %v2737
        %2764 = vst [vmem:[%s177 + $0x30] sm:$0xff] %v2739
        %2765 = vst [vmem:[%s177 + $0x38] sm:$0xff] %v2741
        %2766 = vst [vmem:[%s177 + $0x40] sm:$0xff] %v2743
        %2767 = vst [vmem:[%s177 + $0x48] sm:$0xff] %v2745
        %2768 = vst [vmem:[%s177 + $0x50] sm:$0xff] %v2747
        %2769 = vst [vmem:[%s177 + $0x58] sm:$0xff] %v2749
        %2770 = vst [vmem:[%s177 + $0x60] sm:$0xff] %v2751
        %2771 = vst [vmem:[%s177 + $0x68] sm:$0xff] %v2753
        %2772 = vst [vmem:[%s177 + $0x70] sm:$0xff] %v2755
        %2773 = vst [vmem:[%s177 + $0x78] sm:$0xff] %v2757
        %s2774 = sand.u32 %s75, 1
        %s2775 = scalar_lea.sflag [#allocation4], %s2774
        %s2776 = sand.u32 %s75, 1
        %s2777 = smul.addr %s2776, 128
        %s2778 = scalar_lea.vmem [#allocation7], %s2777
        // Predicated region
        $region37: #{tpu_custom_call.1} parent=27 // pred_check
          %p2779 = pneg %p85
        $region38: #{tpu_custom_call.1} parent=27 // pred_check_branch
          %2781 = sbr.rel (%p2779) target = $region40
        $region39: #{tpu_custom_call.1} parent=27 // pred_region
          %2783 = vsyncadd %s2775, 0
          %s2784 = smul.addr %s20, 16
          %s2785 = smul.addr %s2784, 8
          %s2786 = scalar_lea.hbm %s2, %s2785
          %s2787 = sshll.u32 %s2778, 4
          %s2788 = int_to_ptr.vmem [resolvable:$true] %s2787
          %s2789 = sshll.u32 %s2786, 4
          %s2790 = int_to_ptr.hbm [resolvable:$true] %s2789
          %2795 = dma.vmem_to_hbm [thread:$0]  %s2788, 2048, %s2790, %s2775, 128, 128, 8
        $region40: #{tpu_custom_call.1} parent=27 // pred_fallthru
          _
      $region28: #{tpu_custom_call.1} parent=5 // pred_fallthru
        _
      %p2796 = scmp.le.s32.totalorder 2, %s15
      // Predicated region
      $region41: #{tpu_custom_call.1} parent=5 // pred_check
        %p2797 = pneg %p2796
      $region42: #{tpu_custom_call.1} parent=5 // pred_check_branch
        %2799 = sbr.rel (%p2797) target = $region44
      $region43: #{tpu_custom_call.1} parent=5 // pred_region
        %s2800 = ssub.s32 %s15, 2
        // Predicated region
        $region45: #{tpu_custom_call.1} parent=43 // pred_check
          %p2801 = pneg %p91
        $region46: #{tpu_custom_call.1} parent=43 // pred_check_branch
          %2803 = sbr.rel (%p2801) target = $region48
        $region47: #{tpu_custom_call.1} parent=43 // pred_region
          %s2804 = sand.u32 %s76, 1
          %s2805 = scalar_lea.sflag [#allocation4], %s2804
          %s2806 = sand.u32 %s76, 1
          %s2807 = smul.addr %s2806, 128
          %s2808 = scalar_lea.vmem [#allocation7], %s2807
          %2810 = dma.done %s2805, 2048
        $region48: #{tpu_custom_call.1} parent=43 // pred_fallthru
          _
      $region44: #{tpu_custom_call.1} parent=5 // pred_fallthru
        _
    $region6: #{tpu_custom_call.1} parent=1 // loop_footer
      %s19 = sadd.s32 1, %s15
    $region7: #{tpu_custom_call.1} parent=1 // loop_footer_branch
      %14 = sbr.rel target = $region3
    $region8: #{tpu_custom_call.1} parent=1 // loop_exit
      _
    %2811 = vsyncpa [#allocation3], 1
    %s2812 = scalar_lea.sflag [#allocation3], 1
    %2813 = vsyncpa %s2812, 1
    %2814 = vsyncpa [#allocation4], 1
    %s2815 = scalar_lea.sflag [#allocation4], 1
    %2816 = vsyncpa %s2815, 1
    %2817 = vsyncpa [#allocation5], 1
    %s2818 = scalar_lea.sflag [#allocation5], 1
    %2819 = vsyncpa %s2818, 1

</llo_original>
